<compile_context>
chip_gen: v7x
topology: tpu7x:2x2x1
jax: 0.10.0
libtpu: 0.0.40
codegen_flags: <defaults>
</compile_context>

<pallas_src>
import functools

import jax
import jax.numpy as jnp
from jax.experimental import pallas as pl
from jax.experimental.pallas import tpu as pltpu


def _round_up(x, m):
    return (x + m - 1) // m * m


# ----------------------------------------------------------------------------
# Pallas kernels
# ----------------------------------------------------------------------------
def _gemm_bias_act_kernel(a_ref, b_ref, bias_ref, o_ref, acc_ref, *, slope):
    """Tiled GEMM with K-reduction accumulator and fused bias(+LeakyReLU)."""
    k = pl.program_id(2)

    @pl.when(k == 0)
    def _():
        acc_ref[...] = jnp.zeros_like(acc_ref)

    acc_ref[...] += jnp.dot(
        a_ref[...], b_ref[...], preferred_element_type=jnp.float32
    )

    @pl.when(k == pl.num_programs(2) - 1)
    def _():
        y = acc_ref[...] + bias_ref[...]
        if slope is None:
            o_ref[...] = y
        else:
            o_ref[...] = jnp.where(y > 0, y, slope * y)


def _affine_act_kernel(x_ref, scale_ref, shift_ref, o_ref, *, slope):
    """Fused per-channel scale*x + shift followed by LeakyReLU."""
    y = x_ref[...] * scale_ref[...] + shift_ref[...]
    if slope is None:
        o_ref[...] = y
    else:
        o_ref[...] = jnp.where(y > 0, y, slope * y)


# ----------------------------------------------------------------------------
# Pallas wrappers
# ----------------------------------------------------------------------------
def pallas_conv_gemm(col, layer):
    """(M,K) im2col @ (K,Cout) weight + bias (+fused LeakyReLU).

    Returns the PADDED (Mp, Np) f32 output; caller slices [:M, :Cout].
    """
    M, K = col.shape
    wf_p, bias_p = layer["wf"], layer["bias_p"]
    Kp, Np = wf_p.shape
    TK, TN = layer["TK"], layer["TN"]

    TM = min(512, _round_up(M, 256))
    Mp = _round_up(M, TM)

    a = col.astype(jnp.bfloat16)
    if (Mp, Kp) != (M, K):
        a = jnp.pad(a, ((0, Mp - M), (0, Kp - K)))

    grid = (Mp // TM, Np // TN, Kp // TK)

    out = pl.pallas_call(
        functools.partial(_gemm_bias_act_kernel, slope=layer["fused_slope"]),
        out_shape=jax.ShapeDtypeStruct((Mp, Np), jnp.float32),
        grid=grid,
        in_specs=[
            pl.BlockSpec((TM, TK), lambda i, j, k: (i, k)),
            pl.BlockSpec((TK, TN), lambda i, j, k: (k, j)),
            pl.BlockSpec((1, TN), lambda i, j, k: (0, j)),
        ],
        out_specs=pl.BlockSpec((TM, TN), lambda i, j, k: (i, j)),
        scratch_shapes=[pltpu.VMEM((TM, TN), jnp.float32)],
        compiler_params=pltpu.CompilerParams(
            dimension_semantics=("parallel", "parallel", "arbitrary"),
            vmem_limit_bytes=48 * 1024 * 1024,
        ),
    )(a, wf_p, bias_p)
    return out


def batchnorm_leakyrelu_padded(out_p, M, C, bn, slope=0.2, eps=1e-5):
    """Training-mode BatchNorm2d + LeakyReLU on the padded (Mp, Np) GEMM output."""
    Mp, Np = out_p.shape
    yv = out_p[:M, :C]
    mean = jnp.mean(yv, axis=0)
    var = jnp.mean(jnp.square(yv - mean), axis=0)  # biased variance (train mode)
    inv = bn["gamma"] * jax.lax.rsqrt(var + eps)
    scale = jnp.pad(inv, (0, Np - C)).reshape(1, Np).astype(jnp.float32)
    shift = (
        jnp.pad(bn["beta"] - mean * inv, (0, Np - C)).reshape(1, Np).astype(jnp.float32)
    )

    TB = min(512, Mp)  # Mp is always a multiple of 256 (and of 512 when >= 512)
    out = pl.pallas_call(
        functools.partial(_affine_act_kernel, slope=slope),
        out_shape=jax.ShapeDtypeStruct((Mp, Np), jnp.float32),
        grid=(Mp // TB,),
        in_specs=[
            pl.BlockSpec((TB, Np), lambda i: (i, 0)),
            pl.BlockSpec((1, Np), lambda i: (0, 0)),
            pl.BlockSpec((1, Np), lambda i: (0, 0)),
        ],
        out_specs=pl.BlockSpec((TB, Np), lambda i: (i, 0)),
        compiler_params=pltpu.CompilerParams(dimension_semantics=("parallel",)),
    )(out_p, scale, shift)
    return out


# ----------------------------------------------------------------------------
# Conv layer = im2col (NHWC) + Pallas GEMM (+ fused epilogues)
# ----------------------------------------------------------------------------
def _im2col_nhwc(x, kh, kw, stride, padding):
    # x: (N, H, W, C) -> (N*Hout*Wout, kh*kw*C); K index = (i*kw + j)*C + c
    N, H, W, C = x.shape
    xp = jnp.pad(x, ((0, 0), (padding, padding), (padding, padding), (0, 0)))
    Hout = (H + 2 * padding - kh) // stride + 1
    Wout = (W + 2 * padding - kw) // stride + 1
    cols = []
    for i in range(kh):
        for j in range(kw):
            patch = xp[:, i : i + stride * Hout : stride,
                       j : j + stride * Wout : stride, :]
            cols.append(patch)
    col = jnp.concatenate(cols, axis=-1)  # (N, Hout, Wout, kh*kw*C)
    return col.reshape(N * Hout * Wout, kh * kw * C), Hout, Wout


def conv_layer_forward(x_nhwc, layer):
    Nb = x_nhwc.shape[0]
    col, Hout, Wout = _im2col_nhwc(
        x_nhwc, layer["kh"], layer["kw"], layer["stride"], layer["padding"]
    )
    M = col.shape[0]
    out_p = pallas_conv_gemm(col, layer)  # (Mp, Np) padded f32
    C = layer["Cout"]
    if layer["bn"] is not None:
        out_p = batchnorm_leakyrelu_padded(out_p, M, C, layer["bn"], slope=0.2)
    return out_p[:M, :C].reshape(Nb, Hout, Wout, C)


# ----------------------------------------------------------------------------
# Parameter init (deterministic, synthetic) — weights prepped/padded ONCE here
# ----------------------------------------------------------------------------
def _prep_conv_layer(key, cin, cout, stride, use_bias, with_bn, fused_slope):
    kh = kw = 4
    padding = 1
    k1, k2 = jax.random.split(key)
    w = jax.random.normal(k1, (cout, cin, kh, kw), jnp.float32) * 0.05
    if use_bias:
        b = jax.random.normal(k2, (cout,), jnp.float32) * 0.05
    else:
        b = jnp.zeros((cout,), jnp.float32)

    K = cin * kh * kw
    TK = min(512, _round_up(K, 128))
    Kp = _round_up(K, TK)
    TN = min(256, _round_up(cout, 128))
    Np = _round_up(cout, TN)

    # (Cout, Cin, kh, kw) -> (kh, kw, Cin, Cout) -> (K, Cout), matching im2col
    wf = w.transpose(2, 3, 1, 0).reshape(K, cout)
    wf_p = jnp.pad(wf, ((0, Kp - K), (0, Np - cout))).astype(jnp.bfloat16)
    bias_p = jnp.pad(b, (0, Np - cout)).reshape(1, Np).astype(jnp.float32)

    return {
        "kh": kh, "kw": kw, "stride": stride, "padding": padding,
        "Cout": cout, "K": K, "TK": TK, "TN": TN,
        "wf": wf_p, "bias_p": bias_p,
        "fused_slope": fused_slope,
        "bn": ({"gamma": jnp.ones((cout,), jnp.float32),
                "beta": jnp.zeros((cout,), jnp.float32)} if with_bn else None),
    }


def init_nlayer_discriminator(key, input_nc, ndf=64, n_layers=3, use_sigmoid=False):
    # norm_layer = BatchNorm2d  =>  use_bias = False for BN-followed convs.
    keys = jax.random.split(key, n_layers + 2)
    layers = []
    # Conv(input_nc -> ndf, k4 s2 p1, bias) + LeakyReLU(0.2)  (fused into GEMM)
    layers.append(_prep_conv_layer(keys[0], input_nc, ndf, stride=2,
                                   use_bias=True, with_bn=False, fused_slope=0.2))
    nf_mult = 1
    for n in range(1, n_layers):
        nf_mult_prev = nf_mult
        nf_mult = min(2 ** n, 8)
        layers.append(_prep_conv_layer(keys[n], ndf * nf_mult_prev, ndf * nf_mult,
                                       stride=2, use_bias=False, with_bn=True,
                                       fused_slope=None))
    nf_mult_prev = nf_mult
    nf_mult = min(2 ** n_layers, 8)
    layers.append(_prep_conv_layer(keys[n_layers], ndf * nf_mult_prev, ndf * nf_mult,
                                   stride=1, use_bias=False, with_bn=True,
                                   fused_slope=None))
    # Final Conv(ndf*nf_mult -> 1, k4 s1 p1, bias), no activation
    layers.append(_prep_conv_layer(keys[n_layers + 1], ndf * nf_mult, 1,
                                   stride=1, use_bias=True, with_bn=False,
                                   fused_slope=None))
    return {"layers": layers, "use_sigmoid": use_sigmoid}


# ----------------------------------------------------------------------------
# Forward pass (mirrors the nn.Sequential composition exactly)
# ----------------------------------------------------------------------------
def nlayer_discriminator_forward(params, x_nchw):
    x = jnp.transpose(x_nchw, (0, 2, 3, 1))  # NCHW -> NHWC (lane-dense channels)
    for layer in params["layers"]:
        x = conv_layer_forward(x, layer)
    if params["use_sigmoid"]:
        x = jax.nn.sigmoid(x)
    return jnp.transpose(x, (0, 3, 1, 2))  # NHWC -> NCHW


# ----------------------------------------------------------------------------
if __name__ == "__main__":
    # Small config: input_nc=3, ndf=8, n_layers=3, 32x32 input, batch=2.
    key = jax.random.PRNGKey(0)
    kx, kp = jax.random.split(key)
    x = jax.random.normal(kx, (2, 3, 32, 32), jnp.float32)
    params = init_nlayer_discriminator(kp, input_nc=3, ndf=8, n_layers=3,
                                       use_sigmoid=False)

    fwd = jax.jit(lambda inp: nlayer_discriminator_forward(params, inp))
    out = fwd(x)
    out = jax.block_until_ready(out)
    # 32 -> 16 -> 8 -> 4 (three s2 convs) -> 3 (s1 k4 p1) -> 2 (final s1 k4 p1)
    assert out.shape == (2, 1, 2, 2), out.shape
    assert jnp.all(jnp.isfinite(out))
    print("KERNEL_OK")
</pallas_src>

<mosaic_0001>
module attributes {stable_mosaic.version = 11 : i64} {
  func.func @_gemm_bias_act_kernel(%arg0: i32, %arg1: i32, %arg2: i32, %arg3: memref<512x128xbf16, #tpu.memory_space<vmem>>, %arg4: memref<128x128xbf16, #tpu.memory_space<vmem>>, %arg5: memref<1x128xf32, #tpu.memory_space<vmem>>, %arg6: memref<512x128xf32, #tpu.memory_space<vmem>>, %arg7: memref<512x128xf32, #tpu.memory_space<vmem>>) attributes {dimension_semantics = [#tpu.dimension_semantics<parallel>, #tpu.dimension_semantics<parallel>, #tpu.dimension_semantics<arbitrary>], iteration_bounds = array<i64: 1, 1, 1>, scalar_prefetch = 0 : i64, scratch_operands = 1 : i64, tpu.core_type = #tpu.core_type<tc>, window_params = [{transform_indices = @transform_0, window_bounds = array<i64: 512, 128>}, {transform_indices = @transform_1, window_bounds = array<i64: 128, 128>}, {transform_indices = @transform_2, window_bounds = array<i64: 1, 128>}, {transform_indices = @transform_3, window_bounds = array<i64: 512, 128>}]} {
    %c0_i32 = arith.constant 0 : i32
    %0 = arith.cmpi eq, %arg2, %c0_i32 : i32
    %1 = arith.extui %0 : i1 to i32
    %c0_i32_0 = arith.constant 0 : i32
    %2 = arith.cmpi ne, %1, %c0_i32_0 : i32
    scf.if %2 {
      %cst_10 = arith.constant 0.000000e+00 : f32
      %12 = vector.broadcast %cst_10 : f32 to vector<512x128xf32>
      %c0_11 = arith.constant 0 : index
      %c0_12 = arith.constant 0 : index
      %13 = vector.load %arg7[%c0_11, %c0_12] : memref<512x128xf32, #tpu.memory_space<vmem>>, vector<512x128xf32>
      tpu.vector_store %arg7[%c0_11, %c0_12], %12 {strides = array<i32>} : memref<512x128xf32, #tpu.memory_space<vmem>>, vector<512x128xf32>,
    } else {
    }
    %c0 = arith.constant 0 : index
    %c0_1 = arith.constant 0 : index
    %3 = vector.load %arg7[%c0, %c0_1] : memref<512x128xf32, #tpu.memory_space<vmem>>, vector<512x128xf32>
    %c0_2 = arith.constant 0 : index
    %c0_3 = arith.constant 0 : index
    %4 = vector.load %arg3[%c0_2, %c0_3] : memref<512x128xbf16, #tpu.memory_space<vmem>>, vector<512x128xbf16>
    %c0_4 = arith.constant 0 : index
    %c0_5 = arith.constant 0 : index
    %5 = vector.load %arg4[%c0_4, %c0_5] : memref<128x128xbf16, #tpu.memory_space<vmem>>, vector<128x128xbf16>
    %cst = arith.constant dense<0.000000e+00> : vector<512x128xf32>
    %6 = tpu.matmul %4, %5, %cst {dimension_numbers = #tpu.dot_dimension_numbers<[1], [0], [0], [1], [0, 0, 1, 1], [], []>} : vector<512x128xbf16>, vector<128x128xbf16>, vector<512x128xf32> -> vector<512x128xf32>
    %7 = arith.addf %3, %6 : vector<512x128xf32>
    %c0_6 = arith.constant 0 : index
    %c0_7 = arith.constant 0 : index
    %8 = vector.load %arg7[%c0_6, %c0_7] : memref<512x128xf32, #tpu.memory_space<vmem>>, vector<512x128xf32>
    tpu.vector_store %arg7[%c0_6, %c0_7], %7 {strides = array<i32>} : memref<512x128xf32, #tpu.memory_space<vmem>>, vector<512x128xf32>,
    %c0_i32_8 = arith.constant 0 : i32
    %9 = arith.cmpi eq, %arg2, %c0_i32_8 : i32
    %10 = arith.extui %9 : i1 to i32
    %c0_i32_9 = arith.constant 0 : i32
    %11 = arith.cmpi ne, %10, %c0_i32_9 : i32
    scf.if %11 {
      %c0_10 = arith.constant 0 : index
      %c0_11 = arith.constant 0 : index
      %12 = vector.load %arg7[%c0_10, %c0_11] : memref<512x128xf32, #tpu.memory_space<vmem>>, vector<512x128xf32>
      %c0_12 = arith.constant 0 : index
      %c0_13 = arith.constant 0 : index
      %13 = vector.load %arg5[%c0_12, %c0_13] : memref<1x128xf32, #tpu.memory_space<vmem>>, vector<1x128xf32>
      %14 = vector.broadcast %13 : vector<1x128xf32> to vector<512x128xf32>
      %15 = arith.addf %12, %14 : vector<512x128xf32>
      %cst_14 = arith.constant 0.000000e+00 : f32
      %16 = vector.broadcast %cst_14 : f32 to vector<512x128xf32>
      %17 = arith.cmpf ogt, %15, %16 : vector<512x128xf32>
      %cst_15 = arith.constant 2.000000e-01 : f32
      %18 = vector.broadcast %cst_15 : f32 to vector<512x128xf32>
      %19 = arith.mulf %18, %15 : vector<512x128xf32>
      %20 = arith.select %17, %15, %19 : vector<512x128xi1>, vector<512x128xf32>
      %c0_16 = arith.constant 0 : index
      %c0_17 = arith.constant 0 : index
      %21 = vector.load %arg6[%c0_16, %c0_17] : memref<512x128xf32, #tpu.memory_space<vmem>>, vector<512x128xf32>
      tpu.vector_store %arg6[%c0_16, %c0_17], %20 {strides = array<i32>} : memref<512x128xf32, #tpu.memory_space<vmem>>, vector<512x128xf32>,
    } else {
    }
    return
  }
  func.func @transform_0(%arg0: i32, %arg1: i32, %arg2: i32) -> (i32, i32) {
    %c0_i32 = arith.constant 0 : i32
    return %arg0, %arg2 : i32, i32
  }
  func.func @transform_1(%arg0: i32, %arg1: i32, %arg2: i32) -> (i32, i32) {
    %c0_i32 = arith.constant 0 : i32
    return %arg2, %arg1 : i32, i32
  }
  func.func @transform_2(%arg0: i32, %arg1: i32, %arg2: i32) -> (i32, i32) {
    %c0_i32 = arith.constant 0 : i32
    %c0_i32_0 = arith.constant 0 : i32
    return %c0_i32, %arg1 : i32, i32
  }
  func.func @transform_3(%arg0: i32, %arg1: i32, %arg2: i32) -> (i32, i32) {
    %c0_i32 = arith.constant 0 : i32
    return %arg0, %arg1 : i32, i32
  }
}

module attributes {stable_mosaic.version = 11 : i64} {
  func.func @_gemm_bias_act_kernel(%arg0: i32, %arg1: i32, %arg2: i32, %arg3: memref<256x128xbf16, #tpu.memory_space<vmem>>, %arg4: memref<128x128xbf16, #tpu.memory_space<vmem>>, %arg5: memref<1x128xf32, #tpu.memory_space<vmem>>, %arg6: memref<256x128xf32, #tpu.memory_space<vmem>>, %arg7: memref<256x128xf32, #tpu.memory_space<vmem>>) attributes {dimension_semantics = [#tpu.dimension_semantics<parallel>, #tpu.dimension_semantics<parallel>, #tpu.dimension_semantics<arbitrary>], iteration_bounds = array<i64: 1, 1, 1>, scalar_prefetch = 0 : i64, scratch_operands = 1 : i64, tpu.core_type = #tpu.core_type<tc>, window_params = [{transform_indices = @transform_0, window_bounds = array<i64: 256, 128>}, {transform_indices = @transform_1, window_bounds = array<i64: 128, 128>}, {transform_indices = @transform_2, window_bounds = array<i64: 1, 128>}, {transform_indices = @transform_3, window_bounds = array<i64: 256, 128>}]} {
    %c0_i32 = arith.constant 0 : i32
    %0 = arith.cmpi eq, %arg2, %c0_i32 : i32
    %1 = arith.extui %0 : i1 to i32
    %c0_i32_0 = arith.constant 0 : i32
    %2 = arith.cmpi ne, %1, %c0_i32_0 : i32
    scf.if %2 {
      %cst_10 = arith.constant 0.000000e+00 : f32
      %12 = vector.broadcast %cst_10 : f32 to vector<256x128xf32>
      %c0_11 = arith.constant 0 : index
      %c0_12 = arith.constant 0 : index
      %13 = vector.load %arg7[%c0_11, %c0_12] : memref<256x128xf32, #tpu.memory_space<vmem>>, vector<256x128xf32>
      tpu.vector_store %arg7[%c0_11, %c0_12], %12 {strides = array<i32>} : memref<256x128xf32, #tpu.memory_space<vmem>>, vector<256x128xf32>,
    } else {
    }
    %c0 = arith.constant 0 : index
    %c0_1 = arith.constant 0 : index
    %3 = vector.load %arg7[%c0, %c0_1] : memref<256x128xf32, #tpu.memory_space<vmem>>, vector<256x128xf32>
    %c0_2 = arith.constant 0 : index
    %c0_3 = arith.constant 0 : index
    %4 = vector.load %arg3[%c0_2, %c0_3] : memref<256x128xbf16, #tpu.memory_space<vmem>>, vector<256x128xbf16>
    %c0_4 = arith.constant 0 : index
    %c0_5 = arith.constant 0 : index
    %5 = vector.load %arg4[%c0_4, %c0_5] : memref<128x128xbf16, #tpu.memory_space<vmem>>, vector<128x128xbf16>
    %cst = arith.constant dense<0.000000e+00> : vector<256x128xf32>
    %6 = tpu.matmul %4, %5, %cst {dimension_numbers = #tpu.dot_dimension_numbers<[1], [0], [0], [1], [0, 0, 1, 1], [], []>} : vector<256x128xbf16>, vector<128x128xbf16>, vector<256x128xf32> -> vector<256x128xf32>
    %7 = arith.addf %3, %6 : vector<256x128xf32>
    %c0_6 = arith.constant 0 : index
    %c0_7 = arith.constant 0 : index
    %8 = vector.load %arg7[%c0_6, %c0_7] : memref<256x128xf32, #tpu.memory_space<vmem>>, vector<256x128xf32>
    tpu.vector_store %arg7[%c0_6, %c0_7], %7 {strides = array<i32>} : memref<256x128xf32, #tpu.memory_space<vmem>>, vector<256x128xf32>,
    %c0_i32_8 = arith.constant 0 : i32
    %9 = arith.cmpi eq, %arg2, %c0_i32_8 : i32
    %10 = arith.extui %9 : i1 to i32
    %c0_i32_9 = arith.constant 0 : i32
    %11 = arith.cmpi ne, %10, %c0_i32_9 : i32
    scf.if %11 {
      %c0_10 = arith.constant 0 : index
      %c0_11 = arith.constant 0 : index
      %12 = vector.load %arg7[%c0_10, %c0_11] : memref<256x128xf32, #tpu.memory_space<vmem>>, vector<256x128xf32>
      %c0_12 = arith.constant 0 : index
      %c0_13 = arith.constant 0 : index
      %13 = vector.load %arg5[%c0_12, %c0_13] : memref<1x128xf32, #tpu.memory_space<vmem>>, vector<1x128xf32>
      %14 = vector.broadcast %13 : vector<1x128xf32> to vector<256x128xf32>
      %15 = arith.addf %12, %14 : vector<256x128xf32>
      %c0_14 = arith.constant 0 : index
      %c0_15 = arith.constant 0 : index
      %16 = vector.load %arg6[%c0_14, %c0_15] : memref<256x128xf32, #tpu.memory_space<vmem>>, vector<256x128xf32>
      tpu.vector_store %arg6[%c0_14, %c0_15], %15 {strides = array<i32>} : memref<256x128xf32, #tpu.memory_space<vmem>>, vector<256x128xf32>,
    } else {
    }
    return
  }
  func.func @transform_0(%arg0: i32, %arg1: i32, %arg2: i32) -> (i32, i32) {
    %c0_i32 = arith.constant 0 : i32
    return %arg0, %arg2 : i32, i32
  }
  func.func @transform_1(%arg0: i32, %arg1: i32, %arg2: i32) -> (i32, i32) {
    %c0_i32 = arith.constant 0 : i32
    return %arg2, %arg1 : i32, i32
  }
  func.func @transform_2(%arg0: i32, %arg1: i32, %arg2: i32) -> (i32, i32) {
    %c0_i32 = arith.constant 0 : i32
    %c0_i32_0 = arith.constant 0 : i32
    return %c0_i32, %arg1 : i32, i32
  }
  func.func @transform_3(%arg0: i32, %arg1: i32, %arg2: i32) -> (i32, i32) {
    %c0_i32 = arith.constant 0 : i32
    return %arg0, %arg1 : i32, i32
  }
}

module attributes {stable_mosaic.version = 11 : i64} {
  func.func @_affine_act_kernel(%arg0: i32, %arg1: memref<256x128xf32, #tpu.memory_space<vmem>>, %arg2: memref<1x128xf32, #tpu.memory_space<vmem>>, %arg3: memref<1x128xf32, #tpu.memory_space<vmem>>, %arg4: memref<256x128xf32, #tpu.memory_space<vmem>>) attributes {dimension_semantics = [#tpu.dimension_semantics<parallel>], iteration_bounds = array<i64: 1>, scalar_prefetch = 0 : i64, scratch_operands = 0 : i64, tpu.core_type = #tpu.core_type<tc>, window_params = [{transform_indices = @transform_0, window_bounds = array<i64: 256, 128>}, {pipeline_mode = #tpu.pipeline_mode<synchronous>, transform_indices = @transform_1, window_bounds = array<i64: 1, 128>}, {pipeline_mode = #tpu.pipeline_mode<synchronous>, transform_indices = @transform_2, window_bounds = array<i64: 1, 128>}, {transform_indices = @transform_3, window_bounds = array<i64: 256, 128>}]} {
    %c0 = arith.constant 0 : index
    %c0_0 = arith.constant 0 : index
    %0 = vector.load %arg1[%c0, %c0_0] : memref<256x128xf32, #tpu.memory_space<vmem>>, vector<256x128xf32>
    %c0_1 = arith.constant 0 : index
    %c0_2 = arith.constant 0 : index
    %1 = vector.load %arg2[%c0_1, %c0_2] : memref<1x128xf32, #tpu.memory_space<vmem>>, vector<1x128xf32>
    %2 = vector.broadcast %1 : vector<1x128xf32> to vector<256x128xf32>
    %3 = arith.mulf %0, %2 : vector<256x128xf32>
    %c0_3 = arith.constant 0 : index
    %c0_4 = arith.constant 0 : index
    %4 = vector.load %arg3[%c0_3, %c0_4] : memref<1x128xf32, #tpu.memory_space<vmem>>, vector<1x128xf32>
    %5 = vector.broadcast %4 : vector<1x128xf32> to vector<256x128xf32>
    %6 = arith.addf %3, %5 : vector<256x128xf32>
    %cst = arith.constant 0.000000e+00 : f32
    %7 = vector.broadcast %cst : f32 to vector<256x128xf32>
    %8 = arith.cmpf ogt, %6, %7 : vector<256x128xf32>
    %cst_5 = arith.constant 2.000000e-01 : f32
    %9 = vector.broadcast %cst_5 : f32 to vector<256x128xf32>
    %10 = arith.mulf %9, %6 : vector<256x128xf32>
    %11 = arith.select %8, %6, %10 : vector<256x128xi1>, vector<256x128xf32>
    %c0_6 = arith.constant 0 : index
    %c0_7 = arith.constant 0 : index
    %12 = vector.load %arg4[%c0_6, %c0_7] : memref<256x128xf32, #tpu.memory_space<vmem>>, vector<256x128xf32>
    tpu.vector_store %arg4[%c0_6, %c0_7], %11 {strides = array<i32>} : memref<256x128xf32, #tpu.memory_space<vmem>>, vector<256x128xf32>,
    return
  }
  func.func @transform_0(%arg0: i32) -> (i32, i32) {
    %c0_i32 = arith.constant 0 : i32
    %c0_i32_0 = arith.constant 0 : i32
    return %arg0, %c0_i32 : i32, i32
  }
  func.func @transform_1(%arg0: i32) -> (i32, i32) {
    %c0_i32 = arith.constant 0 : i32
    %c0_i32_0 = arith.constant 0 : i32
    %c0_i32_1 = arith.constant 0 : i32
    return %c0_i32, %c0_i32_0 : i32, i32
  }
  func.func @transform_2(%arg0: i32) -> (i32, i32) {
    %c0_i32 = arith.constant 0 : i32
    %c0_i32_0 = arith.constant 0 : i32
    %c0_i32_1 = arith.constant 0 : i32
    return %c0_i32, %c0_i32_0 : i32, i32
  }
  func.func @transform_3(%arg0: i32) -> (i32, i32) {
    %c0_i32 = arith.constant 0 : i32
    %c0_i32_0 = arith.constant 0 : i32
    return %arg0, %c0_i32 : i32, i32
  }
}

module attributes {stable_mosaic.version = 11 : i64} {
  func.func @_gemm_bias_act_kernel(%arg0: i32, %arg1: i32, %arg2: i32, %arg3: memref<256x256xbf16, #tpu.memory_space<vmem>>, %arg4: memref<256x128xbf16, #tpu.memory_space<vmem>>, %arg5: memref<1x128xf32, #tpu.memory_space<vmem>>, %arg6: memref<256x128xf32, #tpu.memory_space<vmem>>, %arg7: memref<256x128xf32, #tpu.memory_space<vmem>>) attributes {dimension_semantics = [#tpu.dimension_semantics<parallel>, #tpu.dimension_semantics<parallel>, #tpu.dimension_semantics<arbitrary>], iteration_bounds = array<i64: 1, 1, 1>, scalar_prefetch = 0 : i64, scratch_operands = 1 : i64, tpu.core_type = #tpu.core_type<tc>, window_params = [{transform_indices = @transform_0, window_bounds = array<i64: 256, 256>}, {transform_indices = @transform_1, window_bounds = array<i64: 256, 128>}, {transform_indices = @transform_2, window_bounds = array<i64: 1, 128>}, {transform_indices = @transform_3, window_bounds = array<i64: 256, 128>}]} {
    %c0_i32 = arith.constant 0 : i32
    %0 = arith.cmpi eq, %arg2, %c0_i32 : i32
    %1 = arith.extui %0 : i1 to i32
    %c0_i32_0 = arith.constant 0 : i32
    %2 = arith.cmpi ne, %1, %c0_i32_0 : i32
    scf.if %2 {
      %cst_10 = arith.constant 0.000000e+00 : f32
      %12 = vector.broadcast %cst_10 : f32 to vector<256x128xf32>
      %c0_11 = arith.constant 0 : index
      %c0_12 = arith.constant 0 : index
      %13 = vector.load %arg7[%c0_11, %c0_12] : memref<256x128xf32, #tpu.memory_space<vmem>>, vector<256x128xf32>
      tpu.vector_store %arg7[%c0_11, %c0_12], %12 {strides = array<i32>} : memref<256x128xf32, #tpu.memory_space<vmem>>, vector<256x128xf32>,
    } else {
    }
    %c0 = arith.constant 0 : index
    %c0_1 = arith.constant 0 : index
    %3 = vector.load %arg7[%c0, %c0_1] : memref<256x128xf32, #tpu.memory_space<vmem>>, vector<256x128xf32>
    %c0_2 = arith.constant 0 : index
    %c0_3 = arith.constant 0 : index
    %4 = vector.load %arg3[%c0_2, %c0_3] : memref<256x256xbf16, #tpu.memory_space<vmem>>, vector<256x256xbf16>
    %c0_4 = arith.constant 0 : index
    %c0_5 = arith.constant 0 : index
    %5 = vector.load %arg4[%c0_4, %c0_5] : memref<256x128xbf16, #tpu.memory_space<vmem>>, vector<256x128xbf16>
    %cst = arith.constant dense<0.000000e+00> : vector<256x128xf32>
    %6 = tpu.matmul %4, %5, %cst {dimension_numbers = #tpu.dot_dimension_numbers<[1], [0], [0], [1], [0, 0, 1, 1], [], []>} : vector<256x256xbf16>, vector<256x128xbf16>, vector<256x128xf32> -> vector<256x128xf32>
    %7 = arith.addf %3, %6 : vector<256x128xf32>
    %c0_6 = arith.constant 0 : index
    %c0_7 = arith.constant 0 : index
    %8 = vector.load %arg7[%c0_6, %c0_7] : memref<256x128xf32, #tpu.memory_space<vmem>>, vector<256x128xf32>
    tpu.vector_store %arg7[%c0_6, %c0_7], %7 {strides = array<i32>} : memref<256x128xf32, #tpu.memory_space<vmem>>, vector<256x128xf32>,
    %c0_i32_8 = arith.constant 0 : i32
    %9 = arith.cmpi eq, %arg2, %c0_i32_8 : i32
    %10 = arith.extui %9 : i1 to i32
    %c0_i32_9 = arith.constant 0 : i32
    %11 = arith.cmpi ne, %10, %c0_i32_9 : i32
    scf.if %11 {
      %c0_10 = arith.constant 0 : index
      %c0_11 = arith.constant 0 : index
      %12 = vector.load %arg7[%c0_10, %c0_11] : memref<256x128xf32, #tpu.memory_space<vmem>>, vector<256x128xf32>
      %c0_12 = arith.constant 0 : index
      %c0_13 = arith.constant 0 : index
      %13 = vector.load %arg5[%c0_12, %c0_13] : memref<1x128xf32, #tpu.memory_space<vmem>>, vector<1x128xf32>
      %14 = vector.broadcast %13 : vector<1x128xf32> to vector<256x128xf32>
      %15 = arith.addf %12, %14 : vector<256x128xf32>
      %c0_14 = arith.constant 0 : index
      %c0_15 = arith.constant 0 : index
      %16 = vector.load %arg6[%c0_14, %c0_15] : memref<256x128xf32, #tpu.memory_space<vmem>>, vector<256x128xf32>
      tpu.vector_store %arg6[%c0_14, %c0_15], %15 {strides = array<i32>} : memref<256x128xf32, #tpu.memory_space<vmem>>, vector<256x128xf32>,
    } else {
    }
    return
  }
  func.func @transform_0(%arg0: i32, %arg1: i32, %arg2: i32) -> (i32, i32) {
    %c0_i32 = arith.constant 0 : i32
    return %arg0, %arg2 : i32, i32
  }
  func.func @transform_1(%arg0: i32, %arg1: i32, %arg2: i32) -> (i32, i32) {
    %c0_i32 = arith.constant 0 : i32
    return %arg2, %arg1 : i32, i32
  }
  func.func @transform_2(%arg0: i32, %arg1: i32, %arg2: i32) -> (i32, i32) {
    %c0_i32 = arith.constant 0 : i32
    %c0_i32_0 = arith.constant 0 : i32
    return %c0_i32, %arg1 : i32, i32
  }
  func.func @transform_3(%arg0: i32, %arg1: i32, %arg2: i32) -> (i32, i32) {
    %c0_i32 = arith.constant 0 : i32
    return %arg0, %arg1 : i32, i32
  }
}

module attributes {stable_mosaic.version = 11 : i64} {
  func.func @_gemm_bias_act_kernel(%arg0: i32, %arg1: i32, %arg2: i32, %arg3: memref<256x512xbf16, #tpu.memory_space<vmem>>, %arg4: memref<512x128xbf16, #tpu.memory_space<vmem>>, %arg5: memref<1x128xf32, #tpu.memory_space<vmem>>, %arg6: memref<256x128xf32, #tpu.memory_space<vmem>>, %arg7: memref<256x128xf32, #tpu.memory_space<vmem>>) attributes {dimension_semantics = [#tpu.dimension_semantics<parallel>, #tpu.dimension_semantics<parallel>, #tpu.dimension_semantics<arbitrary>], iteration_bounds = array<i64: 1, 1, 1>, scalar_prefetch = 0 : i64, scratch_operands = 1 : i64, tpu.core_type = #tpu.core_type<tc>, window_params = [{transform_indices = @transform_0, window_bounds = array<i64: 256, 512>}, {transform_indices = @transform_1, window_bounds = array<i64: 512, 128>}, {transform_indices = @transform_2, window_bounds = array<i64: 1, 128>}, {transform_indices = @transform_3, window_bounds = array<i64: 256, 128>}]} {
    %c0_i32 = arith.constant 0 : i32
    %0 = arith.cmpi eq, %arg2, %c0_i32 : i32
    %1 = arith.extui %0 : i1 to i32
    %c0_i32_0 = arith.constant 0 : i32
    %2 = arith.cmpi ne, %1, %c0_i32_0 : i32
    scf.if %2 {
      %cst_10 = arith.constant 0.000000e+00 : f32
      %12 = vector.broadcast %cst_10 : f32 to vector<256x128xf32>
      %c0_11 = arith.constant 0 : index
      %c0_12 = arith.constant 0 : index
      %13 = vector.load %arg7[%c0_11, %c0_12] : memref<256x128xf32, #tpu.memory_space<vmem>>, vector<256x128xf32>
      tpu.vector_store %arg7[%c0_11, %c0_12], %12 {strides = array<i32>} : memref<256x128xf32, #tpu.memory_space<vmem>>, vector<256x128xf32>,
    } else {
    }
    %c0 = arith.constant 0 : index
    %c0_1 = arith.constant 0 : index
    %3 = vector.load %arg7[%c0, %c0_1] : memref<256x128xf32, #tpu.memory_space<vmem>>, vector<256x128xf32>
    %c0_2 = arith.constant 0 : index
    %c0_3 = arith.constant 0 : index
    %4 = vector.load %arg3[%c0_2, %c0_3] : memref<256x512xbf16, #tpu.memory_space<vmem>>, vector<256x512xbf16>
    %c0_4 = arith.constant 0 : index
    %c0_5 = arith.constant 0 : index
    %5 = vector.load %arg4[%c0_4, %c0_5] : memref<512x128xbf16, #tpu.memory_space<vmem>>, vector<512x128xbf16>
    %cst = arith.constant dense<0.000000e+00> : vector<256x128xf32>
    %6 = tpu.matmul %4, %5, %cst {dimension_numbers = #tpu.dot_dimension_numbers<[1], [0], [0], [1], [0, 0, 1, 1], [], []>} : vector<256x512xbf16>, vector<512x128xbf16>, vector<256x128xf32> -> vector<256x128xf32>
    %7 = arith.addf %3, %6 : vector<256x128xf32>
    %c0_6 = arith.constant 0 : index
    %c0_7 = arith.constant 0 : index
    %8 = vector.load %arg7[%c0_6, %c0_7] : memref<256x128xf32, #tpu.memory_space<vmem>>, vector<256x128xf32>
    tpu.vector_store %arg7[%c0_6, %c0_7], %7 {strides = array<i32>} : memref<256x128xf32, #tpu.memory_space<vmem>>, vector<256x128xf32>,
    %c0_i32_8 = arith.constant 0 : i32
    %9 = arith.cmpi eq, %arg2, %c0_i32_8 : i32
    %10 = arith.extui %9 : i1 to i32
    %c0_i32_9 = arith.constant 0 : i32
    %11 = arith.cmpi ne, %10, %c0_i32_9 : i32
    scf.if %11 {
      %c0_10 = arith.constant 0 : index
      %c0_11 = arith.constant 0 : index
      %12 = vector.load %arg7[%c0_10, %c0_11] : memref<256x128xf32, #tpu.memory_space<vmem>>, vector<256x128xf32>
      %c0_12 = arith.constant 0 : index
      %c0_13 = arith.constant 0 : index
      %13 = vector.load %arg5[%c0_12, %c0_13] : memref<1x128xf32, #tpu.memory_space<vmem>>, vector<1x128xf32>
      %14 = vector.broadcast %13 : vector<1x128xf32> to vector<256x128xf32>
      %15 = arith.addf %12, %14 : vector<256x128xf32>
      %c0_14 = arith.constant 0 : index
      %c0_15 = arith.constant 0 : index
      %16 = vector.load %arg6[%c0_14, %c0_15] : memref<256x128xf32, #tpu.memory_space<vmem>>, vector<256x128xf32>
      tpu.vector_store %arg6[%c0_14, %c0_15], %15 {strides = array<i32>} : memref<256x128xf32, #tpu.memory_space<vmem>>, vector<256x128xf32>,
    } else {
    }
    return
  }
  func.func @transform_0(%arg0: i32, %arg1: i32, %arg2: i32) -> (i32, i32) {
    %c0_i32 = arith.constant 0 : i32
    return %arg0, %arg2 : i32, i32
  }
  func.func @transform_1(%arg0: i32, %arg1: i32, %arg2: i32) -> (i32, i32) {
    %c0_i32 = arith.constant 0 : i32
    return %arg2, %arg1 : i32, i32
  }
  func.func @transform_2(%arg0: i32, %arg1: i32, %arg2: i32) -> (i32, i32) {
    %c0_i32 = arith.constant 0 : i32
    %c0_i32_0 = arith.constant 0 : i32
    return %c0_i32, %arg1 : i32, i32
  }
  func.func @transform_3(%arg0: i32, %arg1: i32, %arg2: i32) -> (i32, i32) {
    %c0_i32 = arith.constant 0 : i32
    return %arg0, %arg1 : i32, i32
  }
}

module attributes {stable_mosaic.version = 11 : i64} {
  func.func @_gemm_bias_act_kernel(%arg0: i32, %arg1: i32, %arg2: i32, %arg3: memref<256x512xbf16, #tpu.memory_space<vmem>>, %arg4: memref<512x128xbf16, #tpu.memory_space<vmem>>, %arg5: memref<1x128xf32, #tpu.memory_space<vmem>>, %arg6: memref<256x128xf32, #tpu.memory_space<vmem>>, %arg7: memref<256x128xf32, #tpu.memory_space<vmem>>) attributes {dimension_semantics = [#tpu.dimension_semantics<parallel>, #tpu.dimension_semantics<parallel>, #tpu.dimension_semantics<arbitrary>], iteration_bounds = array<i64: 1, 1, 2>, scalar_prefetch = 0 : i64, scratch_operands = 1 : i64, tpu.core_type = #tpu.core_type<tc>, window_params = [{transform_indices = @transform_0, window_bounds = array<i64: 256, 512>}, {transform_indices = @transform_1, window_bounds = array<i64: 512, 128>}, {transform_indices = @transform_2, window_bounds = array<i64: 1, 128>}, {transform_indices = @transform_3, window_bounds = array<i64: 256, 128>}]} {
    %c0_i32 = arith.constant 0 : i32
    %0 = arith.cmpi eq, %arg2, %c0_i32 : i32
    %1 = arith.extui %0 : i1 to i32
    %c0_i32_0 = arith.constant 0 : i32
    %2 = arith.cmpi ne, %1, %c0_i32_0 : i32
    scf.if %2 {
      %cst_9 = arith.constant 0.000000e+00 : f32
      %12 = vector.broadcast %cst_9 : f32 to vector<256x128xf32>
      %c0_10 = arith.constant 0 : index
      %c0_11 = arith.constant 0 : index
      %13 = vector.load %arg7[%c0_10, %c0_11] : memref<256x128xf32, #tpu.memory_space<vmem>>, vector<256x128xf32>
      tpu.vector_store %arg7[%c0_10, %c0_11], %12 {strides = array<i32>} : memref<256x128xf32, #tpu.memory_space<vmem>>, vector<256x128xf32>,
    } else {
    }
    %c0 = arith.constant 0 : index
    %c0_1 = arith.constant 0 : index
    %3 = vector.load %arg7[%c0, %c0_1] : memref<256x128xf32, #tpu.memory_space<vmem>>, vector<256x128xf32>
    %c0_2 = arith.constant 0 : index
    %c0_3 = arith.constant 0 : index
    %4 = vector.load %arg3[%c0_2, %c0_3] : memref<256x512xbf16, #tpu.memory_space<vmem>>, vector<256x512xbf16>
    %c0_4 = arith.constant 0 : index
    %c0_5 = arith.constant 0 : index
    %5 = vector.load %arg4[%c0_4, %c0_5] : memref<512x128xbf16, #tpu.memory_space<vmem>>, vector<512x128xbf16>
    %cst = arith.constant dense<0.000000e+00> : vector<256x128xf32>
    %6 = tpu.matmul %4, %5, %cst {dimension_numbers = #tpu.dot_dimension_numbers<[1], [0], [0], [1], [0, 0, 1, 1], [], []>} : vector<256x512xbf16>, vector<512x128xbf16>, vector<256x128xf32> -> vector<256x128xf32>
    %7 = arith.addf %3, %6 : vector<256x128xf32>
    %c0_6 = arith.constant 0 : index
    %c0_7 = arith.constant 0 : index
    %8 = vector.load %arg7[%c0_6, %c0_7] : memref<256x128xf32, #tpu.memory_space<vmem>>, vector<256x128xf32>
    tpu.vector_store %arg7[%c0_6, %c0_7], %7 {strides = array<i32>} : memref<256x128xf32, #tpu.memory_space<vmem>>, vector<256x128xf32>,
    %c1_i32 = arith.constant 1 : i32
    %9 = arith.cmpi eq, %arg2, %c1_i32 : i32
    %10 = arith.extui %9 : i1 to i32
    %c0_i32_8 = arith.constant 0 : i32
    %11 = arith.cmpi ne, %10, %c0_i32_8 : i32
    scf.if %11 {
      %c0_9 = arith.constant 0 : index
      %c0_10 = arith.constant 0 : index
      %12 = vector.load %arg7[%c0_9, %c0_10] : memref<256x128xf32, #tpu.memory_space<vmem>>, vector<256x128xf32>
      %c0_11 = arith.constant 0 : index
      %c0_12 = arith.constant 0 : index
      %13 = vector.load %arg5[%c0_11, %c0_12] : memref<1x128xf32, #tpu.memory_space<vmem>>, vector<1x128xf32>
      %14 = vector.broadcast %13 : vector<1x128xf32> to vector<256x128xf32>
      %15 = arith.addf %12, %14 : vector<256x128xf32>
      %c0_13 = arith.constant 0 : index
      %c0_14 = arith.constant 0 : index
      %16 = vector.load %arg6[%c0_13, %c0_14] : memref<256x128xf32, #tpu.memory_space<vmem>>, vector<256x128xf32>
      tpu.vector_store %arg6[%c0_13, %c0_14], %15 {strides = array<i32>} : memref<256x128xf32, #tpu.memory_space<vmem>>, vector<256x128xf32>,
    } else {
    }
    return
  }
  func.func @transform_0(%arg0: i32, %arg1: i32, %arg2: i32) -> (i32, i32) {
    %c0_i32 = arith.constant 0 : i32
    return %arg0, %arg2 : i32, i32
  }
  func.func @transform_1(%arg0: i32, %arg1: i32, %arg2: i32) -> (i32, i32) {
    %c0_i32 = arith.constant 0 : i32
    return %arg2, %arg1 : i32, i32
  }
  func.func @transform_2(%arg0: i32, %arg1: i32, %arg2: i32) -> (i32, i32) {
    %c0_i32 = arith.constant 0 : i32
    %c0_i32_0 = arith.constant 0 : i32
    return %c0_i32, %arg1 : i32, i32
  }
  func.func @transform_3(%arg0: i32, %arg1: i32, %arg2: i32) -> (i32, i32) {
    %c0_i32 = arith.constant 0 : i32
    return %arg0, %arg1 : i32, i32
  }
}

</mosaic_0001>

<llo_original>
// kernel: _lambda_.8
$region0: #{_lambda_.8}
  #allocation0 [shape = 'u32[]', space=smem, size = 0x4, offset = 0x4, fixed_abs, tag = 'smem constant byte address 0x4 - core index']
  #allocation1 [shape = 'u32[144,128]{1,0:T(1,128)}', space=vmem, size = 0x12000, scoped, tag = 'internal scratch']
  #allocation2 [shape = 'f32[512,128]{1,0:T(8,128)}', space=vmem, size = 0x40000, scoped, tag = 'scratch operand']
  %s0 = inlined_call_operand.vmem [shape: bf16[512,128], index: 0, kind: input, shape index: {}]
  %s1 = inlined_call_operand.vmem [shape: bf16[128,128], index: 1, kind: input, shape index: {}]
  %s2 = inlined_call_operand.vmem [shape: f32[1,128], index: 2, kind: input, shape index: {}]
  %s3 = inlined_call_operand.vmem [shape: f32[512,128], index: 3, kind: output, shape index: {}]
  %s4 = sld [smem:[#allocation0]]
  $region30: #{_lambda_.8} parent=0
    _
  %s6 = ssub.s32 1, %s4
  %s7 = scalar_select 0, %s6, %s4
  // Predicated region
  $region2: #{_lambda_.8} parent=0 // pred_check
    _
  $region3: #{_lambda_.8} parent=0 // pred_check_branch
    %9 = sbr.rel (0) target = $region5
  $region4: #{_lambda_.8} parent=0 // pred_region
    _
  $region5: #{_lambda_.8} parent=0 // pred_fallthru
    _
  // Predicated region
  $region6: #{_lambda_.8} parent=0 // pred_check
    _
  $region7: #{_lambda_.8} parent=0 // pred_check_branch
    %11 = sbr.rel (0) target = $region9
  $region8: #{_lambda_.8} parent=0 // pred_region
    _
  $region9: #{_lambda_.8} parent=0 // pred_fallthru
    _
  // Predicated region
  $region10: #{_lambda_.8} parent=0 // pred_check
    _
  $region11: #{_lambda_.8} parent=0 // pred_check_branch
    %13 = sbr.rel (0) target = $region13
  $region12: #{_lambda_.8} parent=0 // pred_region
    _
  $region13: #{_lambda_.8} parent=0 // pred_fallthru
    _
  %p15 = scmp.eq.s32.totalorder 0, 0
  // Predicated region
  $region14: #{_lambda_.8} parent=0 // pred_check
    %p16 = pneg %p15
  $region15: #{_lambda_.8} parent=0 // pred_check_branch
    %18 = sbr.rel (%p16) target = $region17
  $region16: #{_lambda_.8} parent=0 // pred_region
    %19 = vst [vmem:[#allocation2] sm:$0xff] 0.0
    %20 = vst [vmem:[#allocation2 + $0x8] sm:$0xff] 0.0
    %21 = vst [vmem:[#allocation2 + $0x10] sm:$0xff] 0.0
    %22 = vst [vmem:[#allocation2 + $0x18] sm:$0xff] 0.0
    %23 = vst [vmem:[#allocation2 + $0x20] sm:$0xff] 0.0
    %24 = vst [vmem:[#allocation2 + $0x28] sm:$0xff] 0.0
    %25 = vst [vmem:[#allocation2 + $0x30] sm:$0xff] 0.0
    %26 = vst [vmem:[#allocation2 + $0x38] sm:$0xff] 0.0
    %27 = vst [vmem:[#allocation2 + $0x40] sm:$0xff] 0.0
    %28 = vst [vmem:[#allocation2 + $0x48] sm:$0xff] 0.0
    %29 = vst [vmem:[#allocation2 + $0x50] sm:$0xff] 0.0
    %30 = vst [vmem:[#allocation2 + $0x58] sm:$0xff] 0.0
    %31 = vst [vmem:[#allocation2 + $0x60] sm:$0xff] 0.0
    %32 = vst [vmem:[#allocation2 + $0x68] sm:$0xff] 0.0
    %33 = vst [vmem:[#allocation2 + $0x70] sm:$0xff] 0.0
    %34 = vst [vmem:[#allocation2 + $0x78] sm:$0xff] 0.0
    %35 = vst [vmem:[#allocation2 + $0x80] sm:$0xff] 0.0
    %36 = vst [vmem:[#allocation2 + $0x88] sm:$0xff] 0.0
    %37 = vst [vmem:[#allocation2 + $0x90] sm:$0xff] 0.0
    %38 = vst [vmem:[#allocation2 + $0x98] sm:$0xff] 0.0
    %39 = vst [vmem:[#allocation2 + $0xa0] sm:$0xff] 0.0
    %40 = vst [vmem:[#allocation2 + $0xa8] sm:$0xff] 0.0
    %41 = vst [vmem:[#allocation2 + $0xb0] sm:$0xff] 0.0
    %42 = vst [vmem:[#allocation2 + $0xb8] sm:$0xff] 0.0
    %43 = vst [vmem:[#allocation2 + $0xc0] sm:$0xff] 0.0
    %44 = vst [vmem:[#allocation2 + $0xc8] sm:$0xff] 0.0
    %45 = vst [vmem:[#allocation2 + $0xd0] sm:$0xff] 0.0
    %46 = vst [vmem:[#allocation2 + $0xd8] sm:$0xff] 0.0
    %47 = vst [vmem:[#allocation2 + $0xe0] sm:$0xff] 0.0
    %48 = vst [vmem:[#allocation2 + $0xe8] sm:$0xff] 0.0
    %49 = vst [vmem:[#allocation2 + $0xf0] sm:$0xff] 0.0
    %50 = vst [vmem:[#allocation2 + $0xf8] sm:$0xff] 0.0
    %51 = vst [vmem:[#allocation2 + $0x100] sm:$0xff] 0.0
    %52 = vst [vmem:[#allocation2 + $0x108] sm:$0xff] 0.0
    %53 = vst [vmem:[#allocation2 + $0x110] sm:$0xff] 0.0
    %54 = vst [vmem:[#allocation2 + $0x118] sm:$0xff] 0.0
    %55 = vst [vmem:[#allocation2 + $0x120] sm:$0xff] 0.0
    %56 = vst [vmem:[#allocation2 + $0x128] sm:$0xff] 0.0
    %57 = vst [vmem:[#allocation2 + $0x130] sm:$0xff] 0.0
    %58 = vst [vmem:[#allocation2 + $0x138] sm:$0xff] 0.0
    %59 = vst [vmem:[#allocation2 + $0x140] sm:$0xff] 0.0
    %60 = vst [vmem:[#allocation2 + $0x148] sm:$0xff] 0.0
    %61 = vst [vmem:[#allocation2 + $0x150] sm:$0xff] 0.0
    %62 = vst [vmem:[#allocation2 + $0x158] sm:$0xff] 0.0
    %63 = vst [vmem:[#allocation2 + $0x160] sm:$0xff] 0.0
    %64 = vst [vmem:[#allocation2 + $0x168] sm:$0xff] 0.0
    %65 = vst [vmem:[#allocation2 + $0x170] sm:$0xff] 0.0
    %66 = vst [vmem:[#allocation2 + $0x178] sm:$0xff] 0.0
    %67 = vst [vmem:[#allocation2 + $0x180] sm:$0xff] 0.0
    %68 = vst [vmem:[#allocation2 + $0x188] sm:$0xff] 0.0
    %69 = vst [vmem:[#allocation2 + $0x190] sm:$0xff] 0.0
    %70 = vst [vmem:[#allocation2 + $0x198] sm:$0xff] 0.0
    %71 = vst [vmem:[#allocation2 + $0x1a0] sm:$0xff] 0.0
    %72 = vst [vmem:[#allocation2 + $0x1a8] sm:$0xff] 0.0
    %73 = vst [vmem:[#allocation2 + $0x1b0] sm:$0xff] 0.0
    %74 = vst [vmem:[#allocation2 + $0x1b8] sm:$0xff] 0.0
    %75 = vst [vmem:[#allocation2 + $0x1c0] sm:$0xff] 0.0
    %76 = vst [vmem:[#allocation2 + $0x1c8] sm:$0xff] 0.0
    %77 = vst [vmem:[#allocation2 + $0x1d0] sm:$0xff] 0.0
    %78 = vst [vmem:[#allocation2 + $0x1d8] sm:$0xff] 0.0
    %79 = vst [vmem:[#allocation2 + $0x1e0] sm:$0xff] 0.0
    %80 = vst [vmem:[#allocation2 + $0x1e8] sm:$0xff] 0.0
    %81 = vst [vmem:[#allocation2 + $0x1f0] sm:$0xff] 0.0
    %82 = vst [vmem:[#allocation2 + $0x1f8] sm:$0xff] 0.0
  $region17: #{_lambda_.8} parent=0 // pred_fallthru
    _
  %v83 = vld [vmem:[#allocation2] sm:$0xff]
  %v84 = vld [vmem:[#allocation2 + $0x8] sm:$0xff]
  %v85 = vld [vmem:[#allocation2 + $0x10] sm:$0xff]
  %v86 = vld [vmem:[#allocation2 + $0x18] sm:$0xff]
  %v87 = vld [vmem:[#allocation2 + $0x20] sm:$0xff]
  %v88 = vld [vmem:[#allocation2 + $0x28] sm:$0xff]
  %v89 = vld [vmem:[#allocation2 + $0x30] sm:$0xff]
  %v90 = vld [vmem:[#allocation2 + $0x38] sm:$0xff]
  %v91 = vld [vmem:[#allocation2 + $0x40] sm:$0xff]
  %v92 = vld [vmem:[#allocation2 + $0x48] sm:$0xff]
  %v93 = vld [vmem:[#allocation2 + $0x50] sm:$0xff]
  %v94 = vld [vmem:[#allocation2 + $0x58] sm:$0xff]
  %v95 = vld [vmem:[#allocation2 + $0x60] sm:$0xff]
  %v96 = vld [vmem:[#allocation2 + $0x68] sm:$0xff]
  %v97 = vld [vmem:[#allocation2 + $0x70] sm:$0xff]
  %v98 = vld [vmem:[#allocation2 + $0x78] sm:$0xff]
  %v99 = vld [vmem:[#allocation2 + $0x80] sm:$0xff]
  %v100 = vld [vmem:[#allocation2 + $0x88] sm:$0xff]
  %v101 = vld [vmem:[#allocation2 + $0x90] sm:$0xff]
  %v102 = vld [vmem:[#allocation2 + $0x98] sm:$0xff]
  %v103 = vld [vmem:[#allocation2 + $0xa0] sm:$0xff]
  %v104 = vld [vmem:[#allocation2 + $0xa8] sm:$0xff]
  %v105 = vld [vmem:[#allocation2 + $0xb0] sm:$0xff]
  %v106 = vld [vmem:[#allocation2 + $0xb8] sm:$0xff]
  %v107 = vld [vmem:[#allocation2 + $0xc0] sm:$0xff]
  %v108 = vld [vmem:[#allocation2 + $0xc8] sm:$0xff]
  %v109 = vld [vmem:[#allocation2 + $0xd0] sm:$0xff]
  %v110 = vld [vmem:[#allocation2 + $0xd8] sm:$0xff]
  %v111 = vld [vmem:[#allocation2 + $0xe0] sm:$0xff]
  %v112 = vld [vmem:[#allocation2 + $0xe8] sm:$0xff]
  %v113 = vld [vmem:[#allocation2 + $0xf0] sm:$0xff]
  %v114 = vld [vmem:[#allocation2 + $0xf8] sm:$0xff]
  %v115 = vld [vmem:[#allocation2 + $0x100] sm:$0xff]
  %v116 = vld [vmem:[#allocation2 + $0x108] sm:$0xff]
  %v117 = vld [vmem:[#allocation2 + $0x110] sm:$0xff]
  %v118 = vld [vmem:[#allocation2 + $0x118] sm:$0xff]
  %v119 = vld [vmem:[#allocation2 + $0x120] sm:$0xff]
  %v120 = vld [vmem:[#allocation2 + $0x128] sm:$0xff]
  %v121 = vld [vmem:[#allocation2 + $0x130] sm:$0xff]
  %v122 = vld [vmem:[#allocation2 + $0x138] sm:$0xff]
  %v123 = vld [vmem:[#allocation2 + $0x140] sm:$0xff]
  %v124 = vld [vmem:[#allocation2 + $0x148] sm:$0xff]
  %v125 = vld [vmem:[#allocation2 + $0x150] sm:$0xff]
  %v126 = vld [vmem:[#allocation2 + $0x158] sm:$0xff]
  %v127 = vld [vmem:[#allocation2 + $0x160] sm:$0xff]
  %v128 = vld [vmem:[#allocation2 + $0x168] sm:$0xff]
  %v129 = vld [vmem:[#allocation2 + $0x170] sm:$0xff]
  %v130 = vld [vmem:[#allocation2 + $0x178] sm:$0xff]
  %v131 = vld [vmem:[#allocation2 + $0x180] sm:$0xff]
  %v132 = vld [vmem:[#allocation2 + $0x188] sm:$0xff]
  %v133 = vld [vmem:[#allocation2 + $0x190] sm:$0xff]
  %v134 = vld [vmem:[#allocation2 + $0x198] sm:$0xff]
  %v135 = vld [vmem:[#allocation2 + $0x1a0] sm:$0xff]
  %v136 = vld [vmem:[#allocation2 + $0x1a8] sm:$0xff]
  %v137 = vld [vmem:[#allocation2 + $0x1b0] sm:$0xff]
  %v138 = vld [vmem:[#allocation2 + $0x1b8] sm:$0xff]
  %v139 = vld [vmem:[#allocation2 + $0x1c0] sm:$0xff]
  %v140 = vld [vmem:[#allocation2 + $0x1c8] sm:$0xff]
  %v141 = vld [vmem:[#allocation2 + $0x1d0] sm:$0xff]
  %v142 = vld [vmem:[#allocation2 + $0x1d8] sm:$0xff]
  %v143 = vld [vmem:[#allocation2 + $0x1e0] sm:$0xff]
  %v144 = vld [vmem:[#allocation2 + $0x1e8] sm:$0xff]
  %v145 = vld [vmem:[#allocation2 + $0x1f0] sm:$0xff]
  %v146 = vld [vmem:[#allocation2 + $0x1f8] sm:$0xff]
  %v147 = vld [vmem:[%s0] sm:$0xf]
  %v148 = vld [vmem:[%s0 + $0x4] sm:$0xf]
  %v149 = vld [vmem:[%s0 + $0x8] sm:$0xf]
  %v150 = vld [vmem:[%s0 + $0xc] sm:$0xf]
  %v151 = vld [vmem:[%s0 + $0x10] sm:$0xf]
  %v152 = vld [vmem:[%s0 + $0x14] sm:$0xf]
  %v153 = vld [vmem:[%s0 + $0x18] sm:$0xf]
  %v154 = vld [vmem:[%s0 + $0x1c] sm:$0xf]
  %v155 = vld [vmem:[%s0 + $0x20] sm:$0xf]
  %v156 = vld [vmem:[%s0 + $0x24] sm:$0xf]
  %v157 = vld [vmem:[%s0 + $0x28] sm:$0xf]
  %v158 = vld [vmem:[%s0 + $0x2c] sm:$0xf]
  %v159 = vld [vmem:[%s0 + $0x30] sm:$0xf]
  %v160 = vld [vmem:[%s0 + $0x34] sm:$0xf]
  %v161 = vld [vmem:[%s0 + $0x38] sm:$0xf]
  %v162 = vld [vmem:[%s0 + $0x3c] sm:$0xf]
  %v163 = vld [vmem:[%s0 + $0x40] sm:$0xf]
  %v164 = vld [vmem:[%s0 + $0x44] sm:$0xf]
  %v165 = vld [vmem:[%s0 + $0x48] sm:$0xf]
  %v166 = vld [vmem:[%s0 + $0x4c] sm:$0xf]
  %v167 = vld [vmem:[%s0 + $0x50] sm:$0xf]
  %v168 = vld [vmem:[%s0 + $0x54] sm:$0xf]
  %v169 = vld [vmem:[%s0 + $0x58] sm:$0xf]
  %v170 = vld [vmem:[%s0 + $0x5c] sm:$0xf]
  %v171 = vld [vmem:[%s0 + $0x60] sm:$0xf]
  %v172 = vld [vmem:[%s0 + $0x64] sm:$0xf]
  %v173 = vld [vmem:[%s0 + $0x68] sm:$0xf]
  %v174 = vld [vmem:[%s0 + $0x6c] sm:$0xf]
  %v175 = vld [vmem:[%s0 + $0x70] sm:$0xf]
  %v176 = vld [vmem:[%s0 + $0x74] sm:$0xf]
  %v177 = vld [vmem:[%s0 + $0x78] sm:$0xf]
  %v178 = vld [vmem:[%s0 + $0x7c] sm:$0xf]
  %v179 = vld [vmem:[%s0 + $0x80] sm:$0xf]
  %v180 = vld [vmem:[%s0 + $0x84] sm:$0xf]
  %v181 = vld [vmem:[%s0 + $0x88] sm:$0xf]
  %v182 = vld [vmem:[%s0 + $0x8c] sm:$0xf]
  %v183 = vld [vmem:[%s0 + $0x90] sm:$0xf]
  %v184 = vld [vmem:[%s0 + $0x94] sm:$0xf]
  %v185 = vld [vmem:[%s0 + $0x98] sm:$0xf]
  %v186 = vld [vmem:[%s0 + $0x9c] sm:$0xf]
  %v187 = vld [vmem:[%s0 + $0xa0] sm:$0xf]
  %v188 = vld [vmem:[%s0 + $0xa4] sm:$0xf]
  %v189 = vld [vmem:[%s0 + $0xa8] sm:$0xf]
  %v190 = vld [vmem:[%s0 + $0xac] sm:$0xf]
  %v191 = vld [vmem:[%s0 + $0xb0] sm:$0xf]
  %v192 = vld [vmem:[%s0 + $0xb4] sm:$0xf]
  %v193 = vld [vmem:[%s0 + $0xb8] sm:$0xf]
  %v194 = vld [vmem:[%s0 + $0xbc] sm:$0xf]
  %v195 = vld [vmem:[%s0 + $0xc0] sm:$0xf]
  %v196 = vld [vmem:[%s0 + $0xc4] sm:$0xf]
  %v197 = vld [vmem:[%s0 + $0xc8] sm:$0xf]
  %v198 = vld [vmem:[%s0 + $0xcc] sm:$0xf]
  %v199 = vld [vmem:[%s0 + $0xd0] sm:$0xf]
  %v200 = vld [vmem:[%s0 + $0xd4] sm:$0xf]
  %v201 = vld [vmem:[%s0 + $0xd8] sm:$0xf]
  %v202 = vld [vmem:[%s0 + $0xdc] sm:$0xf]
  %v203 = vld [vmem:[%s0 + $0xe0] sm:$0xf]
  %v204 = vld [vmem:[%s0 + $0xe4] sm:$0xf]
  %v205 = vld [vmem:[%s0 + $0xe8] sm:$0xf]
  %v206 = vld [vmem:[%s0 + $0xec] sm:$0xf]
  %v207 = vld [vmem:[%s0 + $0xf0] sm:$0xf]
  %v208 = vld [vmem:[%s0 + $0xf4] sm:$0xf]
  %v209 = vld [vmem:[%s0 + $0xf8] sm:$0xf]
  %v210 = vld [vmem:[%s0 + $0xfc] sm:$0xf]
  %v211 = vld [vmem:[%s1] sm:$0xf]
  %v212 = vld [vmem:[%s1 + $0x4] sm:$0xf]
  %v213 = vld [vmem:[%s1 + $0x8] sm:$0xf]
  %v214 = vld [vmem:[%s1 + $0xc] sm:$0xf]
  %v215 = vld [vmem:[%s1 + $0x10] sm:$0xf]
  %v216 = vld [vmem:[%s1 + $0x14] sm:$0xf]
  %v217 = vld [vmem:[%s1 + $0x18] sm:$0xf]
  %v218 = vld [vmem:[%s1 + $0x1c] sm:$0xf]
  %v219 = vld [vmem:[%s1 + $0x20] sm:$0xf]
  %v220 = vld [vmem:[%s1 + $0x24] sm:$0xf]
  %v221 = vld [vmem:[%s1 + $0x28] sm:$0xf]
  %v222 = vld [vmem:[%s1 + $0x2c] sm:$0xf]
  %v223 = vld [vmem:[%s1 + $0x30] sm:$0xf]
  %v224 = vld [vmem:[%s1 + $0x34] sm:$0xf]
  %v225 = vld [vmem:[%s1 + $0x38] sm:$0xf]
  %v226 = vld [vmem:[%s1 + $0x3c] sm:$0xf]
  %v291 = vunpack.c.l.b16 %v147
  %v292 = vunpack.c.l.b16 %v148
  %v293 = vunpack.c.l.b16 %v149
  %v294 = vunpack.c.l.b16 %v150
  %v295 = vunpack.c.l.b16 %v151
  %v296 = vunpack.c.l.b16 %v152
  %v297 = vunpack.c.l.b16 %v153
  %v298 = vunpack.c.l.b16 %v154
  %v299 = vunpack.c.l.b16 %v155
  %v300 = vunpack.c.l.b16 %v156
  %v301 = vunpack.c.l.b16 %v157
  %v302 = vunpack.c.l.b16 %v158
  %v303 = vunpack.c.l.b16 %v159
  %v304 = vunpack.c.l.b16 %v160
  %v305 = vunpack.c.l.b16 %v161
  %v306 = vunpack.c.l.b16 %v162
  %v307 = vunpack.c.l.b16 %v163
  %v308 = vunpack.c.l.b16 %v164
  %v309 = vunpack.c.l.b16 %v165
  %v310 = vunpack.c.l.b16 %v166
  %v311 = vunpack.c.l.b16 %v167
  %v312 = vunpack.c.l.b16 %v168
  %v313 = vunpack.c.l.b16 %v169
  %v314 = vunpack.c.l.b16 %v170
  %v315 = vunpack.c.l.b16 %v171
  %v316 = vunpack.c.l.b16 %v172
  %v317 = vunpack.c.l.b16 %v173
  %v318 = vunpack.c.l.b16 %v174
  %v319 = vunpack.c.l.b16 %v175
  %v320 = vunpack.c.l.b16 %v176
  %v321 = vunpack.c.l.b16 %v177
  %v322 = vunpack.c.l.b16 %v178
  %v323 = vunpack.c.l.b16 %v179
  %v324 = vunpack.c.l.b16 %v180
  %v325 = vunpack.c.l.b16 %v181
  %v326 = vunpack.c.l.b16 %v182
  %v327 = vunpack.c.l.b16 %v183
  %v328 = vunpack.c.l.b16 %v184
  %v329 = vunpack.c.l.b16 %v185
  %v330 = vunpack.c.l.b16 %v186
  %v331 = vunpack.c.l.b16 %v187
  %v332 = vunpack.c.l.b16 %v188
  %v333 = vunpack.c.l.b16 %v189
  %v334 = vunpack.c.l.b16 %v190
  %v335 = vunpack.c.l.b16 %v191
  %v336 = vunpack.c.l.b16 %v192
  %v337 = vunpack.c.l.b16 %v193
  %v338 = vunpack.c.l.b16 %v194
  %v339 = vunpack.c.l.b16 %v195
  %v340 = vunpack.c.l.b16 %v196
  %v341 = vunpack.c.l.b16 %v197
  %v342 = vunpack.c.l.b16 %v198
  %v343 = vunpack.c.l.b16 %v199
  %v344 = vunpack.c.l.b16 %v200
  %v345 = vunpack.c.l.b16 %v201
  %v346 = vunpack.c.l.b16 %v202
  %v347 = vunpack.c.l.b16 %v203
  %v348 = vunpack.c.l.b16 %v204
  %v349 = vunpack.c.l.b16 %v205
  %v350 = vunpack.c.l.b16 %v206
  %v351 = vunpack.c.l.b16 %v207
  %v352 = vunpack.c.l.b16 %v208
  %v353 = vunpack.c.l.b16 %v209
  %v354 = vunpack.c.l.b16 %v210
  %v355 = vpack.c.b16 %v292, %v291
  %v356 = vpack.c.b16 %v294, %v293
  %v357 = vpack.c.b16 %v296, %v295
  %v358 = vpack.c.b16 %v298, %v297
  %v359 = vpack.c.b16 %v300, %v299
  %v360 = vpack.c.b16 %v302, %v301
  %v361 = vpack.c.b16 %v304, %v303
  %v362 = vpack.c.b16 %v306, %v305
  %v363 = vpack.c.b16 %v308, %v307
  %v364 = vpack.c.b16 %v310, %v309
  %v365 = vpack.c.b16 %v312, %v311
  %v366 = vpack.c.b16 %v314, %v313
  %v367 = vpack.c.b16 %v316, %v315
  %v368 = vpack.c.b16 %v318, %v317
  %v369 = vpack.c.b16 %v320, %v319
  %v370 = vpack.c.b16 %v322, %v321
  %v371 = vpack.c.b16 %v324, %v323
  %v372 = vpack.c.b16 %v326, %v325
  %v373 = vpack.c.b16 %v328, %v327
  %v374 = vpack.c.b16 %v330, %v329
  %v375 = vpack.c.b16 %v332, %v331
  %v376 = vpack.c.b16 %v334, %v333
  %v377 = vpack.c.b16 %v336, %v335
  %v378 = vpack.c.b16 %v338, %v337
  %v379 = vpack.c.b16 %v340, %v339
  %v380 = vpack.c.b16 %v342, %v341
  %v381 = vpack.c.b16 %v344, %v343
  %v382 = vpack.c.b16 %v346, %v345
  %v383 = vpack.c.b16 %v348, %v347
  %v384 = vpack.c.b16 %v350, %v349
  %v385 = vpack.c.b16 %v352, %v351
  %v386 = vpack.c.b16 %v354, %v353
  %v435 = vunpack.c.l.b16 %v211
  %v436 = vunpack.c.l.b16 %v212
  %v437 = vunpack.c.l.b16 %v213
  %v438 = vunpack.c.l.b16 %v214
  %v439 = vunpack.c.l.b16 %v215
  %v440 = vunpack.c.l.b16 %v216
  %v441 = vunpack.c.l.b16 %v217
  %v442 = vunpack.c.l.b16 %v218
  %v443 = vunpack.c.l.b16 %v219
  %v444 = vunpack.c.l.b16 %v220
  %v445 = vunpack.c.l.b16 %v221
  %v446 = vunpack.c.l.b16 %v222
  %v447 = vunpack.c.l.b16 %v223
  %v448 = vunpack.c.l.b16 %v224
  %v449 = vunpack.c.l.b16 %v225
  %v450 = vunpack.c.l.b16 %v226
  %v451 = vpack.c.b16 %v436, %v435
  %v452 = vpack.c.b16 %v438, %v437
  %v453 = vpack.c.b16 %v440, %v439
  %v454 = vpack.c.b16 %v442, %v441
  %v455 = vpack.c.b16 %v444, %v443
  %v456 = vpack.c.b16 %v446, %v445
  %v457 = vpack.c.b16 %v448, %v447
  %v458 = vpack.c.b16 %v450, %v449
  %467 = vmatprep.subr.bf16.mxu0 0
  %468 = vmatpush1.bf16.msra.mxu0 %v451
  %469 = vmatprep.subr.bf16.mxu0 0
  %470 = vmatpush1.bf16.msra.mxu0 %v452
  %471 = vmatprep.subr.bf16.mxu0 0
  %472 = vmatpush1.bf16.msra.mxu0 %v453
  %473 = vmatprep.subr.bf16.mxu0 0
  %474 = vmatpush1.bf16.msra.mxu0 %v454
  %475 = vmatprep.subr.bf16.mxu0 0
  %476 = vmatpush1.bf16.msra.mxu0 %v455
  %477 = vmatprep.subr.bf16.mxu0 0
  %478 = vmatpush1.bf16.msra.mxu0 %v456
  %479 = vmatprep.subr.bf16.mxu0 0
  %480 = vmatpush1.bf16.msra.mxu0 %v457
  %481 = vmatprep.subr.bf16.mxu0 0
  %482 = vmatpush1.bf16.msra.mxu0 %v458
  %483 = vmatprep.subr.bf16.mxu0 0
  %484 = vmatpush1.bf16.msra.mxu0 0
  %485 = vmatprep.subr.bf16.mxu0 0
  %486 = vmatpush1.bf16.msra.mxu0 0
  %487 = vmatprep.subr.bf16.mxu0 0
  %488 = vmatpush1.bf16.msra.mxu0 0
  %489 = vmatprep.subr.bf16.mxu0 0
  %490 = vmatpush1.bf16.msra.mxu0 0
  %491 = vmatprep.subr.bf16.mxu0 0
  %492 = vmatpush1.bf16.msra.mxu0 0
  %493 = vmatprep.subr.bf16.mxu0 0
  %494 = vmatpush1.bf16.msra.mxu0 0
  %495 = vmatprep.subr.bf16.mxu0 0
  %496 = vmatpush1.bf16.msra.mxu0 0
  %497 = vmatprep.subr.bf16.mxu0 0
  %498 = vmatpush1.bf16.msra.mxu0 0
  %499 = vmatprep.mubr.bf16.mxu0 0
  %500 = vmatmul.mubr.bf16.gmra.mrb[0].mxu0 %v355
  %v501 = vpop.f32.mrb[0].mxu0
  %v502 = vadd.f32 0.0, %v501
  %v503 = vpop.f32.mrb[0].mxu0
  %v504 = vpop.f32.mrb[0].mxu0
  %v505 = vadd.f32 0.0, %v504
  %v506 = vpop.f32.mrb[0].mxu0
  %507 = vmatprep.mubr.bf16.mxu0 0
  %508 = vmatmul.mubr.bf16.gmra.mrb[0].mxu0 %v356
  %v509 = vpop.f32.mrb[0].mxu0
  %v510 = vadd.f32 0.0, %v509
  %v511 = vpop.f32.mrb[0].mxu0
  %v512 = vpop.f32.mrb[0].mxu0
  %v513 = vadd.f32 0.0, %v512
  %v514 = vpop.f32.mrb[0].mxu0
  %515 = vmatprep.mubr.bf16.mxu0 0
  %516 = vmatmul.mubr.bf16.gmra.mrb[0].mxu0 %v357
  %v517 = vpop.f32.mrb[0].mxu0
  %v518 = vadd.f32 0.0, %v517
  %v519 = vpop.f32.mrb[0].mxu0
  %v520 = vpop.f32.mrb[0].mxu0
  %v521 = vadd.f32 0.0, %v520
  %v522 = vpop.f32.mrb[0].mxu0
  %523 = vmatprep.mubr.bf16.mxu0 0
  %524 = vmatmul.mubr.bf16.gmra.mrb[0].mxu0 %v358
  %v525 = vpop.f32.mrb[0].mxu0
  %v526 = vadd.f32 0.0, %v525
  %v527 = vpop.f32.mrb[0].mxu0
  %v528 = vpop.f32.mrb[0].mxu0
  %v529 = vadd.f32 0.0, %v528
  %v530 = vpop.f32.mrb[0].mxu0
  %531 = vmatprep.mubr.bf16.mxu0 0
  %532 = vmatmul.mubr.bf16.gmra.mrb[0].mxu0 %v359
  %v533 = vpop.f32.mrb[0].mxu0
  %v534 = vadd.f32 0.0, %v533
  %v535 = vpop.f32.mrb[0].mxu0
  %v536 = vpop.f32.mrb[0].mxu0
  %v537 = vadd.f32 0.0, %v536
  %v538 = vpop.f32.mrb[0].mxu0
  %539 = vmatprep.mubr.bf16.mxu0 0
  %540 = vmatmul.mubr.bf16.gmra.mrb[0].mxu0 %v360
  %v541 = vpop.f32.mrb[0].mxu0
  %v542 = vadd.f32 0.0, %v541
  %v543 = vpop.f32.mrb[0].mxu0
  %v544 = vpop.f32.mrb[0].mxu0
  %v545 = vadd.f32 0.0, %v544
  %v546 = vpop.f32.mrb[0].mxu0
  %547 = vmatprep.mubr.bf16.mxu0 0
  %548 = vmatmul.mubr.bf16.gmra.mrb[0].mxu0 %v361
  %v549 = vpop.f32.mrb[0].mxu0
  %v550 = vadd.f32 0.0, %v549
  %v551 = vpop.f32.mrb[0].mxu0
  %v552 = vpop.f32.mrb[0].mxu0
  %v553 = vadd.f32 0.0, %v552
  %v554 = vpop.f32.mrb[0].mxu0
  %555 = vmatprep.mubr.bf16.mxu0 0
  %556 = vmatmul.mubr.bf16.gmra.mrb[0].mxu0 %v362
  %v557 = vpop.f32.mrb[0].mxu0
  %v558 = vadd.f32 0.0, %v557
  %v559 = vpop.f32.mrb[0].mxu0
  %v560 = vpop.f32.mrb[0].mxu0
  %v561 = vadd.f32 0.0, %v560
  %v562 = vpop.f32.mrb[0].mxu0
  %563 = vmatprep.mubr.bf16.mxu0 0
  %564 = vmatmul.mubr.bf16.gmra.mrb[0].mxu0 %v363
  %v565 = vpop.f32.mrb[0].mxu0
  %v566 = vadd.f32 0.0, %v565
  %v567 = vpop.f32.mrb[0].mxu0
  %v568 = vpop.f32.mrb[0].mxu0
  %v569 = vadd.f32 0.0, %v568
  %v570 = vpop.f32.mrb[0].mxu0
  %571 = vmatprep.mubr.bf16.mxu0 0
  %572 = vmatmul.mubr.bf16.gmra.mrb[0].mxu0 %v364
  %v573 = vpop.f32.mrb[0].mxu0
  %v574 = vadd.f32 0.0, %v573
  %v575 = vpop.f32.mrb[0].mxu0
  %v576 = vpop.f32.mrb[0].mxu0
  %v577 = vadd.f32 0.0, %v576
  %v578 = vpop.f32.mrb[0].mxu0
  %579 = vmatprep.mubr.bf16.mxu0 0
  %580 = vmatmul.mubr.bf16.gmra.mrb[0].mxu0 %v365
  %v581 = vpop.f32.mrb[0].mxu0
  %v582 = vadd.f32 0.0, %v581
  %v583 = vpop.f32.mrb[0].mxu0
  %v584 = vpop.f32.mrb[0].mxu0
  %v585 = vadd.f32 0.0, %v584
  %v586 = vpop.f32.mrb[0].mxu0
  %587 = vmatprep.mubr.bf16.mxu0 0
  %588 = vmatmul.mubr.bf16.gmra.mrb[0].mxu0 %v366
  %v589 = vpop.f32.mrb[0].mxu0
  %v590 = vadd.f32 0.0, %v589
  %v591 = vpop.f32.mrb[0].mxu0
  %v592 = vpop.f32.mrb[0].mxu0
  %v593 = vadd.f32 0.0, %v592
  %v594 = vpop.f32.mrb[0].mxu0
  %595 = vmatprep.mubr.bf16.mxu0 0
  %596 = vmatmul.mubr.bf16.gmra.mrb[0].mxu0 %v367
  %v597 = vpop.f32.mrb[0].mxu0
  %v598 = vadd.f32 0.0, %v597
  %v599 = vpop.f32.mrb[0].mxu0
  %v600 = vpop.f32.mrb[0].mxu0
  %v601 = vadd.f32 0.0, %v600
  %v602 = vpop.f32.mrb[0].mxu0
  %603 = vmatprep.mubr.bf16.mxu0 0
  %604 = vmatmul.mubr.bf16.gmra.mrb[0].mxu0 %v368
  %v605 = vpop.f32.mrb[0].mxu0
  %v606 = vadd.f32 0.0, %v605
  %v607 = vpop.f32.mrb[0].mxu0
  %v608 = vpop.f32.mrb[0].mxu0
  %v609 = vadd.f32 0.0, %v608
  %v610 = vpop.f32.mrb[0].mxu0
  %611 = vmatprep.mubr.bf16.mxu0 0
  %612 = vmatmul.mubr.bf16.gmra.mrb[0].mxu0 %v369
  %v613 = vpop.f32.mrb[0].mxu0
  %v614 = vadd.f32 0.0, %v613
  %v615 = vpop.f32.mrb[0].mxu0
  %v616 = vpop.f32.mrb[0].mxu0
  %v617 = vadd.f32 0.0, %v616
  %v618 = vpop.f32.mrb[0].mxu0
  %619 = vmatprep.mubr.bf16.mxu0 0
  %620 = vmatmul.mubr.bf16.gmra.mrb[0].mxu0 %v370
  %v621 = vpop.f32.mrb[0].mxu0
  %v622 = vadd.f32 0.0, %v621
  %v623 = vpop.f32.mrb[0].mxu0
  %v624 = vpop.f32.mrb[0].mxu0
  %v625 = vadd.f32 0.0, %v624
  %v626 = vpop.f32.mrb[0].mxu0
  %627 = vmatprep.mubr.bf16.mxu0 0
  %628 = vmatmul.mubr.bf16.gmra.mrb[0].mxu0 %v371
  %v629 = vpop.f32.mrb[0].mxu0
  %v630 = vadd.f32 0.0, %v629
  %v631 = vpop.f32.mrb[0].mxu0
  %v632 = vpop.f32.mrb[0].mxu0
  %v633 = vadd.f32 0.0, %v632
  %v634 = vpop.f32.mrb[0].mxu0
  %635 = vmatprep.mubr.bf16.mxu0 0
  %636 = vmatmul.mubr.bf16.gmra.mrb[0].mxu0 %v372
  %v637 = vpop.f32.mrb[0].mxu0
  %v638 = vadd.f32 0.0, %v637
  %v639 = vpop.f32.mrb[0].mxu0
  %v640 = vpop.f32.mrb[0].mxu0
  %v641 = vadd.f32 0.0, %v640
  %v642 = vpop.f32.mrb[0].mxu0
  %643 = vmatprep.mubr.bf16.mxu0 0
  %644 = vmatmul.mubr.bf16.gmra.mrb[0].mxu0 %v373
  %v645 = vpop.f32.mrb[0].mxu0
  %v646 = vadd.f32 0.0, %v645
  %v647 = vpop.f32.mrb[0].mxu0
  %v648 = vpop.f32.mrb[0].mxu0
  %v649 = vadd.f32 0.0, %v648
  %v650 = vpop.f32.mrb[0].mxu0
  %651 = vmatprep.mubr.bf16.mxu0 0
  %652 = vmatmul.mubr.bf16.gmra.mrb[0].mxu0 %v374
  %v653 = vpop.f32.mrb[0].mxu0
  %v654 = vadd.f32 0.0, %v653
  %v655 = vpop.f32.mrb[0].mxu0
  %v656 = vpop.f32.mrb[0].mxu0
  %v657 = vadd.f32 0.0, %v656
  %v658 = vpop.f32.mrb[0].mxu0
  %659 = vmatprep.mubr.bf16.mxu0 0
  %660 = vmatmul.mubr.bf16.gmra.mrb[0].mxu0 %v375
  %v661 = vpop.f32.mrb[0].mxu0
  %v662 = vadd.f32 0.0, %v661
  %v663 = vpop.f32.mrb[0].mxu0
  %v664 = vpop.f32.mrb[0].mxu0
  %v665 = vadd.f32 0.0, %v664
  %v666 = vpop.f32.mrb[0].mxu0
  %667 = vmatprep.mubr.bf16.mxu0 0
  %668 = vmatmul.mubr.bf16.gmra.mrb[0].mxu0 %v376
  %v669 = vpop.f32.mrb[0].mxu0
  %v670 = vadd.f32 0.0, %v669
  %v671 = vpop.f32.mrb[0].mxu0
  %v672 = vpop.f32.mrb[0].mxu0
  %v673 = vadd.f32 0.0, %v672
  %v674 = vpop.f32.mrb[0].mxu0
  %675 = vmatprep.mubr.bf16.mxu0 0
  %676 = vmatmul.mubr.bf16.gmra.mrb[0].mxu0 %v377
  %v677 = vpop.f32.mrb[0].mxu0
  %v678 = vadd.f32 0.0, %v677
  %v679 = vpop.f32.mrb[0].mxu0
  %v680 = vpop.f32.mrb[0].mxu0
  %v681 = vadd.f32 0.0, %v680
  %v682 = vpop.f32.mrb[0].mxu0
  %683 = vmatprep.mubr.bf16.mxu0 0
  %684 = vmatmul.mubr.bf16.gmra.mrb[0].mxu0 %v378
  %v685 = vpop.f32.mrb[0].mxu0
  %v686 = vadd.f32 0.0, %v685
  %v687 = vpop.f32.mrb[0].mxu0
  %v688 = vpop.f32.mrb[0].mxu0
  %v689 = vadd.f32 0.0, %v688
  %v690 = vpop.f32.mrb[0].mxu0
  %691 = vmatprep.mubr.bf16.mxu0 0
  %692 = vmatmul.mubr.bf16.gmra.mrb[0].mxu0 %v379
  %v693 = vpop.f32.mrb[0].mxu0
  %v694 = vadd.f32 0.0, %v693
  %v695 = vpop.f32.mrb[0].mxu0
  %v696 = vpop.f32.mrb[0].mxu0
  %v697 = vadd.f32 0.0, %v696
  %v698 = vpop.f32.mrb[0].mxu0
  %699 = vmatprep.mubr.bf16.mxu0 0
  %700 = vmatmul.mubr.bf16.gmra.mrb[0].mxu0 %v380
  %v701 = vpop.f32.mrb[0].mxu0
  %v702 = vadd.f32 0.0, %v701
  %v703 = vpop.f32.mrb[0].mxu0
  %v704 = vpop.f32.mrb[0].mxu0
  %v705 = vadd.f32 0.0, %v704
  %v706 = vpop.f32.mrb[0].mxu0
  %707 = vmatprep.mubr.bf16.mxu0 0
  %708 = vmatmul.mubr.bf16.gmra.mrb[0].mxu0 %v381
  %v709 = vpop.f32.mrb[0].mxu0
  %v710 = vadd.f32 0.0, %v709
  %v711 = vpop.f32.mrb[0].mxu0
  %v712 = vpop.f32.mrb[0].mxu0
  %v713 = vadd.f32 0.0, %v712
  %v714 = vpop.f32.mrb[0].mxu0
  %715 = vmatprep.mubr.bf16.mxu0 0
  %716 = vmatmul.mubr.bf16.gmra.mrb[0].mxu0 %v382
  %v717 = vpop.f32.mrb[0].mxu0
  %v718 = vadd.f32 0.0, %v717
  %v719 = vpop.f32.mrb[0].mxu0
  %v720 = vpop.f32.mrb[0].mxu0
  %v721 = vadd.f32 0.0, %v720
  %v722 = vpop.f32.mrb[0].mxu0
  %723 = vmatprep.mubr.bf16.mxu0 0
  %724 = vmatmul.mubr.bf16.gmra.mrb[0].mxu0 %v383
  %v725 = vpop.f32.mrb[0].mxu0
  %v726 = vadd.f32 0.0, %v725
  %v727 = vpop.f32.mrb[0].mxu0
  %v728 = vpop.f32.mrb[0].mxu0
  %v729 = vadd.f32 0.0, %v728
  %v730 = vpop.f32.mrb[0].mxu0
  %731 = vmatprep.mubr.bf16.mxu0 0
  %732 = vmatmul.mubr.bf16.gmra.mrb[0].mxu0 %v384
  %v733 = vpop.f32.mrb[0].mxu0
  %v734 = vadd.f32 0.0, %v733
  %v735 = vpop.f32.mrb[0].mxu0
  %v736 = vpop.f32.mrb[0].mxu0
  %v737 = vadd.f32 0.0, %v736
  %v738 = vpop.f32.mrb[0].mxu0
  %739 = vmatprep.mubr.bf16.mxu0 0
  %740 = vmatmul.mubr.bf16.gmra.mrb[0].mxu0 %v385
  %v741 = vpop.f32.mrb[0].mxu0
  %v742 = vadd.f32 0.0, %v741
  %v743 = vpop.f32.mrb[0].mxu0
  %v744 = vpop.f32.mrb[0].mxu0
  %v745 = vadd.f32 0.0, %v744
  %v746 = vpop.f32.mrb[0].mxu0
  %747 = vmatprep.mubr.bf16.mxu0 0
  %748 = vmatmul.mubr.bf16.gmra.mrb[0].mxu0 %v386
  %v749 = vpop.f32.mrb[0].mxu0
  %v750 = vadd.f32 0.0, %v749
  %v751 = vpop.f32.mrb[0].mxu0
  %v752 = vpop.f32.mrb[0].mxu0
  %v753 = vadd.f32 0.0, %v752
  %v754 = vpop.f32.mrb[0].mxu0
  %755 = vdwg.mxu0
  %v756 = vadd.f32 %v83, %v502
  %v757 = vadd.f32 %v84, %v505
  %v758 = vadd.f32 %v85, %v510
  %v759 = vadd.f32 %v86, %v513
  %v760 = vadd.f32 %v87, %v518
  %v761 = vadd.f32 %v88, %v521
  %v762 = vadd.f32 %v89, %v526
  %v763 = vadd.f32 %v90, %v529
  %v764 = vadd.f32 %v91, %v534
  %v765 = vadd.f32 %v92, %v537
  %v766 = vadd.f32 %v93, %v542
  %v767 = vadd.f32 %v94, %v545
  %v768 = vadd.f32 %v95, %v550
  %v769 = vadd.f32 %v96, %v553
  %v770 = vadd.f32 %v97, %v558
  %v771 = vadd.f32 %v98, %v561
  %v772 = vadd.f32 %v99, %v566
  %v773 = vadd.f32 %v100, %v569
  %v774 = vadd.f32 %v101, %v574
  %v775 = vadd.f32 %v102, %v577
  %v776 = vadd.f32 %v103, %v582
  %v777 = vadd.f32 %v104, %v585
  %v778 = vadd.f32 %v105, %v590
  %v779 = vadd.f32 %v106, %v593
  %v780 = vadd.f32 %v107, %v598
  %v781 = vadd.f32 %v108, %v601
  %v782 = vadd.f32 %v109, %v606
  %v783 = vadd.f32 %v110, %v609
  %v784 = vadd.f32 %v111, %v614
  %v785 = vadd.f32 %v112, %v617
  %v786 = vadd.f32 %v113, %v622
  %v787 = vadd.f32 %v114, %v625
  %v788 = vadd.f32 %v115, %v630
  %v789 = vadd.f32 %v116, %v633
  %v790 = vadd.f32 %v117, %v638
  %v791 = vadd.f32 %v118, %v641
  %v792 = vadd.f32 %v119, %v646
  %v793 = vadd.f32 %v120, %v649
  %v794 = vadd.f32 %v121, %v654
  %v795 = vadd.f32 %v122, %v657
  %v796 = vadd.f32 %v123, %v662
  %v797 = vadd.f32 %v124, %v665
  %v798 = vadd.f32 %v125, %v670
  %v799 = vadd.f32 %v126, %v673
  %v800 = vadd.f32 %v127, %v678
  %v801 = vadd.f32 %v128, %v681
  %v802 = vadd.f32 %v129, %v686
  %v803 = vadd.f32 %v130, %v689
  %v804 = vadd.f32 %v131, %v694
  %v805 = vadd.f32 %v132, %v697
  %v806 = vadd.f32 %v133, %v702
  %v807 = vadd.f32 %v134, %v705
  %v808 = vadd.f32 %v135, %v710
  %v809 = vadd.f32 %v136, %v713
  %v810 = vadd.f32 %v137, %v718
  %v811 = vadd.f32 %v138, %v721
  %v812 = vadd.f32 %v139, %v726
  %v813 = vadd.f32 %v140, %v729
  %v814 = vadd.f32 %v141, %v734
  %v815 = vadd.f32 %v142, %v737
  %v816 = vadd.f32 %v143, %v742
  %v817 = vadd.f32 %v144, %v745
  %v818 = vadd.f32 %v145, %v750
  %v819 = vadd.f32 %v146, %v753
  %820 = vst [vmem:[#allocation2] sm:$0xff] %v756
  %821 = vst [vmem:[#allocation2 + $0x8] sm:$0xff] %v757
  %822 = vst [vmem:[#allocation2 + $0x10] sm:$0xff] %v758
  %823 = vst [vmem:[#allocation2 + $0x18] sm:$0xff] %v759
  %824 = vst [vmem:[#allocation2 + $0x20] sm:$0xff] %v760
  %825 = vst [vmem:[#allocation2 + $0x28] sm:$0xff] %v761
  %826 = vst [vmem:[#allocation2 + $0x30] sm:$0xff] %v762
  %827 = vst [vmem:[#allocation2 + $0x38] sm:$0xff] %v763
  %828 = vst [vmem:[#allocation2 + $0x40] sm:$0xff] %v764
  %829 = vst [vmem:[#allocation2 + $0x48] sm:$0xff] %v765
  %830 = vst [vmem:[#allocation2 + $0x50] sm:$0xff] %v766
  %831 = vst [vmem:[#allocation2 + $0x58] sm:$0xff] %v767
  %832 = vst [vmem:[#allocation2 + $0x60] sm:$0xff] %v768
  %833 = vst [vmem:[#allocation2 + $0x68] sm:$0xff] %v769
  %834 = vst [vmem:[#allocation2 + $0x70] sm:$0xff] %v770
  %835 = vst [vmem:[#allocation2 + $0x78] sm:$0xff] %v771
  %836 = vst [vmem:[#allocation2 + $0x80] sm:$0xff] %v772
  %837 = vst [vmem:[#allocation2 + $0x88] sm:$0xff] %v773
  %838 = vst [vmem:[#allocation2 + $0x90] sm:$0xff] %v774
  %839 = vst [vmem:[#allocation2 + $0x98] sm:$0xff] %v775
  %840 = vst [vmem:[#allocation2 + $0xa0] sm:$0xff] %v776
  %841 = vst [vmem:[#allocation2 + $0xa8] sm:$0xff] %v777
  %842 = vst [vmem:[#allocation2 + $0xb0] sm:$0xff] %v778
  %843 = vst [vmem:[#allocation2 + $0xb8] sm:$0xff] %v779
  %844 = vst [vmem:[#allocation2 + $0xc0] sm:$0xff] %v780
  %845 = vst [vmem:[#allocation2 + $0xc8] sm:$0xff] %v781
  %846 = vst [vmem:[#allocation2 + $0xd0] sm:$0xff] %v782
  %847 = vst [vmem:[#allocation2 + $0xd8] sm:$0xff] %v783
  %848 = vst [vmem:[#allocation2 + $0xe0] sm:$0xff] %v784
  %849 = vst [vmem:[#allocation2 + $0xe8] sm:$0xff] %v785
  %850 = vst [vmem:[#allocation2 + $0xf0] sm:$0xff] %v786
  %851 = vst [vmem:[#allocation2 + $0xf8] sm:$0xff] %v787
  %852 = vst [vmem:[#allocation2 + $0x100] sm:$0xff] %v788
  %853 = vst [vmem:[#allocation2 + $0x108] sm:$0xff] %v789
  %854 = vst [vmem:[#allocation2 + $0x110] sm:$0xff] %v790
  %855 = vst [vmem:[#allocation2 + $0x118] sm:$0xff] %v791
  %856 = vst [vmem:[#allocation2 + $0x120] sm:$0xff] %v792
  %857 = vst [vmem:[#allocation2 + $0x128] sm:$0xff] %v793
  %858 = vst [vmem:[#allocation2 + $0x130] sm:$0xff] %v794
  %859 = vst [vmem:[#allocation2 + $0x138] sm:$0xff] %v795
  %860 = vst [vmem:[#allocation2 + $0x140] sm:$0xff] %v796
  %861 = vst [vmem:[#allocation2 + $0x148] sm:$0xff] %v797
  %862 = vst [vmem:[#allocation2 + $0x150] sm:$0xff] %v798
  %863 = vst [vmem:[#allocation2 + $0x158] sm:$0xff] %v799
  %864 = vst [vmem:[#allocation2 + $0x160] sm:$0xff] %v800
  %865 = vst [vmem:[#allocation2 + $0x168] sm:$0xff] %v801
  %866 = vst [vmem:[#allocation2 + $0x170] sm:$0xff] %v802
  %867 = vst [vmem:[#allocation2 + $0x178] sm:$0xff] %v803
  %868 = vst [vmem:[#allocation2 + $0x180] sm:$0xff] %v804
  %869 = vst [vmem:[#allocation2 + $0x188] sm:$0xff] %v805
  %870 = vst [vmem:[#allocation2 + $0x190] sm:$0xff] %v806
  %871 = vst [vmem:[#allocation2 + $0x198] sm:$0xff] %v807
  %872 = vst [vmem:[#allocation2 + $0x1a0] sm:$0xff] %v808
  %873 = vst [vmem:[#allocation2 + $0x1a8] sm:$0xff] %v809
  %874 = vst [vmem:[#allocation2 + $0x1b0] sm:$0xff] %v810
  %875 = vst [vmem:[#allocation2 + $0x1b8] sm:$0xff] %v811
  %876 = vst [vmem:[#allocation2 + $0x1c0] sm:$0xff] %v812
  %877 = vst [vmem:[#allocation2 + $0x1c8] sm:$0xff] %v813
  %878 = vst [vmem:[#allocation2 + $0x1d0] sm:$0xff] %v814
  %879 = vst [vmem:[#allocation2 + $0x1d8] sm:$0xff] %v815
  %880 = vst [vmem:[#allocation2 + $0x1e0] sm:$0xff] %v816
  %881 = vst [vmem:[#allocation2 + $0x1e8] sm:$0xff] %v817
  %882 = vst [vmem:[#allocation2 + $0x1f0] sm:$0xff] %v818
  %883 = vst [vmem:[#allocation2 + $0x1f8] sm:$0xff] %v819
  // Predicated region
  $region18: #{_lambda_.8} parent=0 // pred_check
    %p884 = pneg %p15
  $region19: #{_lambda_.8} parent=0 // pred_check_branch
    %886 = sbr.rel (%p884) target = $region21
  $region20: #{_lambda_.8} parent=0 // pred_region
    %v887 = vld [vmem:[#allocation2] sm:$0xff]
    %v888 = vld [vmem:[#allocation2 + $0x8] sm:$0xff]
    %v889 = vld [vmem:[#allocation2 + $0x10] sm:$0xff]
    %v890 = vld [vmem:[#allocation2 + $0x18] sm:$0xff]
    %v891 = vld [vmem:[#allocation2 + $0x20] sm:$0xff]
    %v892 = vld [vmem:[#allocation2 + $0x28] sm:$0xff]
    %v893 = vld [vmem:[#allocation2 + $0x30] sm:$0xff]
    %v894 = vld [vmem:[#allocation2 + $0x38] sm:$0xff]
    %v895 = vld [vmem:[#allocation2 + $0x40] sm:$0xff]
    %v896 = vld [vmem:[#allocation2 + $0x48] sm:$0xff]
    %v897 = vld [vmem:[#allocation2 + $0x50] sm:$0xff]
    %v898 = vld [vmem:[#allocation2 + $0x58] sm:$0xff]
    %v899 = vld [vmem:[#allocation2 + $0x60] sm:$0xff]
    %v900 = vld [vmem:[#allocation2 + $0x68] sm:$0xff]
    %v901 = vld [vmem:[#allocation2 + $0x70] sm:$0xff]
    %v902 = vld [vmem:[#allocation2 + $0x78] sm:$0xff]
    %v903 = vld [vmem:[#allocation2 + $0x80] sm:$0xff]
    %v904 = vld [vmem:[#allocation2 + $0x88] sm:$0xff]
    %v905 = vld [vmem:[#allocation2 + $0x90] sm:$0xff]
    %v906 = vld [vmem:[#allocation2 + $0x98] sm:$0xff]
    %v907 = vld [vmem:[#allocation2 + $0xa0] sm:$0xff]
    %v908 = vld [vmem:[#allocation2 + $0xa8] sm:$0xff]
    %v909 = vld [vmem:[#allocation2 + $0xb0] sm:$0xff]
    %v910 = vld [vmem:[#allocation2 + $0xb8] sm:$0xff]
    %v911 = vld [vmem:[#allocation2 + $0xc0] sm:$0xff]
    %v912 = vld [vmem:[#allocation2 + $0xc8] sm:$0xff]
    %v913 = vld [vmem:[#allocation2 + $0xd0] sm:$0xff]
    %v914 = vld [vmem:[#allocation2 + $0xd8] sm:$0xff]
    %v915 = vld [vmem:[#allocation2 + $0xe0] sm:$0xff]
    %v916 = vld [vmem:[#allocation2 + $0xe8] sm:$0xff]
    %v917 = vld [vmem:[#allocation2 + $0xf0] sm:$0xff]
    %v918 = vld [vmem:[#allocation2 + $0xf8] sm:$0xff]
    %v919 = vld [vmem:[#allocation2 + $0x100] sm:$0xff]
    %v920 = vld [vmem:[#allocation2 + $0x108] sm:$0xff]
    %v921 = vld [vmem:[#allocation2 + $0x110] sm:$0xff]
    %v922 = vld [vmem:[#allocation2 + $0x118] sm:$0xff]
    %v923 = vld [vmem:[#allocation2 + $0x120] sm:$0xff]
    %v924 = vld [vmem:[#allocation2 + $0x128] sm:$0xff]
    %v925 = vld [vmem:[#allocation2 + $0x130] sm:$0xff]
    %v926 = vld [vmem:[#allocation2 + $0x138] sm:$0xff]
    %v927 = vld [vmem:[#allocation2 + $0x140] sm:$0xff]
    %v928 = vld [vmem:[#allocation2 + $0x148] sm:$0xff]
    %v929 = vld [vmem:[#allocation2 + $0x150] sm:$0xff]
    %v930 = vld [vmem:[#allocation2 + $0x158] sm:$0xff]
    %v931 = vld [vmem:[#allocation2 + $0x160] sm:$0xff]
    %v932 = vld [vmem:[#allocation2 + $0x168] sm:$0xff]
    %v933 = vld [vmem:[#allocation2 + $0x170] sm:$0xff]
    %v934 = vld [vmem:[#allocation2 + $0x178] sm:$0xff]
    %v935 = vld [vmem:[#allocation2 + $0x180] sm:$0xff]
    %v936 = vld [vmem:[#allocation2 + $0x188] sm:$0xff]
    %v937 = vld [vmem:[#allocation2 + $0x190] sm:$0xff]
    %v938 = vld [vmem:[#allocation2 + $0x198] sm:$0xff]
    %v939 = vld [vmem:[#allocation2 + $0x1a0] sm:$0xff]
    %v940 = vld [vmem:[#allocation2 + $0x1a8] sm:$0xff]
    %v941 = vld [vmem:[#allocation2 + $0x1b0] sm:$0xff]
    %v942 = vld [vmem:[#allocation2 + $0x1b8] sm:$0xff]
    %v943 = vld [vmem:[#allocation2 + $0x1c0] sm:$0xff]
    %v944 = vld [vmem:[#allocation2 + $0x1c8] sm:$0xff]
    %v945 = vld [vmem:[#allocation2 + $0x1d0] sm:$0xff]
    %v946 = vld [vmem:[#allocation2 + $0x1d8] sm:$0xff]
    %v947 = vld [vmem:[#allocation2 + $0x1e0] sm:$0xff]
    %v948 = vld [vmem:[#allocation2 + $0x1e8] sm:$0xff]
    %v949 = vld [vmem:[#allocation2 + $0x1f0] sm:$0xff]
    %v950 = vld [vmem:[#allocation2 + $0x1f8] sm:$0xff]
    %v951 = vld [vmem:[%s2] sm:$0x1]
    %v953 = vlaneseq
    %v954 = vshrl.u32 %v953, 7
    %v955 = vsub.s32 0, %v954
    %v956 = vrot.slane %v951, %v955
    %v958 = vadd.f32 %v887, %v956
    %v959 = vadd.f32 %v888, %v956
    %v960 = vadd.f32 %v889, %v956
    %v961 = vadd.f32 %v890, %v956
    %v962 = vadd.f32 %v891, %v956
    %v963 = vadd.f32 %v892, %v956
    %v964 = vadd.f32 %v893, %v956
    %v965 = vadd.f32 %v894, %v956
    %v966 = vadd.f32 %v895, %v956
    %v967 = vadd.f32 %v896, %v956
    %v968 = vadd.f32 %v897, %v956
    %v969 = vadd.f32 %v898, %v956
    %v970 = vadd.f32 %v899, %v956
    %v971 = vadd.f32 %v900, %v956
    %v972 = vadd.f32 %v901, %v956
    %v973 = vadd.f32 %v902, %v956
    %v974 = vadd.f32 %v903, %v956
    %v975 = vadd.f32 %v904, %v956
    %v976 = vadd.f32 %v905, %v956
    %v977 = vadd.f32 %v906, %v956
    %v978 = vadd.f32 %v907, %v956
    %v979 = vadd.f32 %v908, %v956
    %v980 = vadd.f32 %v909, %v956
    %v981 = vadd.f32 %v910, %v956
    %v982 = vadd.f32 %v911, %v956
    %v983 = vadd.f32 %v912, %v956
    %v984 = vadd.f32 %v913, %v956
    %v985 = vadd.f32 %v914, %v956
    %v986 = vadd.f32 %v915, %v956
    %v987 = vadd.f32 %v916, %v956
    %v988 = vadd.f32 %v917, %v956
    %v989 = vadd.f32 %v918, %v956
    %v990 = vadd.f32 %v919, %v956
    %v991 = vadd.f32 %v920, %v956
    %v992 = vadd.f32 %v921, %v956
    %v993 = vadd.f32 %v922, %v956
    %v994 = vadd.f32 %v923, %v956
    %v995 = vadd.f32 %v924, %v956
    %v996 = vadd.f32 %v925, %v956
    %v997 = vadd.f32 %v926, %v956
    %v998 = vadd.f32 %v927, %v956
    %v999 = vadd.f32 %v928, %v956
    %v1000 = vadd.f32 %v929, %v956
    %v1001 = vadd.f32 %v930, %v956
    %v1002 = vadd.f32 %v931, %v956
    %v1003 = vadd.f32 %v932, %v956
    %v1004 = vadd.f32 %v933, %v956
    %v1005 = vadd.f32 %v934, %v956
    %v1006 = vadd.f32 %v935, %v956
    %v1007 = vadd.f32 %v936, %v956
    %v1008 = vadd.f32 %v937, %v956
    %v1009 = vadd.f32 %v938, %v956
    %v1010 = vadd.f32 %v939, %v956
    %v1011 = vadd.f32 %v940, %v956
    %v1012 = vadd.f32 %v941, %v956
    %v1013 = vadd.f32 %v942, %v956
    %v1014 = vadd.f32 %v943, %v956
    %v1015 = vadd.f32 %v944, %v956
    %v1016 = vadd.f32 %v945, %v956
    %v1017 = vadd.f32 %v946, %v956
    %v1018 = vadd.f32 %v947, %v956
    %v1019 = vadd.f32 %v948, %v956
    %v1020 = vadd.f32 %v949, %v956
    %v1021 = vadd.f32 %v950, %v956
    %vm1022 = vcmp.gt.f32.partialorder %v958, 0.0
    %vm1023 = vcmp.gt.f32.partialorder %v959, 0.0
    %vm1024 = vcmp.gt.f32.partialorder %v960, 0.0
    %vm1025 = vcmp.gt.f32.partialorder %v961, 0.0
    %vm1026 = vcmp.gt.f32.partialorder %v962, 0.0
    %vm1027 = vcmp.gt.f32.partialorder %v963, 0.0
    %vm1028 = vcmp.gt.f32.partialorder %v964, 0.0
    %vm1029 = vcmp.gt.f32.partialorder %v965, 0.0
    %vm1030 = vcmp.gt.f32.partialorder %v966, 0.0
    %vm1031 = vcmp.gt.f32.partialorder %v967, 0.0
    %vm1032 = vcmp.gt.f32.partialorder %v968, 0.0
    %vm1033 = vcmp.gt.f32.partialorder %v969, 0.0
    %vm1034 = vcmp.gt.f32.partialorder %v970, 0.0
    %vm1035 = vcmp.gt.f32.partialorder %v971, 0.0
    %vm1036 = vcmp.gt.f32.partialorder %v972, 0.0
    %vm1037 = vcmp.gt.f32.partialorder %v973, 0.0
    %vm1038 = vcmp.gt.f32.partialorder %v974, 0.0
    %vm1039 = vcmp.gt.f32.partialorder %v975, 0.0
    %vm1040 = vcmp.gt.f32.partialorder %v976, 0.0
    %vm1041 = vcmp.gt.f32.partialorder %v977, 0.0
    %vm1042 = vcmp.gt.f32.partialorder %v978, 0.0
    %vm1043 = vcmp.gt.f32.partialorder %v979, 0.0
    %vm1044 = vcmp.gt.f32.partialorder %v980, 0.0
    %vm1045 = vcmp.gt.f32.partialorder %v981, 0.0
    %vm1046 = vcmp.gt.f32.partialorder %v982, 0.0
    %vm1047 = vcmp.gt.f32.partialorder %v983, 0.0
    %vm1048 = vcmp.gt.f32.partialorder %v984, 0.0
    %vm1049 = vcmp.gt.f32.partialorder %v985, 0.0
    %vm1050 = vcmp.gt.f32.partialorder %v986, 0.0
    %vm1051 = vcmp.gt.f32.partialorder %v987, 0.0
    %vm1052 = vcmp.gt.f32.partialorder %v988, 0.0
    %vm1053 = vcmp.gt.f32.partialorder %v989, 0.0
    %vm1054 = vcmp.gt.f32.partialorder %v990, 0.0
    %vm1055 = vcmp.gt.f32.partialorder %v991, 0.0
    %vm1056 = vcmp.gt.f32.partialorder %v992, 0.0
    %vm1057 = vcmp.gt.f32.partialorder %v993, 0.0
    %vm1058 = vcmp.gt.f32.partialorder %v994, 0.0
    %vm1059 = vcmp.gt.f32.partialorder %v995, 0.0
    %vm1060 = vcmp.gt.f32.partialorder %v996, 0.0
    %vm1061 = vcmp.gt.f32.partialorder %v997, 0.0
    %vm1062 = vcmp.gt.f32.partialorder %v998, 0.0
    %vm1063 = vcmp.gt.f32.partialorder %v999, 0.0
    %vm1064 = vcmp.gt.f32.partialorder %v1000, 0.0
    %vm1065 = vcmp.gt.f32.partialorder %v1001, 0.0
    %vm1066 = vcmp.gt.f32.partialorder %v1002, 0.0
    %vm1067 = vcmp.gt.f32.partialorder %v1003, 0.0
    %vm1068 = vcmp.gt.f32.partialorder %v1004, 0.0
    %vm1069 = vcmp.gt.f32.partialorder %v1005, 0.0
    %vm1070 = vcmp.gt.f32.partialorder %v1006, 0.0
    %vm1071 = vcmp.gt.f32.partialorder %v1007, 0.0
    %vm1072 = vcmp.gt.f32.partialorder %v1008, 0.0
    %vm1073 = vcmp.gt.f32.partialorder %v1009, 0.0
    %vm1074 = vcmp.gt.f32.partialorder %v1010, 0.0
    %vm1075 = vcmp.gt.f32.partialorder %v1011, 0.0
    %vm1076 = vcmp.gt.f32.partialorder %v1012, 0.0
    %vm1077 = vcmp.gt.f32.partialorder %v1013, 0.0
    %vm1078 = vcmp.gt.f32.partialorder %v1014, 0.0
    %vm1079 = vcmp.gt.f32.partialorder %v1015, 0.0
    %vm1080 = vcmp.gt.f32.partialorder %v1016, 0.0
    %vm1081 = vcmp.gt.f32.partialorder %v1017, 0.0
    %vm1082 = vcmp.gt.f32.partialorder %v1018, 0.0
    %vm1083 = vcmp.gt.f32.partialorder %v1019, 0.0
    %vm1084 = vcmp.gt.f32.partialorder %v1020, 0.0
    %vm1085 = vcmp.gt.f32.partialorder %v1021, 0.0
    %v1086 = vmul.f32 %v958, 0.2
    %v1087 = vmul.f32 %v959, 0.2
    %v1088 = vmul.f32 %v960, 0.2
    %v1089 = vmul.f32 %v961, 0.2
    %v1090 = vmul.f32 %v962, 0.2
    %v1091 = vmul.f32 %v963, 0.2
    %v1092 = vmul.f32 %v964, 0.2
    %v1093 = vmul.f32 %v965, 0.2
    %v1094 = vmul.f32 %v966, 0.2
    %v1095 = vmul.f32 %v967, 0.2
    %v1096 = vmul.f32 %v968, 0.2
    %v1097 = vmul.f32 %v969, 0.2
    %v1098 = vmul.f32 %v970, 0.2
    %v1099 = vmul.f32 %v971, 0.2
    %v1100 = vmul.f32 %v972, 0.2
    %v1101 = vmul.f32 %v973, 0.2
    %v1102 = vmul.f32 %v974, 0.2
    %v1103 = vmul.f32 %v975, 0.2
    %v1104 = vmul.f32 %v976, 0.2
    %v1105 = vmul.f32 %v977, 0.2
    %v1106 = vmul.f32 %v978, 0.2
    %v1107 = vmul.f32 %v979, 0.2
    %v1108 = vmul.f32 %v980, 0.2
    %v1109 = vmul.f32 %v981, 0.2
    %v1110 = vmul.f32 %v982, 0.2
    %v1111 = vmul.f32 %v983, 0.2
    %v1112 = vmul.f32 %v984, 0.2
    %v1113 = vmul.f32 %v985, 0.2
    %v1114 = vmul.f32 %v986, 0.2
    %v1115 = vmul.f32 %v987, 0.2
    %v1116 = vmul.f32 %v988, 0.2
    %v1117 = vmul.f32 %v989, 0.2
    %v1118 = vmul.f32 %v990, 0.2
    %v1119 = vmul.f32 %v991, 0.2
    %v1120 = vmul.f32 %v992, 0.2
    %v1121 = vmul.f32 %v993, 0.2
    %v1122 = vmul.f32 %v994, 0.2
    %v1123 = vmul.f32 %v995, 0.2
    %v1124 = vmul.f32 %v996, 0.2
    %v1125 = vmul.f32 %v997, 0.2
    %v1126 = vmul.f32 %v998, 0.2
    %v1127 = vmul.f32 %v999, 0.2
    %v1128 = vmul.f32 %v1000, 0.2
    %v1129 = vmul.f32 %v1001, 0.2
    %v1130 = vmul.f32 %v1002, 0.2
    %v1131 = vmul.f32 %v1003, 0.2
    %v1132 = vmul.f32 %v1004, 0.2
    %v1133 = vmul.f32 %v1005, 0.2
    %v1134 = vmul.f32 %v1006, 0.2
    %v1135 = vmul.f32 %v1007, 0.2
    %v1136 = vmul.f32 %v1008, 0.2
    %v1137 = vmul.f32 %v1009, 0.2
    %v1138 = vmul.f32 %v1010, 0.2
    %v1139 = vmul.f32 %v1011, 0.2
    %v1140 = vmul.f32 %v1012, 0.2
    %v1141 = vmul.f32 %v1013, 0.2
    %v1142 = vmul.f32 %v1014, 0.2
    %v1143 = vmul.f32 %v1015, 0.2
    %v1144 = vmul.f32 %v1016, 0.2
    %v1145 = vmul.f32 %v1017, 0.2
    %v1146 = vmul.f32 %v1018, 0.2
    %v1147 = vmul.f32 %v1019, 0.2
    %v1148 = vmul.f32 %v1020, 0.2
    %v1149 = vmul.f32 %v1021, 0.2
    %v1150 = vsel %vm1022, %v958, %v1086
    %v1151 = vsel %vm1023, %v959, %v1087
    %v1152 = vsel %vm1024, %v960, %v1088
    %v1153 = vsel %vm1025, %v961, %v1089
    %v1154 = vsel %vm1026, %v962, %v1090
    %v1155 = vsel %vm1027, %v963, %v1091
    %v1156 = vsel %vm1028, %v964, %v1092
    %v1157 = vsel %vm1029, %v965, %v1093
    %v1158 = vsel %vm1030, %v966, %v1094
    %v1159 = vsel %vm1031, %v967, %v1095
    %v1160 = vsel %vm1032, %v968, %v1096
    %v1161 = vsel %vm1033, %v969, %v1097
    %v1162 = vsel %vm1034, %v970, %v1098
    %v1163 = vsel %vm1035, %v971, %v1099
    %v1164 = vsel %vm1036, %v972, %v1100
    %v1165 = vsel %vm1037, %v973, %v1101
    %v1166 = vsel %vm1038, %v974, %v1102
    %v1167 = vsel %vm1039, %v975, %v1103
    %v1168 = vsel %vm1040, %v976, %v1104
    %v1169 = vsel %vm1041, %v977, %v1105
    %v1170 = vsel %vm1042, %v978, %v1106
    %v1171 = vsel %vm1043, %v979, %v1107
    %v1172 = vsel %vm1044, %v980, %v1108
    %v1173 = vsel %vm1045, %v981, %v1109
    %v1174 = vsel %vm1046, %v982, %v1110
    %v1175 = vsel %vm1047, %v983, %v1111
    %v1176 = vsel %vm1048, %v984, %v1112
    %v1177 = vsel %vm1049, %v985, %v1113
    %v1178 = vsel %vm1050, %v986, %v1114
    %v1179 = vsel %vm1051, %v987, %v1115
    %v1180 = vsel %vm1052, %v988, %v1116
    %v1181 = vsel %vm1053, %v989, %v1117
    %v1182 = vsel %vm1054, %v990, %v1118
    %v1183 = vsel %vm1055, %v991, %v1119
    %v1184 = vsel %vm1056, %v992, %v1120
    %v1185 = vsel %vm1057, %v993, %v1121
    %v1186 = vsel %vm1058, %v994, %v1122
    %v1187 = vsel %vm1059, %v995, %v1123
    %v1188 = vsel %vm1060, %v996, %v1124
    %v1189 = vsel %vm1061, %v997, %v1125
    %v1190 = vsel %vm1062, %v998, %v1126
    %v1191 = vsel %vm1063, %v999, %v1127
    %v1192 = vsel %vm1064, %v1000, %v1128
    %v1193 = vsel %vm1065, %v1001, %v1129
    %v1194 = vsel %vm1066, %v1002, %v1130
    %v1195 = vsel %vm1067, %v1003, %v1131
    %v1196 = vsel %vm1068, %v1004, %v1132
    %v1197 = vsel %vm1069, %v1005, %v1133
    %v1198 = vsel %vm1070, %v1006, %v1134
    %v1199 = vsel %vm1071, %v1007, %v1135
    %v1200 = vsel %vm1072, %v1008, %v1136
    %v1201 = vsel %vm1073, %v1009, %v1137
    %v1202 = vsel %vm1074, %v1010, %v1138
    %v1203 = vsel %vm1075, %v1011, %v1139
    %v1204 = vsel %vm1076, %v1012, %v1140
    %v1205 = vsel %vm1077, %v1013, %v1141
    %v1206 = vsel %vm1078, %v1014, %v1142
    %v1207 = vsel %vm1079, %v1015, %v1143
    %v1208 = vsel %vm1080, %v1016, %v1144
    %v1209 = vsel %vm1081, %v1017, %v1145
    %v1210 = vsel %vm1082, %v1018, %v1146
    %v1211 = vsel %vm1083, %v1019, %v1147
    %v1212 = vsel %vm1084, %v1020, %v1148
    %v1213 = vsel %vm1085, %v1021, %v1149
    %1214 = vst [vmem:[%s3] sm:$0xff] %v1150
    %1215 = vst [vmem:[%s3 + $0x8] sm:$0xff] %v1151
    %1216 = vst [vmem:[%s3 + $0x10] sm:$0xff] %v1152
    %1217 = vst [vmem:[%s3 + $0x18] sm:$0xff] %v1153
    %1218 = vst [vmem:[%s3 + $0x20] sm:$0xff] %v1154
    %1219 = vst [vmem:[%s3 + $0x28] sm:$0xff] %v1155
    %1220 = vst [vmem:[%s3 + $0x30] sm:$0xff] %v1156
    %1221 = vst [vmem:[%s3 + $0x38] sm:$0xff] %v1157
    %1222 = vst [vmem:[%s3 + $0x40] sm:$0xff] %v1158
    %1223 = vst [vmem:[%s3 + $0x48] sm:$0xff] %v1159
    %1224 = vst [vmem:[%s3 + $0x50] sm:$0xff] %v1160
    %1225 = vst [vmem:[%s3 + $0x58] sm:$0xff] %v1161
    %1226 = vst [vmem:[%s3 + $0x60] sm:$0xff] %v1162
    %1227 = vst [vmem:[%s3 + $0x68] sm:$0xff] %v1163
    %1228 = vst [vmem:[%s3 + $0x70] sm:$0xff] %v1164
    %1229 = vst [vmem:[%s3 + $0x78] sm:$0xff] %v1165
    %1230 = vst [vmem:[%s3 + $0x80] sm:$0xff] %v1166
    %1231 = vst [vmem:[%s3 + $0x88] sm:$0xff] %v1167
    %1232 = vst [vmem:[%s3 + $0x90] sm:$0xff] %v1168
    %1233 = vst [vmem:[%s3 + $0x98] sm:$0xff] %v1169
    %1234 = vst [vmem:[%s3 + $0xa0] sm:$0xff] %v1170
    %1235 = vst [vmem:[%s3 + $0xa8] sm:$0xff] %v1171
    %1236 = vst [vmem:[%s3 + $0xb0] sm:$0xff] %v1172
    %1237 = vst [vmem:[%s3 + $0xb8] sm:$0xff] %v1173
    %1238 = vst [vmem:[%s3 + $0xc0] sm:$0xff] %v1174
    %1239 = vst [vmem:[%s3 + $0xc8] sm:$0xff] %v1175
    %1240 = vst [vmem:[%s3 + $0xd0] sm:$0xff] %v1176
    %1241 = vst [vmem:[%s3 + $0xd8] sm:$0xff] %v1177
    %1242 = vst [vmem:[%s3 + $0xe0] sm:$0xff] %v1178
    %1243 = vst [vmem:[%s3 + $0xe8] sm:$0xff] %v1179
    %1244 = vst [vmem:[%s3 + $0xf0] sm:$0xff] %v1180
    %1245 = vst [vmem:[%s3 + $0xf8] sm:$0xff] %v1181
    %1246 = vst [vmem:[%s3 + $0x100] sm:$0xff] %v1182
    %1247 = vst [vmem:[%s3 + $0x108] sm:$0xff] %v1183
    %1248 = vst [vmem:[%s3 + $0x110] sm:$0xff] %v1184
    %1249 = vst [vmem:[%s3 + $0x118] sm:$0xff] %v1185
    %1250 = vst [vmem:[%s3 + $0x120] sm:$0xff] %v1186
    %1251 = vst [vmem:[%s3 + $0x128] sm:$0xff] %v1187
    %1252 = vst [vmem:[%s3 + $0x130] sm:$0xff] %v1188
    %1253 = vst [vmem:[%s3 + $0x138] sm:$0xff] %v1189
    %1254 = vst [vmem:[%s3 + $0x140] sm:$0xff] %v1190
    %1255 = vst [vmem:[%s3 + $0x148] sm:$0xff] %v1191
    %1256 = vst [vmem:[%s3 + $0x150] sm:$0xff] %v1192
    %1257 = vst [vmem:[%s3 + $0x158] sm:$0xff] %v1193
    %1258 = vst [vmem:[%s3 + $0x160] sm:$0xff] %v1194
    %1259 = vst [vmem:[%s3 + $0x168] sm:$0xff] %v1195
    %1260 = vst [vmem:[%s3 + $0x170] sm:$0xff] %v1196
    %1261 = vst [vmem:[%s3 + $0x178] sm:$0xff] %v1197
    %1262 = vst [vmem:[%s3 + $0x180] sm:$0xff] %v1198
    %1263 = vst [vmem:[%s3 + $0x188] sm:$0xff] %v1199
    %1264 = vst [vmem:[%s3 + $0x190] sm:$0xff] %v1200
    %1265 = vst [vmem:[%s3 + $0x198] sm:$0xff] %v1201
    %1266 = vst [vmem:[%s3 + $0x1a0] sm:$0xff] %v1202
    %1267 = vst [vmem:[%s3 + $0x1a8] sm:$0xff] %v1203
    %1268 = vst [vmem:[%s3 + $0x1b0] sm:$0xff] %v1204
    %1269 = vst [vmem:[%s3 + $0x1b8] sm:$0xff] %v1205
    %1270 = vst [vmem:[%s3 + $0x1c0] sm:$0xff] %v1206
    %1271 = vst [vmem:[%s3 + $0x1c8] sm:$0xff] %v1207
    %1272 = vst [vmem:[%s3 + $0x1d0] sm:$0xff] %v1208
    %1273 = vst [vmem:[%s3 + $0x1d8] sm:$0xff] %v1209
    %1274 = vst [vmem:[%s3 + $0x1e0] sm:$0xff] %v1210
    %1275 = vst [vmem:[%s3 + $0x1e8] sm:$0xff] %v1211
    %1276 = vst [vmem:[%s3 + $0x1f0] sm:$0xff] %v1212
    %1277 = vst [vmem:[%s3 + $0x1f8] sm:$0xff] %v1213
  $region21: #{_lambda_.8} parent=0 // pred_fallthru
    _
  // Predicated region
  $region22: #{_lambda_.8} parent=0 // pred_check
    _
  $region23: #{_lambda_.8} parent=0 // pred_check_branch
    %1279 = sbr.rel (0) target = $region25
  $region24: #{_lambda_.8} parent=0 // pred_region
    _
  $region25: #{_lambda_.8} parent=0 // pred_fallthru
    _
  // Predicated region
  $region26: #{_lambda_.8} parent=0 // pred_check
    _
  $region27: #{_lambda_.8} parent=0 // pred_check_branch
    %1281 = sbr.rel (0) target = $region29
  $region28: #{_lambda_.8} parent=0 // pred_region
    _
  $region29: #{_lambda_.8} parent=0 // pred_fallthru
    _

// kernel: _lambda_.9
$region0: #{_lambda_.9}
  #allocation0 [shape = 'u32[]', space=smem, size = 0x4, offset = 0x4, fixed_abs, tag = 'smem constant byte address 0x4 - core index']
  #allocation1 [shape = 'u32[144,128]{1,0:T(1,128)}', space=vmem, size = 0x12000, scoped, tag = 'internal scratch']
  #allocation2 [shape = 'f32[256,128]{1,0:T(8,128)}', space=vmem, size = 0x20000, scoped, tag = 'scratch operand']
  %s0 = inlined_call_operand.vmem [shape: bf16[256,128], index: 0, kind: input, shape index: {}]
  %s1 = inlined_call_operand.vmem [shape: bf16[128,128], index: 1, kind: input, shape index: {}]
  %s2 = inlined_call_operand.vmem [shape: f32[1,128], index: 2, kind: input, shape index: {}]
  %s3 = inlined_call_operand.vmem [shape: f32[256,128], index: 3, kind: output, shape index: {}]
  %s4 = sld [smem:[#allocation0]]
  $region30: #{_lambda_.9} parent=0
    _
  %s6 = ssub.s32 1, %s4
  %s7 = scalar_select 0, %s6, %s4
  // Predicated region
  $region2: #{_lambda_.9} parent=0 // pred_check
    _
  $region3: #{_lambda_.9} parent=0 // pred_check_branch
    %9 = sbr.rel (0) target = $region5
  $region4: #{_lambda_.9} parent=0 // pred_region
    _
  $region5: #{_lambda_.9} parent=0 // pred_fallthru
    _
  // Predicated region
  $region6: #{_lambda_.9} parent=0 // pred_check
    _
  $region7: #{_lambda_.9} parent=0 // pred_check_branch
    %11 = sbr.rel (0) target = $region9
  $region8: #{_lambda_.9} parent=0 // pred_region
    _
  $region9: #{_lambda_.9} parent=0 // pred_fallthru
    _
  // Predicated region
  $region10: #{_lambda_.9} parent=0 // pred_check
    _
  $region11: #{_lambda_.9} parent=0 // pred_check_branch
    %13 = sbr.rel (0) target = $region13
  $region12: #{_lambda_.9} parent=0 // pred_region
    _
  $region13: #{_lambda_.9} parent=0 // pred_fallthru
    _
  %p15 = scmp.eq.s32.totalorder 0, 0
  // Predicated region
  $region14: #{_lambda_.9} parent=0 // pred_check
    %p16 = pneg %p15
  $region15: #{_lambda_.9} parent=0 // pred_check_branch
    %18 = sbr.rel (%p16) target = $region17
  $region16: #{_lambda_.9} parent=0 // pred_region
    %19 = vst [vmem:[#allocation2] sm:$0xff] 0.0
    %20 = vst [vmem:[#allocation2 + $0x8] sm:$0xff] 0.0
    %21 = vst [vmem:[#allocation2 + $0x10] sm:$0xff] 0.0
    %22 = vst [vmem:[#allocation2 + $0x18] sm:$0xff] 0.0
    %23 = vst [vmem:[#allocation2 + $0x20] sm:$0xff] 0.0
    %24 = vst [vmem:[#allocation2 + $0x28] sm:$0xff] 0.0
    %25 = vst [vmem:[#allocation2 + $0x30] sm:$0xff] 0.0
    %26 = vst [vmem:[#allocation2 + $0x38] sm:$0xff] 0.0
    %27 = vst [vmem:[#allocation2 + $0x40] sm:$0xff] 0.0
    %28 = vst [vmem:[#allocation2 + $0x48] sm:$0xff] 0.0
    %29 = vst [vmem:[#allocation2 + $0x50] sm:$0xff] 0.0
    %30 = vst [vmem:[#allocation2 + $0x58] sm:$0xff] 0.0
    %31 = vst [vmem:[#allocation2 + $0x60] sm:$0xff] 0.0
    %32 = vst [vmem:[#allocation2 + $0x68] sm:$0xff] 0.0
    %33 = vst [vmem:[#allocation2 + $0x70] sm:$0xff] 0.0
    %34 = vst [vmem:[#allocation2 + $0x78] sm:$0xff] 0.0
    %35 = vst [vmem:[#allocation2 + $0x80] sm:$0xff] 0.0
    %36 = vst [vmem:[#allocation2 + $0x88] sm:$0xff] 0.0
    %37 = vst [vmem:[#allocation2 + $0x90] sm:$0xff] 0.0
    %38 = vst [vmem:[#allocation2 + $0x98] sm:$0xff] 0.0
    %39 = vst [vmem:[#allocation2 + $0xa0] sm:$0xff] 0.0
    %40 = vst [vmem:[#allocation2 + $0xa8] sm:$0xff] 0.0
    %41 = vst [vmem:[#allocation2 + $0xb0] sm:$0xff] 0.0
    %42 = vst [vmem:[#allocation2 + $0xb8] sm:$0xff] 0.0
    %43 = vst [vmem:[#allocation2 + $0xc0] sm:$0xff] 0.0
    %44 = vst [vmem:[#allocation2 + $0xc8] sm:$0xff] 0.0
    %45 = vst [vmem:[#allocation2 + $0xd0] sm:$0xff] 0.0
    %46 = vst [vmem:[#allocation2 + $0xd8] sm:$0xff] 0.0
    %47 = vst [vmem:[#allocation2 + $0xe0] sm:$0xff] 0.0
    %48 = vst [vmem:[#allocation2 + $0xe8] sm:$0xff] 0.0
    %49 = vst [vmem:[#allocation2 + $0xf0] sm:$0xff] 0.0
    %50 = vst [vmem:[#allocation2 + $0xf8] sm:$0xff] 0.0
  $region17: #{_lambda_.9} parent=0 // pred_fallthru
    _
  %v51 = vld [vmem:[#allocation2] sm:$0xff]
  %v52 = vld [vmem:[#allocation2 + $0x8] sm:$0xff]
  %v53 = vld [vmem:[#allocation2 + $0x10] sm:$0xff]
  %v54 = vld [vmem:[#allocation2 + $0x18] sm:$0xff]
  %v55 = vld [vmem:[#allocation2 + $0x20] sm:$0xff]
  %v56 = vld [vmem:[#allocation2 + $0x28] sm:$0xff]
  %v57 = vld [vmem:[#allocation2 + $0x30] sm:$0xff]
  %v58 = vld [vmem:[#allocation2 + $0x38] sm:$0xff]
  %v59 = vld [vmem:[#allocation2 + $0x40] sm:$0xff]
  %v60 = vld [vmem:[#allocation2 + $0x48] sm:$0xff]
  %v61 = vld [vmem:[#allocation2 + $0x50] sm:$0xff]
  %v62 = vld [vmem:[#allocation2 + $0x58] sm:$0xff]
  %v63 = vld [vmem:[#allocation2 + $0x60] sm:$0xff]
  %v64 = vld [vmem:[#allocation2 + $0x68] sm:$0xff]
  %v65 = vld [vmem:[#allocation2 + $0x70] sm:$0xff]
  %v66 = vld [vmem:[#allocation2 + $0x78] sm:$0xff]
  %v67 = vld [vmem:[#allocation2 + $0x80] sm:$0xff]
  %v68 = vld [vmem:[#allocation2 + $0x88] sm:$0xff]
  %v69 = vld [vmem:[#allocation2 + $0x90] sm:$0xff]
  %v70 = vld [vmem:[#allocation2 + $0x98] sm:$0xff]
  %v71 = vld [vmem:[#allocation2 + $0xa0] sm:$0xff]
  %v72 = vld [vmem:[#allocation2 + $0xa8] sm:$0xff]
  %v73 = vld [vmem:[#allocation2 + $0xb0] sm:$0xff]
  %v74 = vld [vmem:[#allocation2 + $0xb8] sm:$0xff]
  %v75 = vld [vmem:[#allocation2 + $0xc0] sm:$0xff]
  %v76 = vld [vmem:[#allocation2 + $0xc8] sm:$0xff]
  %v77 = vld [vmem:[#allocation2 + $0xd0] sm:$0xff]
  %v78 = vld [vmem:[#allocation2 + $0xd8] sm:$0xff]
  %v79 = vld [vmem:[#allocation2 + $0xe0] sm:$0xff]
  %v80 = vld [vmem:[#allocation2 + $0xe8] sm:$0xff]
  %v81 = vld [vmem:[#allocation2 + $0xf0] sm:$0xff]
  %v82 = vld [vmem:[#allocation2 + $0xf8] sm:$0xff]
  %v83 = vld [vmem:[%s0] sm:$0xf]
  %v84 = vld [vmem:[%s0 + $0x4] sm:$0xf]
  %v85 = vld [vmem:[%s0 + $0x8] sm:$0xf]
  %v86 = vld [vmem:[%s0 + $0xc] sm:$0xf]
  %v87 = vld [vmem:[%s0 + $0x10] sm:$0xf]
  %v88 = vld [vmem:[%s0 + $0x14] sm:$0xf]
  %v89 = vld [vmem:[%s0 + $0x18] sm:$0xf]
  %v90 = vld [vmem:[%s0 + $0x1c] sm:$0xf]
  %v91 = vld [vmem:[%s0 + $0x20] sm:$0xf]
  %v92 = vld [vmem:[%s0 + $0x24] sm:$0xf]
  %v93 = vld [vmem:[%s0 + $0x28] sm:$0xf]
  %v94 = vld [vmem:[%s0 + $0x2c] sm:$0xf]
  %v95 = vld [vmem:[%s0 + $0x30] sm:$0xf]
  %v96 = vld [vmem:[%s0 + $0x34] sm:$0xf]
  %v97 = vld [vmem:[%s0 + $0x38] sm:$0xf]
  %v98 = vld [vmem:[%s0 + $0x3c] sm:$0xf]
  %v99 = vld [vmem:[%s0 + $0x40] sm:$0xf]
  %v100 = vld [vmem:[%s0 + $0x44] sm:$0xf]
  %v101 = vld [vmem:[%s0 + $0x48] sm:$0xf]
  %v102 = vld [vmem:[%s0 + $0x4c] sm:$0xf]
  %v103 = vld [vmem:[%s0 + $0x50] sm:$0xf]
  %v104 = vld [vmem:[%s0 + $0x54] sm:$0xf]
  %v105 = vld [vmem:[%s0 + $0x58] sm:$0xf]
  %v106 = vld [vmem:[%s0 + $0x5c] sm:$0xf]
  %v107 = vld [vmem:[%s0 + $0x60] sm:$0xf]
  %v108 = vld [vmem:[%s0 + $0x64] sm:$0xf]
  %v109 = vld [vmem:[%s0 + $0x68] sm:$0xf]
  %v110 = vld [vmem:[%s0 + $0x6c] sm:$0xf]
  %v111 = vld [vmem:[%s0 + $0x70] sm:$0xf]
  %v112 = vld [vmem:[%s0 + $0x74] sm:$0xf]
  %v113 = vld [vmem:[%s0 + $0x78] sm:$0xf]
  %v114 = vld [vmem:[%s0 + $0x7c] sm:$0xf]
  %v115 = vld [vmem:[%s1] sm:$0xf]
  %v116 = vld [vmem:[%s1 + $0x4] sm:$0xf]
  %v117 = vld [vmem:[%s1 + $0x8] sm:$0xf]
  %v118 = vld [vmem:[%s1 + $0xc] sm:$0xf]
  %v119 = vld [vmem:[%s1 + $0x10] sm:$0xf]
  %v120 = vld [vmem:[%s1 + $0x14] sm:$0xf]
  %v121 = vld [vmem:[%s1 + $0x18] sm:$0xf]
  %v122 = vld [vmem:[%s1 + $0x1c] sm:$0xf]
  %v123 = vld [vmem:[%s1 + $0x20] sm:$0xf]
  %v124 = vld [vmem:[%s1 + $0x24] sm:$0xf]
  %v125 = vld [vmem:[%s1 + $0x28] sm:$0xf]
  %v126 = vld [vmem:[%s1 + $0x2c] sm:$0xf]
  %v127 = vld [vmem:[%s1 + $0x30] sm:$0xf]
  %v128 = vld [vmem:[%s1 + $0x34] sm:$0xf]
  %v129 = vld [vmem:[%s1 + $0x38] sm:$0xf]
  %v130 = vld [vmem:[%s1 + $0x3c] sm:$0xf]
  %v163 = vunpack.c.l.b16 %v83
  %v164 = vunpack.c.l.b16 %v84
  %v165 = vunpack.c.l.b16 %v85
  %v166 = vunpack.c.l.b16 %v86
  %v167 = vunpack.c.l.b16 %v87
  %v168 = vunpack.c.l.b16 %v88
  %v169 = vunpack.c.l.b16 %v89
  %v170 = vunpack.c.l.b16 %v90
  %v171 = vunpack.c.l.b16 %v91
  %v172 = vunpack.c.l.b16 %v92
  %v173 = vunpack.c.l.b16 %v93
  %v174 = vunpack.c.l.b16 %v94
  %v175 = vunpack.c.l.b16 %v95
  %v176 = vunpack.c.l.b16 %v96
  %v177 = vunpack.c.l.b16 %v97
  %v178 = vunpack.c.l.b16 %v98
  %v179 = vunpack.c.l.b16 %v99
  %v180 = vunpack.c.l.b16 %v100
  %v181 = vunpack.c.l.b16 %v101
  %v182 = vunpack.c.l.b16 %v102
  %v183 = vunpack.c.l.b16 %v103
  %v184 = vunpack.c.l.b16 %v104
  %v185 = vunpack.c.l.b16 %v105
  %v186 = vunpack.c.l.b16 %v106
  %v187 = vunpack.c.l.b16 %v107
  %v188 = vunpack.c.l.b16 %v108
  %v189 = vunpack.c.l.b16 %v109
  %v190 = vunpack.c.l.b16 %v110
  %v191 = vunpack.c.l.b16 %v111
  %v192 = vunpack.c.l.b16 %v112
  %v193 = vunpack.c.l.b16 %v113
  %v194 = vunpack.c.l.b16 %v114
  %v195 = vpack.c.b16 %v164, %v163
  %v196 = vpack.c.b16 %v166, %v165
  %v197 = vpack.c.b16 %v168, %v167
  %v198 = vpack.c.b16 %v170, %v169
  %v199 = vpack.c.b16 %v172, %v171
  %v200 = vpack.c.b16 %v174, %v173
  %v201 = vpack.c.b16 %v176, %v175
  %v202 = vpack.c.b16 %v178, %v177
  %v203 = vpack.c.b16 %v180, %v179
  %v204 = vpack.c.b16 %v182, %v181
  %v205 = vpack.c.b16 %v184, %v183
  %v206 = vpack.c.b16 %v186, %v185
  %v207 = vpack.c.b16 %v188, %v187
  %v208 = vpack.c.b16 %v190, %v189
  %v209 = vpack.c.b16 %v192, %v191
  %v210 = vpack.c.b16 %v194, %v193
  %v243 = vunpack.c.l.b16 %v115
  %v244 = vunpack.c.l.b16 %v116
  %v245 = vunpack.c.l.b16 %v117
  %v246 = vunpack.c.l.b16 %v118
  %v247 = vunpack.c.l.b16 %v119
  %v248 = vunpack.c.l.b16 %v120
  %v249 = vunpack.c.l.b16 %v121
  %v250 = vunpack.c.l.b16 %v122
  %v251 = vunpack.c.l.b16 %v123
  %v252 = vunpack.c.l.b16 %v124
  %v253 = vunpack.c.l.b16 %v125
  %v254 = vunpack.c.l.b16 %v126
  %v255 = vunpack.c.l.b16 %v127
  %v256 = vunpack.c.l.b16 %v128
  %v257 = vunpack.c.l.b16 %v129
  %v258 = vunpack.c.l.b16 %v130
  %v259 = vpack.c.b16 %v244, %v243
  %v260 = vpack.c.b16 %v246, %v245
  %v261 = vpack.c.b16 %v248, %v247
  %v262 = vpack.c.b16 %v250, %v249
  %v263 = vpack.c.b16 %v252, %v251
  %v264 = vpack.c.b16 %v254, %v253
  %v265 = vpack.c.b16 %v256, %v255
  %v266 = vpack.c.b16 %v258, %v257
  %275 = vmatprep.subr.bf16.mxu0 0
  %276 = vmatpush1.bf16.msra.mxu0 %v259
  %277 = vmatprep.subr.bf16.mxu0 0
  %278 = vmatpush1.bf16.msra.mxu0 %v260
  %279 = vmatprep.subr.bf16.mxu0 0
  %280 = vmatpush1.bf16.msra.mxu0 %v261
  %281 = vmatprep.subr.bf16.mxu0 0
  %282 = vmatpush1.bf16.msra.mxu0 %v262
  %283 = vmatprep.subr.bf16.mxu0 0
  %284 = vmatpush1.bf16.msra.mxu0 %v263
  %285 = vmatprep.subr.bf16.mxu0 0
  %286 = vmatpush1.bf16.msra.mxu0 %v264
  %287 = vmatprep.subr.bf16.mxu0 0
  %288 = vmatpush1.bf16.msra.mxu0 %v265
  %289 = vmatprep.subr.bf16.mxu0 0
  %290 = vmatpush1.bf16.msra.mxu0 %v266
  %291 = vmatprep.subr.bf16.mxu0 0
  %292 = vmatpush1.bf16.msra.mxu0 0
  %293 = vmatprep.subr.bf16.mxu0 0
  %294 = vmatpush1.bf16.msra.mxu0 0
  %295 = vmatprep.subr.bf16.mxu0 0
  %296 = vmatpush1.bf16.msra.mxu0 0
  %297 = vmatprep.subr.bf16.mxu0 0
  %298 = vmatpush1.bf16.msra.mxu0 0
  %299 = vmatprep.subr.bf16.mxu0 0
  %300 = vmatpush1.bf16.msra.mxu0 0
  %301 = vmatprep.subr.bf16.mxu0 0
  %302 = vmatpush1.bf16.msra.mxu0 0
  %303 = vmatprep.subr.bf16.mxu0 0
  %304 = vmatpush1.bf16.msra.mxu0 0
  %305 = vmatprep.subr.bf16.mxu0 0
  %306 = vmatpush1.bf16.msra.mxu0 0
  %307 = vmatprep.mubr.bf16.mxu0 0
  %308 = vmatmul.mubr.bf16.gmra.mrb[0].mxu0 %v195
  %v309 = vpop.f32.mrb[0].mxu0
  %v310 = vadd.f32 0.0, %v309
  %v311 = vpop.f32.mrb[0].mxu0
  %v312 = vpop.f32.mrb[0].mxu0
  %v313 = vadd.f32 0.0, %v312
  %v314 = vpop.f32.mrb[0].mxu0
  %315 = vmatprep.mubr.bf16.mxu0 0
  %316 = vmatmul.mubr.bf16.gmra.mrb[0].mxu0 %v196
  %v317 = vpop.f32.mrb[0].mxu0
  %v318 = vadd.f32 0.0, %v317
  %v319 = vpop.f32.mrb[0].mxu0
  %v320 = vpop.f32.mrb[0].mxu0
  %v321 = vadd.f32 0.0, %v320
  %v322 = vpop.f32.mrb[0].mxu0
  %323 = vmatprep.mubr.bf16.mxu0 0
  %324 = vmatmul.mubr.bf16.gmra.mrb[0].mxu0 %v197
  %v325 = vpop.f32.mrb[0].mxu0
  %v326 = vadd.f32 0.0, %v325
  %v327 = vpop.f32.mrb[0].mxu0
  %v328 = vpop.f32.mrb[0].mxu0
  %v329 = vadd.f32 0.0, %v328
  %v330 = vpop.f32.mrb[0].mxu0
  %331 = vmatprep.mubr.bf16.mxu0 0
  %332 = vmatmul.mubr.bf16.gmra.mrb[0].mxu0 %v198
  %v333 = vpop.f32.mrb[0].mxu0
  %v334 = vadd.f32 0.0, %v333
  %v335 = vpop.f32.mrb[0].mxu0
  %v336 = vpop.f32.mrb[0].mxu0
  %v337 = vadd.f32 0.0, %v336
  %v338 = vpop.f32.mrb[0].mxu0
  %339 = vmatprep.mubr.bf16.mxu0 0
  %340 = vmatmul.mubr.bf16.gmra.mrb[0].mxu0 %v199
  %v341 = vpop.f32.mrb[0].mxu0
  %v342 = vadd.f32 0.0, %v341
  %v343 = vpop.f32.mrb[0].mxu0
  %v344 = vpop.f32.mrb[0].mxu0
  %v345 = vadd.f32 0.0, %v344
  %v346 = vpop.f32.mrb[0].mxu0
  %347 = vmatprep.mubr.bf16.mxu0 0
  %348 = vmatmul.mubr.bf16.gmra.mrb[0].mxu0 %v200
  %v349 = vpop.f32.mrb[0].mxu0
  %v350 = vadd.f32 0.0, %v349
  %v351 = vpop.f32.mrb[0].mxu0
  %v352 = vpop.f32.mrb[0].mxu0
  %v353 = vadd.f32 0.0, %v352
  %v354 = vpop.f32.mrb[0].mxu0
  %355 = vmatprep.mubr.bf16.mxu0 0
  %356 = vmatmul.mubr.bf16.gmra.mrb[0].mxu0 %v201
  %v357 = vpop.f32.mrb[0].mxu0
  %v358 = vadd.f32 0.0, %v357
  %v359 = vpop.f32.mrb[0].mxu0
  %v360 = vpop.f32.mrb[0].mxu0
  %v361 = vadd.f32 0.0, %v360
  %v362 = vpop.f32.mrb[0].mxu0
  %363 = vmatprep.mubr.bf16.mxu0 0
  %364 = vmatmul.mubr.bf16.gmra.mrb[0].mxu0 %v202
  %v365 = vpop.f32.mrb[0].mxu0
  %v366 = vadd.f32 0.0, %v365
  %v367 = vpop.f32.mrb[0].mxu0
  %v368 = vpop.f32.mrb[0].mxu0
  %v369 = vadd.f32 0.0, %v368
  %v370 = vpop.f32.mrb[0].mxu0
  %371 = vmatprep.mubr.bf16.mxu0 0
  %372 = vmatmul.mubr.bf16.gmra.mrb[0].mxu0 %v203
  %v373 = vpop.f32.mrb[0].mxu0
  %v374 = vadd.f32 0.0, %v373
  %v375 = vpop.f32.mrb[0].mxu0
  %v376 = vpop.f32.mrb[0].mxu0
  %v377 = vadd.f32 0.0, %v376
  %v378 = vpop.f32.mrb[0].mxu0
  %379 = vmatprep.mubr.bf16.mxu0 0
  %380 = vmatmul.mubr.bf16.gmra.mrb[0].mxu0 %v204
  %v381 = vpop.f32.mrb[0].mxu0
  %v382 = vadd.f32 0.0, %v381
  %v383 = vpop.f32.mrb[0].mxu0
  %v384 = vpop.f32.mrb[0].mxu0
  %v385 = vadd.f32 0.0, %v384
  %v386 = vpop.f32.mrb[0].mxu0
  %387 = vmatprep.mubr.bf16.mxu0 0
  %388 = vmatmul.mubr.bf16.gmra.mrb[0].mxu0 %v205
  %v389 = vpop.f32.mrb[0].mxu0
  %v390 = vadd.f32 0.0, %v389
  %v391 = vpop.f32.mrb[0].mxu0
  %v392 = vpop.f32.mrb[0].mxu0
  %v393 = vadd.f32 0.0, %v392
  %v394 = vpop.f32.mrb[0].mxu0
  %395 = vmatprep.mubr.bf16.mxu0 0
  %396 = vmatmul.mubr.bf16.gmra.mrb[0].mxu0 %v206
  %v397 = vpop.f32.mrb[0].mxu0
  %v398 = vadd.f32 0.0, %v397
  %v399 = vpop.f32.mrb[0].mxu0
  %v400 = vpop.f32.mrb[0].mxu0
  %v401 = vadd.f32 0.0, %v400
  %v402 = vpop.f32.mrb[0].mxu0
  %403 = vmatprep.mubr.bf16.mxu0 0
  %404 = vmatmul.mubr.bf16.gmra.mrb[0].mxu0 %v207
  %v405 = vpop.f32.mrb[0].mxu0
  %v406 = vadd.f32 0.0, %v405
  %v407 = vpop.f32.mrb[0].mxu0
  %v408 = vpop.f32.mrb[0].mxu0
  %v409 = vadd.f32 0.0, %v408
  %v410 = vpop.f32.mrb[0].mxu0
  %411 = vmatprep.mubr.bf16.mxu0 0
  %412 = vmatmul.mubr.bf16.gmra.mrb[0].mxu0 %v208
  %v413 = vpop.f32.mrb[0].mxu0
  %v414 = vadd.f32 0.0, %v413
  %v415 = vpop.f32.mrb[0].mxu0
  %v416 = vpop.f32.mrb[0].mxu0
  %v417 = vadd.f32 0.0, %v416
  %v418 = vpop.f32.mrb[0].mxu0
  %419 = vmatprep.mubr.bf16.mxu0 0
  %420 = vmatmul.mubr.bf16.gmra.mrb[0].mxu0 %v209
  %v421 = vpop.f32.mrb[0].mxu0
  %v422 = vadd.f32 0.0, %v421
  %v423 = vpop.f32.mrb[0].mxu0
  %v424 = vpop.f32.mrb[0].mxu0
  %v425 = vadd.f32 0.0, %v424
  %v426 = vpop.f32.mrb[0].mxu0
  %427 = vmatprep.mubr.bf16.mxu0 0
  %428 = vmatmul.mubr.bf16.gmra.mrb[0].mxu0 %v210
  %v429 = vpop.f32.mrb[0].mxu0
  %v430 = vadd.f32 0.0, %v429
  %v431 = vpop.f32.mrb[0].mxu0
  %v432 = vpop.f32.mrb[0].mxu0
  %v433 = vadd.f32 0.0, %v432
  %v434 = vpop.f32.mrb[0].mxu0
  %435 = vdwg.mxu0
  %v436 = vadd.f32 %v51, %v310
  %v437 = vadd.f32 %v52, %v313
  %v438 = vadd.f32 %v53, %v318
  %v439 = vadd.f32 %v54, %v321
  %v440 = vadd.f32 %v55, %v326
  %v441 = vadd.f32 %v56, %v329
  %v442 = vadd.f32 %v57, %v334
  %v443 = vadd.f32 %v58, %v337
  %v444 = vadd.f32 %v59, %v342
  %v445 = vadd.f32 %v60, %v345
  %v446 = vadd.f32 %v61, %v350
  %v447 = vadd.f32 %v62, %v353
  %v448 = vadd.f32 %v63, %v358
  %v449 = vadd.f32 %v64, %v361
  %v450 = vadd.f32 %v65, %v366
  %v451 = vadd.f32 %v66, %v369
  %v452 = vadd.f32 %v67, %v374
  %v453 = vadd.f32 %v68, %v377
  %v454 = vadd.f32 %v69, %v382
  %v455 = vadd.f32 %v70, %v385
  %v456 = vadd.f32 %v71, %v390
  %v457 = vadd.f32 %v72, %v393
  %v458 = vadd.f32 %v73, %v398
  %v459 = vadd.f32 %v74, %v401
  %v460 = vadd.f32 %v75, %v406
  %v461 = vadd.f32 %v76, %v409
  %v462 = vadd.f32 %v77, %v414
  %v463 = vadd.f32 %v78, %v417
  %v464 = vadd.f32 %v79, %v422
  %v465 = vadd.f32 %v80, %v425
  %v466 = vadd.f32 %v81, %v430
  %v467 = vadd.f32 %v82, %v433
  %468 = vst [vmem:[#allocation2] sm:$0xff] %v436
  %469 = vst [vmem:[#allocation2 + $0x8] sm:$0xff] %v437
  %470 = vst [vmem:[#allocation2 + $0x10] sm:$0xff] %v438
  %471 = vst [vmem:[#allocation2 + $0x18] sm:$0xff] %v439
  %472 = vst [vmem:[#allocation2 + $0x20] sm:$0xff] %v440
  %473 = vst [vmem:[#allocation2 + $0x28] sm:$0xff] %v441
  %474 = vst [vmem:[#allocation2 + $0x30] sm:$0xff] %v442
  %475 = vst [vmem:[#allocation2 + $0x38] sm:$0xff] %v443
  %476 = vst [vmem:[#allocation2 + $0x40] sm:$0xff] %v444
  %477 = vst [vmem:[#allocation2 + $0x48] sm:$0xff] %v445
  %478 = vst [vmem:[#allocation2 + $0x50] sm:$0xff] %v446
  %479 = vst [vmem:[#allocation2 + $0x58] sm:$0xff] %v447
  %480 = vst [vmem:[#allocation2 + $0x60] sm:$0xff] %v448
  %481 = vst [vmem:[#allocation2 + $0x68] sm:$0xff] %v449
  %482 = vst [vmem:[#allocation2 + $0x70] sm:$0xff] %v450
  %483 = vst [vmem:[#allocation2 + $0x78] sm:$0xff] %v451
  %484 = vst [vmem:[#allocation2 + $0x80] sm:$0xff] %v452
  %485 = vst [vmem:[#allocation2 + $0x88] sm:$0xff] %v453
  %486 = vst [vmem:[#allocation2 + $0x90] sm:$0xff] %v454
  %487 = vst [vmem:[#allocation2 + $0x98] sm:$0xff] %v455
  %488 = vst [vmem:[#allocation2 + $0xa0] sm:$0xff] %v456
  %489 = vst [vmem:[#allocation2 + $0xa8] sm:$0xff] %v457
  %490 = vst [vmem:[#allocation2 + $0xb0] sm:$0xff] %v458
  %491 = vst [vmem:[#allocation2 + $0xb8] sm:$0xff] %v459
  %492 = vst [vmem:[#allocation2 + $0xc0] sm:$0xff] %v460
  %493 = vst [vmem:[#allocation2 + $0xc8] sm:$0xff] %v461
  %494 = vst [vmem:[#allocation2 + $0xd0] sm:$0xff] %v462
  %495 = vst [vmem:[#allocation2 + $0xd8] sm:$0xff] %v463
  %496 = vst [vmem:[#allocation2 + $0xe0] sm:$0xff] %v464
  %497 = vst [vmem:[#allocation2 + $0xe8] sm:$0xff] %v465
  %498 = vst [vmem:[#allocation2 + $0xf0] sm:$0xff] %v466
  %499 = vst [vmem:[#allocation2 + $0xf8] sm:$0xff] %v467
  // Predicated region
  $region18: #{_lambda_.9} parent=0 // pred_check
    %p500 = pneg %p15
  $region19: #{_lambda_.9} parent=0 // pred_check_branch
    %502 = sbr.rel (%p500) target = $region21
  $region20: #{_lambda_.9} parent=0 // pred_region
    %v503 = vld [vmem:[#allocation2] sm:$0xff]
    %v504 = vld [vmem:[#allocation2 + $0x8] sm:$0xff]
    %v505 = vld [vmem:[#allocation2 + $0x10] sm:$0xff]
    %v506 = vld [vmem:[#allocation2 + $0x18] sm:$0xff]
    %v507 = vld [vmem:[#allocation2 + $0x20] sm:$0xff]
    %v508 = vld [vmem:[#allocation2 + $0x28] sm:$0xff]
    %v509 = vld [vmem:[#allocation2 + $0x30] sm:$0xff]
    %v510 = vld [vmem:[#allocation2 + $0x38] sm:$0xff]
    %v511 = vld [vmem:[#allocation2 + $0x40] sm:$0xff]
    %v512 = vld [vmem:[#allocation2 + $0x48] sm:$0xff]
    %v513 = vld [vmem:[#allocation2 + $0x50] sm:$0xff]
    %v514 = vld [vmem:[#allocation2 + $0x58] sm:$0xff]
    %v515 = vld [vmem:[#allocation2 + $0x60] sm:$0xff]
    %v516 = vld [vmem:[#allocation2 + $0x68] sm:$0xff]
    %v517 = vld [vmem:[#allocation2 + $0x70] sm:$0xff]
    %v518 = vld [vmem:[#allocation2 + $0x78] sm:$0xff]
    %v519 = vld [vmem:[#allocation2 + $0x80] sm:$0xff]
    %v520 = vld [vmem:[#allocation2 + $0x88] sm:$0xff]
    %v521 = vld [vmem:[#allocation2 + $0x90] sm:$0xff]
    %v522 = vld [vmem:[#allocation2 + $0x98] sm:$0xff]
    %v523 = vld [vmem:[#allocation2 + $0xa0] sm:$0xff]
    %v524 = vld [vmem:[#allocation2 + $0xa8] sm:$0xff]
    %v525 = vld [vmem:[#allocation2 + $0xb0] sm:$0xff]
    %v526 = vld [vmem:[#allocation2 + $0xb8] sm:$0xff]
    %v527 = vld [vmem:[#allocation2 + $0xc0] sm:$0xff]
    %v528 = vld [vmem:[#allocation2 + $0xc8] sm:$0xff]
    %v529 = vld [vmem:[#allocation2 + $0xd0] sm:$0xff]
    %v530 = vld [vmem:[#allocation2 + $0xd8] sm:$0xff]
    %v531 = vld [vmem:[#allocation2 + $0xe0] sm:$0xff]
    %v532 = vld [vmem:[#allocation2 + $0xe8] sm:$0xff]
    %v533 = vld [vmem:[#allocation2 + $0xf0] sm:$0xff]
    %v534 = vld [vmem:[#allocation2 + $0xf8] sm:$0xff]
    %v535 = vld [vmem:[%s2] sm:$0x1]
    %v537 = vlaneseq
    %v538 = vshrl.u32 %v537, 7
    %v539 = vsub.s32 0, %v538
    %v540 = vrot.slane %v535, %v539
    %v542 = vadd.f32 %v503, %v540
    %v543 = vadd.f32 %v504, %v540
    %v544 = vadd.f32 %v505, %v540
    %v545 = vadd.f32 %v506, %v540
    %v546 = vadd.f32 %v507, %v540
    %v547 = vadd.f32 %v508, %v540
    %v548 = vadd.f32 %v509, %v540
    %v549 = vadd.f32 %v510, %v540
    %v550 = vadd.f32 %v511, %v540
    %v551 = vadd.f32 %v512, %v540
    %v552 = vadd.f32 %v513, %v540
    %v553 = vadd.f32 %v514, %v540
    %v554 = vadd.f32 %v515, %v540
    %v555 = vadd.f32 %v516, %v540
    %v556 = vadd.f32 %v517, %v540
    %v557 = vadd.f32 %v518, %v540
    %v558 = vadd.f32 %v519, %v540
    %v559 = vadd.f32 %v520, %v540
    %v560 = vadd.f32 %v521, %v540
    %v561 = vadd.f32 %v522, %v540
    %v562 = vadd.f32 %v523, %v540
    %v563 = vadd.f32 %v524, %v540
    %v564 = vadd.f32 %v525, %v540
    %v565 = vadd.f32 %v526, %v540
    %v566 = vadd.f32 %v527, %v540
    %v567 = vadd.f32 %v528, %v540
    %v568 = vadd.f32 %v529, %v540
    %v569 = vadd.f32 %v530, %v540
    %v570 = vadd.f32 %v531, %v540
    %v571 = vadd.f32 %v532, %v540
    %v572 = vadd.f32 %v533, %v540
    %v573 = vadd.f32 %v534, %v540
    %574 = vst [vmem:[%s3] sm:$0xff] %v542
    %575 = vst [vmem:[%s3 + $0x8] sm:$0xff] %v543
    %576 = vst [vmem:[%s3 + $0x10] sm:$0xff] %v544
    %577 = vst [vmem:[%s3 + $0x18] sm:$0xff] %v545
    %578 = vst [vmem:[%s3 + $0x20] sm:$0xff] %v546
    %579 = vst [vmem:[%s3 + $0x28] sm:$0xff] %v547
    %580 = vst [vmem:[%s3 + $0x30] sm:$0xff] %v548
    %581 = vst [vmem:[%s3 + $0x38] sm:$0xff] %v549
    %582 = vst [vmem:[%s3 + $0x40] sm:$0xff] %v550
    %583 = vst [vmem:[%s3 + $0x48] sm:$0xff] %v551
    %584 = vst [vmem:[%s3 + $0x50] sm:$0xff] %v552
    %585 = vst [vmem:[%s3 + $0x58] sm:$0xff] %v553
    %586 = vst [vmem:[%s3 + $0x60] sm:$0xff] %v554
    %587 = vst [vmem:[%s3 + $0x68] sm:$0xff] %v555
    %588 = vst [vmem:[%s3 + $0x70] sm:$0xff] %v556
    %589 = vst [vmem:[%s3 + $0x78] sm:$0xff] %v557
    %590 = vst [vmem:[%s3 + $0x80] sm:$0xff] %v558
    %591 = vst [vmem:[%s3 + $0x88] sm:$0xff] %v559
    %592 = vst [vmem:[%s3 + $0x90] sm:$0xff] %v560
    %593 = vst [vmem:[%s3 + $0x98] sm:$0xff] %v561
    %594 = vst [vmem:[%s3 + $0xa0] sm:$0xff] %v562
    %595 = vst [vmem:[%s3 + $0xa8] sm:$0xff] %v563
    %596 = vst [vmem:[%s3 + $0xb0] sm:$0xff] %v564
    %597 = vst [vmem:[%s3 + $0xb8] sm:$0xff] %v565
    %598 = vst [vmem:[%s3 + $0xc0] sm:$0xff] %v566
    %599 = vst [vmem:[%s3 + $0xc8] sm:$0xff] %v567
    %600 = vst [vmem:[%s3 + $0xd0] sm:$0xff] %v568
    %601 = vst [vmem:[%s3 + $0xd8] sm:$0xff] %v569
    %602 = vst [vmem:[%s3 + $0xe0] sm:$0xff] %v570
    %603 = vst [vmem:[%s3 + $0xe8] sm:$0xff] %v571
    %604 = vst [vmem:[%s3 + $0xf0] sm:$0xff] %v572
    %605 = vst [vmem:[%s3 + $0xf8] sm:$0xff] %v573
  $region21: #{_lambda_.9} parent=0 // pred_fallthru
    _
  // Predicated region
  $region22: #{_lambda_.9} parent=0 // pred_check
    _
  $region23: #{_lambda_.9} parent=0 // pred_check_branch
    %607 = sbr.rel (0) target = $region25
  $region24: #{_lambda_.9} parent=0 // pred_region
    _
  $region25: #{_lambda_.9} parent=0 // pred_fallthru
    _
  // Predicated region
  $region26: #{_lambda_.9} parent=0 // pred_check
    _
  $region27: #{_lambda_.9} parent=0 // pred_check_branch
    %609 = sbr.rel (0) target = $region29
  $region28: #{_lambda_.9} parent=0 // pred_region
    _
  $region29: #{_lambda_.9} parent=0 // pred_fallthru
    _

// kernel: _lambda_.10
$region0: #{_lambda_.10}
  #allocation0 [shape = 'u32[]', space=smem, size = 0x4, offset = 0x4, fixed_abs, tag = 'smem constant byte address 0x4 - core index']
  #allocation1 [shape = 'u32[144,128]{1,0:T(1,128)}', space=vmem, size = 0x12000, scoped, tag = 'internal scratch']
  %s0 = inlined_call_operand.vmem [shape: f32[256,128], index: 0, kind: input, shape index: {}]
  %s1 = inlined_call_operand.vmem [shape: f32[1,128], index: 1, kind: input, shape index: {}]
  %s2 = inlined_call_operand.vmem [shape: f32[1,128], index: 2, kind: input, shape index: {}]
  %s3 = inlined_call_operand.vmem [shape: f32[256,128], index: 3, kind: output, shape index: {}]
  %s4 = sld [smem:[#allocation0]]
  $region22: #{_lambda_.10} parent=0
    _
  %s6 = ssub.s32 1, %s4
  %s7 = scalar_select 0, %s6, %s4
  // Predicated region
  $region2: #{_lambda_.10} parent=0 // pred_check
    _
  $region3: #{_lambda_.10} parent=0 // pred_check_branch
    %9 = sbr.rel (0) target = $region5
  $region4: #{_lambda_.10} parent=0 // pred_region
    _
  $region5: #{_lambda_.10} parent=0 // pred_fallthru
    _
  // Predicated region
  $region6: #{_lambda_.10} parent=0 // pred_check
    _
  $region7: #{_lambda_.10} parent=0 // pred_check_branch
    %11 = sbr.rel (0) target = $region9
  $region8: #{_lambda_.10} parent=0 // pred_region
    _
  $region9: #{_lambda_.10} parent=0 // pred_fallthru
    _
  // Predicated region
  $region10: #{_lambda_.10} parent=0 // pred_check
    _
  $region11: #{_lambda_.10} parent=0 // pred_check_branch
    %13 = sbr.rel (0) target = $region13
  $region12: #{_lambda_.10} parent=0 // pred_region
    _
  $region13: #{_lambda_.10} parent=0 // pred_fallthru
    _
  %v14 = vld [vmem:[%s0] sm:$0xff]
  %v15 = vld [vmem:[%s0 + $0x8] sm:$0xff]
  %v16 = vld [vmem:[%s0 + $0x10] sm:$0xff]
  %v17 = vld [vmem:[%s0 + $0x18] sm:$0xff]
  %v18 = vld [vmem:[%s0 + $0x20] sm:$0xff]
  %v19 = vld [vmem:[%s0 + $0x28] sm:$0xff]
  %v20 = vld [vmem:[%s0 + $0x30] sm:$0xff]
  %v21 = vld [vmem:[%s0 + $0x38] sm:$0xff]
  %v22 = vld [vmem:[%s0 + $0x40] sm:$0xff]
  %v23 = vld [vmem:[%s0 + $0x48] sm:$0xff]
  %v24 = vld [vmem:[%s0 + $0x50] sm:$0xff]
  %v25 = vld [vmem:[%s0 + $0x58] sm:$0xff]
  %v26 = vld [vmem:[%s0 + $0x60] sm:$0xff]
  %v27 = vld [vmem:[%s0 + $0x68] sm:$0xff]
  %v28 = vld [vmem:[%s0 + $0x70] sm:$0xff]
  %v29 = vld [vmem:[%s0 + $0x78] sm:$0xff]
  %v30 = vld [vmem:[%s0 + $0x80] sm:$0xff]
  %v31 = vld [vmem:[%s0 + $0x88] sm:$0xff]
  %v32 = vld [vmem:[%s0 + $0x90] sm:$0xff]
  %v33 = vld [vmem:[%s0 + $0x98] sm:$0xff]
  %v34 = vld [vmem:[%s0 + $0xa0] sm:$0xff]
  %v35 = vld [vmem:[%s0 + $0xa8] sm:$0xff]
  %v36 = vld [vmem:[%s0 + $0xb0] sm:$0xff]
  %v37 = vld [vmem:[%s0 + $0xb8] sm:$0xff]
  %v38 = vld [vmem:[%s0 + $0xc0] sm:$0xff]
  %v39 = vld [vmem:[%s0 + $0xc8] sm:$0xff]
  %v40 = vld [vmem:[%s0 + $0xd0] sm:$0xff]
  %v41 = vld [vmem:[%s0 + $0xd8] sm:$0xff]
  %v42 = vld [vmem:[%s0 + $0xe0] sm:$0xff]
  %v43 = vld [vmem:[%s0 + $0xe8] sm:$0xff]
  %v44 = vld [vmem:[%s0 + $0xf0] sm:$0xff]
  %v45 = vld [vmem:[%s0 + $0xf8] sm:$0xff]
  %v46 = vld [vmem:[%s1] sm:$0x1]
  %v48 = vlaneseq
  %v49 = vshrl.u32 %v48, 7
  %v50 = vsub.s32 0, %v49
  %v51 = vrot.slane %v46, %v50
  %v53 = vmul.f32 %v14, %v51
  %v54 = vmul.f32 %v15, %v51
  %v55 = vmul.f32 %v16, %v51
  %v56 = vmul.f32 %v17, %v51
  %v57 = vmul.f32 %v18, %v51
  %v58 = vmul.f32 %v19, %v51
  %v59 = vmul.f32 %v20, %v51
  %v60 = vmul.f32 %v21, %v51
  %v61 = vmul.f32 %v22, %v51
  %v62 = vmul.f32 %v23, %v51
  %v63 = vmul.f32 %v24, %v51
  %v64 = vmul.f32 %v25, %v51
  %v65 = vmul.f32 %v26, %v51
  %v66 = vmul.f32 %v27, %v51
  %v67 = vmul.f32 %v28, %v51
  %v68 = vmul.f32 %v29, %v51
  %v69 = vmul.f32 %v30, %v51
  %v70 = vmul.f32 %v31, %v51
  %v71 = vmul.f32 %v32, %v51
  %v72 = vmul.f32 %v33, %v51
  %v73 = vmul.f32 %v34, %v51
  %v74 = vmul.f32 %v35, %v51
  %v75 = vmul.f32 %v36, %v51
  %v76 = vmul.f32 %v37, %v51
  %v77 = vmul.f32 %v38, %v51
  %v78 = vmul.f32 %v39, %v51
  %v79 = vmul.f32 %v40, %v51
  %v80 = vmul.f32 %v41, %v51
  %v81 = vmul.f32 %v42, %v51
  %v82 = vmul.f32 %v43, %v51
  %v83 = vmul.f32 %v44, %v51
  %v84 = vmul.f32 %v45, %v51
  %v85 = vld [vmem:[%s2] sm:$0x1]
  %v87 = vlaneseq
  %v88 = vshrl.u32 %v87, 7
  %v89 = vsub.s32 0, %v88
  %v90 = vrot.slane %v85, %v89
  %v92 = vadd.f32 %v53, %v90
  %v93 = vadd.f32 %v54, %v90
  %v94 = vadd.f32 %v55, %v90
  %v95 = vadd.f32 %v56, %v90
  %v96 = vadd.f32 %v57, %v90
  %v97 = vadd.f32 %v58, %v90
  %v98 = vadd.f32 %v59, %v90
  %v99 = vadd.f32 %v60, %v90
  %v100 = vadd.f32 %v61, %v90
  %v101 = vadd.f32 %v62, %v90
  %v102 = vadd.f32 %v63, %v90
  %v103 = vadd.f32 %v64, %v90
  %v104 = vadd.f32 %v65, %v90
  %v105 = vadd.f32 %v66, %v90
  %v106 = vadd.f32 %v67, %v90
  %v107 = vadd.f32 %v68, %v90
  %v108 = vadd.f32 %v69, %v90
  %v109 = vadd.f32 %v70, %v90
  %v110 = vadd.f32 %v71, %v90
  %v111 = vadd.f32 %v72, %v90
  %v112 = vadd.f32 %v73, %v90
  %v113 = vadd.f32 %v74, %v90
  %v114 = vadd.f32 %v75, %v90
  %v115 = vadd.f32 %v76, %v90
  %v116 = vadd.f32 %v77, %v90
  %v117 = vadd.f32 %v78, %v90
  %v118 = vadd.f32 %v79, %v90
  %v119 = vadd.f32 %v80, %v90
  %v120 = vadd.f32 %v81, %v90
  %v121 = vadd.f32 %v82, %v90
  %v122 = vadd.f32 %v83, %v90
  %v123 = vadd.f32 %v84, %v90
  %vm124 = vcmp.gt.f32.partialorder %v92, 0.0
  %vm125 = vcmp.gt.f32.partialorder %v93, 0.0
  %vm126 = vcmp.gt.f32.partialorder %v94, 0.0
  %vm127 = vcmp.gt.f32.partialorder %v95, 0.0
  %vm128 = vcmp.gt.f32.partialorder %v96, 0.0
  %vm129 = vcmp.gt.f32.partialorder %v97, 0.0
  %vm130 = vcmp.gt.f32.partialorder %v98, 0.0
  %vm131 = vcmp.gt.f32.partialorder %v99, 0.0
  %vm132 = vcmp.gt.f32.partialorder %v100, 0.0
  %vm133 = vcmp.gt.f32.partialorder %v101, 0.0
  %vm134 = vcmp.gt.f32.partialorder %v102, 0.0
  %vm135 = vcmp.gt.f32.partialorder %v103, 0.0
  %vm136 = vcmp.gt.f32.partialorder %v104, 0.0
  %vm137 = vcmp.gt.f32.partialorder %v105, 0.0
  %vm138 = vcmp.gt.f32.partialorder %v106, 0.0
  %vm139 = vcmp.gt.f32.partialorder %v107, 0.0
  %vm140 = vcmp.gt.f32.partialorder %v108, 0.0
  %vm141 = vcmp.gt.f32.partialorder %v109, 0.0
  %vm142 = vcmp.gt.f32.partialorder %v110, 0.0
  %vm143 = vcmp.gt.f32.partialorder %v111, 0.0
  %vm144 = vcmp.gt.f32.partialorder %v112, 0.0
  %vm145 = vcmp.gt.f32.partialorder %v113, 0.0
  %vm146 = vcmp.gt.f32.partialorder %v114, 0.0
  %vm147 = vcmp.gt.f32.partialorder %v115, 0.0
  %vm148 = vcmp.gt.f32.partialorder %v116, 0.0
  %vm149 = vcmp.gt.f32.partialorder %v117, 0.0
  %vm150 = vcmp.gt.f32.partialorder %v118, 0.0
  %vm151 = vcmp.gt.f32.partialorder %v119, 0.0
  %vm152 = vcmp.gt.f32.partialorder %v120, 0.0
  %vm153 = vcmp.gt.f32.partialorder %v121, 0.0
  %vm154 = vcmp.gt.f32.partialorder %v122, 0.0
  %vm155 = vcmp.gt.f32.partialorder %v123, 0.0
  %v156 = vmul.f32 %v92, 0.2
  %v157 = vmul.f32 %v93, 0.2
  %v158 = vmul.f32 %v94, 0.2
  %v159 = vmul.f32 %v95, 0.2
  %v160 = vmul.f32 %v96, 0.2
  %v161 = vmul.f32 %v97, 0.2
  %v162 = vmul.f32 %v98, 0.2
  %v163 = vmul.f32 %v99, 0.2
  %v164 = vmul.f32 %v100, 0.2
  %v165 = vmul.f32 %v101, 0.2
  %v166 = vmul.f32 %v102, 0.2
  %v167 = vmul.f32 %v103, 0.2
  %v168 = vmul.f32 %v104, 0.2
  %v169 = vmul.f32 %v105, 0.2
  %v170 = vmul.f32 %v106, 0.2
  %v171 = vmul.f32 %v107, 0.2
  %v172 = vmul.f32 %v108, 0.2
  %v173 = vmul.f32 %v109, 0.2
  %v174 = vmul.f32 %v110, 0.2
  %v175 = vmul.f32 %v111, 0.2
  %v176 = vmul.f32 %v112, 0.2
  %v177 = vmul.f32 %v113, 0.2
  %v178 = vmul.f32 %v114, 0.2
  %v179 = vmul.f32 %v115, 0.2
  %v180 = vmul.f32 %v116, 0.2
  %v181 = vmul.f32 %v117, 0.2
  %v182 = vmul.f32 %v118, 0.2
  %v183 = vmul.f32 %v119, 0.2
  %v184 = vmul.f32 %v120, 0.2
  %v185 = vmul.f32 %v121, 0.2
  %v186 = vmul.f32 %v122, 0.2
  %v187 = vmul.f32 %v123, 0.2
  %v188 = vsel %vm124, %v92, %v156
  %v189 = vsel %vm125, %v93, %v157
  %v190 = vsel %vm126, %v94, %v158
  %v191 = vsel %vm127, %v95, %v159
  %v192 = vsel %vm128, %v96, %v160
  %v193 = vsel %vm129, %v97, %v161
  %v194 = vsel %vm130, %v98, %v162
  %v195 = vsel %vm131, %v99, %v163
  %v196 = vsel %vm132, %v100, %v164
  %v197 = vsel %vm133, %v101, %v165
  %v198 = vsel %vm134, %v102, %v166
  %v199 = vsel %vm135, %v103, %v167
  %v200 = vsel %vm136, %v104, %v168
  %v201 = vsel %vm137, %v105, %v169
  %v202 = vsel %vm138, %v106, %v170
  %v203 = vsel %vm139, %v107, %v171
  %v204 = vsel %vm140, %v108, %v172
  %v205 = vsel %vm141, %v109, %v173
  %v206 = vsel %vm142, %v110, %v174
  %v207 = vsel %vm143, %v111, %v175
  %v208 = vsel %vm144, %v112, %v176
  %v209 = vsel %vm145, %v113, %v177
  %v210 = vsel %vm146, %v114, %v178
  %v211 = vsel %vm147, %v115, %v179
  %v212 = vsel %vm148, %v116, %v180
  %v213 = vsel %vm149, %v117, %v181
  %v214 = vsel %vm150, %v118, %v182
  %v215 = vsel %vm151, %v119, %v183
  %v216 = vsel %vm152, %v120, %v184
  %v217 = vsel %vm153, %v121, %v185
  %v218 = vsel %vm154, %v122, %v186
  %v219 = vsel %vm155, %v123, %v187
  %220 = vst [vmem:[%s3] sm:$0xff] %v188
  %221 = vst [vmem:[%s3 + $0x8] sm:$0xff] %v189
  %222 = vst [vmem:[%s3 + $0x10] sm:$0xff] %v190
  %223 = vst [vmem:[%s3 + $0x18] sm:$0xff] %v191
  %224 = vst [vmem:[%s3 + $0x20] sm:$0xff] %v192
  %225 = vst [vmem:[%s3 + $0x28] sm:$0xff] %v193
  %226 = vst [vmem:[%s3 + $0x30] sm:$0xff] %v194
  %227 = vst [vmem:[%s3 + $0x38] sm:$0xff] %v195
  %228 = vst [vmem:[%s3 + $0x40] sm:$0xff] %v196
  %229 = vst [vmem:[%s3 + $0x48] sm:$0xff] %v197
  %230 = vst [vmem:[%s3 + $0x50] sm:$0xff] %v198
  %231 = vst [vmem:[%s3 + $0x58] sm:$0xff] %v199
  %232 = vst [vmem:[%s3 + $0x60] sm:$0xff] %v200
  %233 = vst [vmem:[%s3 + $0x68] sm:$0xff] %v201
  %234 = vst [vmem:[%s3 + $0x70] sm:$0xff] %v202
  %235 = vst [vmem:[%s3 + $0x78] sm:$0xff] %v203
  %236 = vst [vmem:[%s3 + $0x80] sm:$0xff] %v204
  %237 = vst [vmem:[%s3 + $0x88] sm:$0xff] %v205
  %238 = vst [vmem:[%s3 + $0x90] sm:$0xff] %v206
  %239 = vst [vmem:[%s3 + $0x98] sm:$0xff] %v207
  %240 = vst [vmem:[%s3 + $0xa0] sm:$0xff] %v208
  %241 = vst [vmem:[%s3 + $0xa8] sm:$0xff] %v209
  %242 = vst [vmem:[%s3 + $0xb0] sm:$0xff] %v210
  %243 = vst [vmem:[%s3 + $0xb8] sm:$0xff] %v211
  %244 = vst [vmem:[%s3 + $0xc0] sm:$0xff] %v212
  %245 = vst [vmem:[%s3 + $0xc8] sm:$0xff] %v213
  %246 = vst [vmem:[%s3 + $0xd0] sm:$0xff] %v214
  %247 = vst [vmem:[%s3 + $0xd8] sm:$0xff] %v215
  %248 = vst [vmem:[%s3 + $0xe0] sm:$0xff] %v216
  %249 = vst [vmem:[%s3 + $0xe8] sm:$0xff] %v217
  %250 = vst [vmem:[%s3 + $0xf0] sm:$0xff] %v218
  %251 = vst [vmem:[%s3 + $0xf8] sm:$0xff] %v219
  // Predicated region
  $region14: #{_lambda_.10} parent=0 // pred_check
    _
  $region15: #{_lambda_.10} parent=0 // pred_check_branch
    %253 = sbr.rel (0) target = $region17
  $region16: #{_lambda_.10} parent=0 // pred_region
    _
  $region17: #{_lambda_.10} parent=0 // pred_fallthru
    _
  // Predicated region
  $region18: #{_lambda_.10} parent=0 // pred_check
    _
  $region19: #{_lambda_.10} parent=0 // pred_check_branch
    %255 = sbr.rel (0) target = $region21
  $region20: #{_lambda_.10} parent=0 // pred_region
    _
  $region21: #{_lambda_.10} parent=0 // pred_fallthru
    _

// kernel: _lambda_.11
$region0: #{_lambda_.11}
  #allocation0 [shape = 'u32[]', space=smem, size = 0x4, offset = 0x4, fixed_abs, tag = 'smem constant byte address 0x4 - core index']
  #allocation1 [shape = 'u32[144,128]{1,0:T(1,128)}', space=vmem, size = 0x12000, scoped, tag = 'internal scratch']
  #allocation2 [shape = 'f32[256,128]{1,0:T(8,128)}', space=vmem, size = 0x20000, scoped, tag = 'scratch operand']
  %s0 = inlined_call_operand.vmem [shape: bf16[256,256], index: 0, kind: input, shape index: {}]
  %s1 = inlined_call_operand.vmem [shape: bf16[256,128], index: 1, kind: input, shape index: {}]
  %s2 = inlined_call_operand.vmem [shape: f32[1,128], index: 2, kind: input, shape index: {}]
  %s3 = inlined_call_operand.vmem [shape: f32[256,128], index: 3, kind: output, shape index: {}]
  %s4 = sld [smem:[#allocation0]]
  $region30: #{_lambda_.11} parent=0
    _
  %s6 = ssub.s32 1, %s4
  %s7 = scalar_select 0, %s6, %s4
  // Predicated region
  $region2: #{_lambda_.11} parent=0 // pred_check
    _
  $region3: #{_lambda_.11} parent=0 // pred_check_branch
    %9 = sbr.rel (0) target = $region5
  $region4: #{_lambda_.11} parent=0 // pred_region
    _
  $region5: #{_lambda_.11} parent=0 // pred_fallthru
    _
  // Predicated region
  $region6: #{_lambda_.11} parent=0 // pred_check
    _
  $region7: #{_lambda_.11} parent=0 // pred_check_branch
    %11 = sbr.rel (0) target = $region9
  $region8: #{_lambda_.11} parent=0 // pred_region
    _
  $region9: #{_lambda_.11} parent=0 // pred_fallthru
    _
  // Predicated region
  $region10: #{_lambda_.11} parent=0 // pred_check
    _
  $region11: #{_lambda_.11} parent=0 // pred_check_branch
    %13 = sbr.rel (0) target = $region13
  $region12: #{_lambda_.11} parent=0 // pred_region
    _
  $region13: #{_lambda_.11} parent=0 // pred_fallthru
    _
  %p15 = scmp.eq.s32.totalorder 0, 0
  // Predicated region
  $region14: #{_lambda_.11} parent=0 // pred_check
    %p16 = pneg %p15
  $region15: #{_lambda_.11} parent=0 // pred_check_branch
    %18 = sbr.rel (%p16) target = $region17
  $region16: #{_lambda_.11} parent=0 // pred_region
    %19 = vst [vmem:[#allocation2] sm:$0xff] 0.0
    %20 = vst [vmem:[#allocation2 + $0x8] sm:$0xff] 0.0
    %21 = vst [vmem:[#allocation2 + $0x10] sm:$0xff] 0.0
    %22 = vst [vmem:[#allocation2 + $0x18] sm:$0xff] 0.0
    %23 = vst [vmem:[#allocation2 + $0x20] sm:$0xff] 0.0
    %24 = vst [vmem:[#allocation2 + $0x28] sm:$0xff] 0.0
    %25 = vst [vmem:[#allocation2 + $0x30] sm:$0xff] 0.0
    %26 = vst [vmem:[#allocation2 + $0x38] sm:$0xff] 0.0
    %27 = vst [vmem:[#allocation2 + $0x40] sm:$0xff] 0.0
    %28 = vst [vmem:[#allocation2 + $0x48] sm:$0xff] 0.0
    %29 = vst [vmem:[#allocation2 + $0x50] sm:$0xff] 0.0
    %30 = vst [vmem:[#allocation2 + $0x58] sm:$0xff] 0.0
    %31 = vst [vmem:[#allocation2 + $0x60] sm:$0xff] 0.0
    %32 = vst [vmem:[#allocation2 + $0x68] sm:$0xff] 0.0
    %33 = vst [vmem:[#allocation2 + $0x70] sm:$0xff] 0.0
    %34 = vst [vmem:[#allocation2 + $0x78] sm:$0xff] 0.0
    %35 = vst [vmem:[#allocation2 + $0x80] sm:$0xff] 0.0
    %36 = vst [vmem:[#allocation2 + $0x88] sm:$0xff] 0.0
    %37 = vst [vmem:[#allocation2 + $0x90] sm:$0xff] 0.0
    %38 = vst [vmem:[#allocation2 + $0x98] sm:$0xff] 0.0
    %39 = vst [vmem:[#allocation2 + $0xa0] sm:$0xff] 0.0
    %40 = vst [vmem:[#allocation2 + $0xa8] sm:$0xff] 0.0
    %41 = vst [vmem:[#allocation2 + $0xb0] sm:$0xff] 0.0
    %42 = vst [vmem:[#allocation2 + $0xb8] sm:$0xff] 0.0
    %43 = vst [vmem:[#allocation2 + $0xc0] sm:$0xff] 0.0
    %44 = vst [vmem:[#allocation2 + $0xc8] sm:$0xff] 0.0
    %45 = vst [vmem:[#allocation2 + $0xd0] sm:$0xff] 0.0
    %46 = vst [vmem:[#allocation2 + $0xd8] sm:$0xff] 0.0
    %47 = vst [vmem:[#allocation2 + $0xe0] sm:$0xff] 0.0
    %48 = vst [vmem:[#allocation2 + $0xe8] sm:$0xff] 0.0
    %49 = vst [vmem:[#allocation2 + $0xf0] sm:$0xff] 0.0
    %50 = vst [vmem:[#allocation2 + $0xf8] sm:$0xff] 0.0
  $region17: #{_lambda_.11} parent=0 // pred_fallthru
    _
  %v51 = vld [vmem:[#allocation2] sm:$0xff]
  %v52 = vld [vmem:[#allocation2 + $0x8] sm:$0xff]
  %v53 = vld [vmem:[#allocation2 + $0x10] sm:$0xff]
  %v54 = vld [vmem:[#allocation2 + $0x18] sm:$0xff]
  %v55 = vld [vmem:[#allocation2 + $0x20] sm:$0xff]
  %v56 = vld [vmem:[#allocation2 + $0x28] sm:$0xff]
  %v57 = vld [vmem:[#allocation2 + $0x30] sm:$0xff]
  %v58 = vld [vmem:[#allocation2 + $0x38] sm:$0xff]
  %v59 = vld [vmem:[#allocation2 + $0x40] sm:$0xff]
  %v60 = vld [vmem:[#allocation2 + $0x48] sm:$0xff]
  %v61 = vld [vmem:[#allocation2 + $0x50] sm:$0xff]
  %v62 = vld [vmem:[#allocation2 + $0x58] sm:$0xff]
  %v63 = vld [vmem:[#allocation2 + $0x60] sm:$0xff]
  %v64 = vld [vmem:[#allocation2 + $0x68] sm:$0xff]
  %v65 = vld [vmem:[#allocation2 + $0x70] sm:$0xff]
  %v66 = vld [vmem:[#allocation2 + $0x78] sm:$0xff]
  %v67 = vld [vmem:[#allocation2 + $0x80] sm:$0xff]
  %v68 = vld [vmem:[#allocation2 + $0x88] sm:$0xff]
  %v69 = vld [vmem:[#allocation2 + $0x90] sm:$0xff]
  %v70 = vld [vmem:[#allocation2 + $0x98] sm:$0xff]
  %v71 = vld [vmem:[#allocation2 + $0xa0] sm:$0xff]
  %v72 = vld [vmem:[#allocation2 + $0xa8] sm:$0xff]
  %v73 = vld [vmem:[#allocation2 + $0xb0] sm:$0xff]
  %v74 = vld [vmem:[#allocation2 + $0xb8] sm:$0xff]
  %v75 = vld [vmem:[#allocation2 + $0xc0] sm:$0xff]
  %v76 = vld [vmem:[#allocation2 + $0xc8] sm:$0xff]
  %v77 = vld [vmem:[#allocation2 + $0xd0] sm:$0xff]
  %v78 = vld [vmem:[#allocation2 + $0xd8] sm:$0xff]
  %v79 = vld [vmem:[#allocation2 + $0xe0] sm:$0xff]
  %v80 = vld [vmem:[#allocation2 + $0xe8] sm:$0xff]
  %v81 = vld [vmem:[#allocation2 + $0xf0] sm:$0xff]
  %v82 = vld [vmem:[#allocation2 + $0xf8] sm:$0xff]
  %v83 = vld [vmem:[%s0] sm:$0xff]
  %v84 = vld [vmem:[%s0 + $0x8] sm:$0xff]
  %v85 = vld [vmem:[%s0 + $0x10] sm:$0xff]
  %v86 = vld [vmem:[%s0 + $0x18] sm:$0xff]
  %v87 = vld [vmem:[%s0 + $0x20] sm:$0xff]
  %v88 = vld [vmem:[%s0 + $0x28] sm:$0xff]
  %v89 = vld [vmem:[%s0 + $0x30] sm:$0xff]
  %v90 = vld [vmem:[%s0 + $0x38] sm:$0xff]
  %v91 = vld [vmem:[%s0 + $0x40] sm:$0xff]
  %v92 = vld [vmem:[%s0 + $0x48] sm:$0xff]
  %v93 = vld [vmem:[%s0 + $0x50] sm:$0xff]
  %v94 = vld [vmem:[%s0 + $0x58] sm:$0xff]
  %v95 = vld [vmem:[%s0 + $0x60] sm:$0xff]
  %v96 = vld [vmem:[%s0 + $0x68] sm:$0xff]
  %v97 = vld [vmem:[%s0 + $0x70] sm:$0xff]
  %v98 = vld [vmem:[%s0 + $0x78] sm:$0xff]
  %v99 = vld [vmem:[%s0 + $0x80] sm:$0xff]
  %v100 = vld [vmem:[%s0 + $0x88] sm:$0xff]
  %v101 = vld [vmem:[%s0 + $0x90] sm:$0xff]
  %v102 = vld [vmem:[%s0 + $0x98] sm:$0xff]
  %v103 = vld [vmem:[%s0 + $0xa0] sm:$0xff]
  %v104 = vld [vmem:[%s0 + $0xa8] sm:$0xff]
  %v105 = vld [vmem:[%s0 + $0xb0] sm:$0xff]
  %v106 = vld [vmem:[%s0 + $0xb8] sm:$0xff]
  %v107 = vld [vmem:[%s0 + $0xc0] sm:$0xff]
  %v108 = vld [vmem:[%s0 + $0xc8] sm:$0xff]
  %v109 = vld [vmem:[%s0 + $0xd0] sm:$0xff]
  %v110 = vld [vmem:[%s0 + $0xd8] sm:$0xff]
  %v111 = vld [vmem:[%s0 + $0xe0] sm:$0xff]
  %v112 = vld [vmem:[%s0 + $0xe8] sm:$0xff]
  %v113 = vld [vmem:[%s0 + $0xf0] sm:$0xff]
  %v114 = vld [vmem:[%s0 + $0xf8] sm:$0xff]
  %v115 = vld [vmem:[%s1] sm:$0xf]
  %v116 = vld [vmem:[%s1 + $0x4] sm:$0xf]
  %v117 = vld [vmem:[%s1 + $0x8] sm:$0xf]
  %v118 = vld [vmem:[%s1 + $0xc] sm:$0xf]
  %v119 = vld [vmem:[%s1 + $0x10] sm:$0xf]
  %v120 = vld [vmem:[%s1 + $0x14] sm:$0xf]
  %v121 = vld [vmem:[%s1 + $0x18] sm:$0xf]
  %v122 = vld [vmem:[%s1 + $0x1c] sm:$0xf]
  %v123 = vld [vmem:[%s1 + $0x20] sm:$0xf]
  %v124 = vld [vmem:[%s1 + $0x24] sm:$0xf]
  %v125 = vld [vmem:[%s1 + $0x28] sm:$0xf]
  %v126 = vld [vmem:[%s1 + $0x2c] sm:$0xf]
  %v127 = vld [vmem:[%s1 + $0x30] sm:$0xf]
  %v128 = vld [vmem:[%s1 + $0x34] sm:$0xf]
  %v129 = vld [vmem:[%s1 + $0x38] sm:$0xf]
  %v130 = vld [vmem:[%s1 + $0x3c] sm:$0xf]
  %v131 = vld [vmem:[%s1 + $0x40] sm:$0xf]
  %v132 = vld [vmem:[%s1 + $0x44] sm:$0xf]
  %v133 = vld [vmem:[%s1 + $0x48] sm:$0xf]
  %v134 = vld [vmem:[%s1 + $0x4c] sm:$0xf]
  %v135 = vld [vmem:[%s1 + $0x50] sm:$0xf]
  %v136 = vld [vmem:[%s1 + $0x54] sm:$0xf]
  %v137 = vld [vmem:[%s1 + $0x58] sm:$0xf]
  %v138 = vld [vmem:[%s1 + $0x5c] sm:$0xf]
  %v139 = vld [vmem:[%s1 + $0x60] sm:$0xf]
  %v140 = vld [vmem:[%s1 + $0x64] sm:$0xf]
  %v141 = vld [vmem:[%s1 + $0x68] sm:$0xf]
  %v142 = vld [vmem:[%s1 + $0x6c] sm:$0xf]
  %v143 = vld [vmem:[%s1 + $0x70] sm:$0xf]
  %v144 = vld [vmem:[%s1 + $0x74] sm:$0xf]
  %v145 = vld [vmem:[%s1 + $0x78] sm:$0xf]
  %v146 = vld [vmem:[%s1 + $0x7c] sm:$0xf]
  %v179 = vunpack.c.l.b16 %v83
  %v180 = vunpack.c.h.b16 %v83
  %v181 = vunpack.c.l.b16 %v84
  %v182 = vunpack.c.h.b16 %v84
  %v183 = vunpack.c.l.b16 %v85
  %v184 = vunpack.c.h.b16 %v85
  %v185 = vunpack.c.l.b16 %v86
  %v186 = vunpack.c.h.b16 %v86
  %v187 = vunpack.c.l.b16 %v87
  %v188 = vunpack.c.h.b16 %v87
  %v189 = vunpack.c.l.b16 %v88
  %v190 = vunpack.c.h.b16 %v88
  %v191 = vunpack.c.l.b16 %v89
  %v192 = vunpack.c.h.b16 %v89
  %v193 = vunpack.c.l.b16 %v90
  %v194 = vunpack.c.h.b16 %v90
  %v195 = vunpack.c.l.b16 %v91
  %v196 = vunpack.c.h.b16 %v91
  %v197 = vunpack.c.l.b16 %v92
  %v198 = vunpack.c.h.b16 %v92
  %v199 = vunpack.c.l.b16 %v93
  %v200 = vunpack.c.h.b16 %v93
  %v201 = vunpack.c.l.b16 %v94
  %v202 = vunpack.c.h.b16 %v94
  %v203 = vunpack.c.l.b16 %v95
  %v204 = vunpack.c.h.b16 %v95
  %v205 = vunpack.c.l.b16 %v96
  %v206 = vunpack.c.h.b16 %v96
  %v207 = vunpack.c.l.b16 %v97
  %v208 = vunpack.c.h.b16 %v97
  %v209 = vunpack.c.l.b16 %v98
  %v210 = vunpack.c.h.b16 %v98
  %v211 = vunpack.c.l.b16 %v99
  %v212 = vunpack.c.h.b16 %v99
  %v213 = vunpack.c.l.b16 %v100
  %v214 = vunpack.c.h.b16 %v100
  %v215 = vunpack.c.l.b16 %v101
  %v216 = vunpack.c.h.b16 %v101
  %v217 = vunpack.c.l.b16 %v102
  %v218 = vunpack.c.h.b16 %v102
  %v219 = vunpack.c.l.b16 %v103
  %v220 = vunpack.c.h.b16 %v103
  %v221 = vunpack.c.l.b16 %v104
  %v222 = vunpack.c.h.b16 %v104
  %v223 = vunpack.c.l.b16 %v105
  %v224 = vunpack.c.h.b16 %v105
  %v225 = vunpack.c.l.b16 %v106
  %v226 = vunpack.c.h.b16 %v106
  %v227 = vunpack.c.l.b16 %v107
  %v228 = vunpack.c.h.b16 %v107
  %v229 = vunpack.c.l.b16 %v108
  %v230 = vunpack.c.h.b16 %v108
  %v231 = vunpack.c.l.b16 %v109
  %v232 = vunpack.c.h.b16 %v109
  %v233 = vunpack.c.l.b16 %v110
  %v234 = vunpack.c.h.b16 %v110
  %v235 = vunpack.c.l.b16 %v111
  %v236 = vunpack.c.h.b16 %v111
  %v237 = vunpack.c.l.b16 %v112
  %v238 = vunpack.c.h.b16 %v112
  %v239 = vunpack.c.l.b16 %v113
  %v240 = vunpack.c.h.b16 %v113
  %v241 = vunpack.c.l.b16 %v114
  %v242 = vunpack.c.h.b16 %v114
  %v243 = vpack.c.b16 %v181, %v179
  %v244 = vpack.c.b16 %v182, %v180
  %v245 = vpack.c.b16 %v185, %v183
  %v246 = vpack.c.b16 %v186, %v184
  %v247 = vpack.c.b16 %v189, %v187
  %v248 = vpack.c.b16 %v190, %v188
  %v249 = vpack.c.b16 %v193, %v191
  %v250 = vpack.c.b16 %v194, %v192
  %v251 = vpack.c.b16 %v197, %v195
  %v252 = vpack.c.b16 %v198, %v196
  %v253 = vpack.c.b16 %v201, %v199
  %v254 = vpack.c.b16 %v202, %v200
  %v255 = vpack.c.b16 %v205, %v203
  %v256 = vpack.c.b16 %v206, %v204
  %v257 = vpack.c.b16 %v209, %v207
  %v258 = vpack.c.b16 %v210, %v208
  %v259 = vpack.c.b16 %v213, %v211
  %v260 = vpack.c.b16 %v214, %v212
  %v261 = vpack.c.b16 %v217, %v215
  %v262 = vpack.c.b16 %v218, %v216
  %v263 = vpack.c.b16 %v221, %v219
  %v264 = vpack.c.b16 %v222, %v220
  %v265 = vpack.c.b16 %v225, %v223
  %v266 = vpack.c.b16 %v226, %v224
  %v267 = vpack.c.b16 %v229, %v227
  %v268 = vpack.c.b16 %v230, %v228
  %v269 = vpack.c.b16 %v233, %v231
  %v270 = vpack.c.b16 %v234, %v232
  %v271 = vpack.c.b16 %v237, %v235
  %v272 = vpack.c.b16 %v238, %v236
  %v273 = vpack.c.b16 %v241, %v239
  %v274 = vpack.c.b16 %v242, %v240
  %v339 = vunpack.c.l.b16 %v115
  %v340 = vunpack.c.l.b16 %v116
  %v341 = vunpack.c.l.b16 %v117
  %v342 = vunpack.c.l.b16 %v118
  %v343 = vunpack.c.l.b16 %v119
  %v344 = vunpack.c.l.b16 %v120
  %v345 = vunpack.c.l.b16 %v121
  %v346 = vunpack.c.l.b16 %v122
  %v347 = vunpack.c.l.b16 %v123
  %v348 = vunpack.c.l.b16 %v124
  %v349 = vunpack.c.l.b16 %v125
  %v350 = vunpack.c.l.b16 %v126
  %v351 = vunpack.c.l.b16 %v127
  %v352 = vunpack.c.l.b16 %v128
  %v353 = vunpack.c.l.b16 %v129
  %v354 = vunpack.c.l.b16 %v130
  %v355 = vunpack.c.l.b16 %v131
  %v356 = vunpack.c.l.b16 %v132
  %v357 = vunpack.c.l.b16 %v133
  %v358 = vunpack.c.l.b16 %v134
  %v359 = vunpack.c.l.b16 %v135
  %v360 = vunpack.c.l.b16 %v136
  %v361 = vunpack.c.l.b16 %v137
  %v362 = vunpack.c.l.b16 %v138
  %v363 = vunpack.c.l.b16 %v139
  %v364 = vunpack.c.l.b16 %v140
  %v365 = vunpack.c.l.b16 %v141
  %v366 = vunpack.c.l.b16 %v142
  %v367 = vunpack.c.l.b16 %v143
  %v368 = vunpack.c.l.b16 %v144
  %v369 = vunpack.c.l.b16 %v145
  %v370 = vunpack.c.l.b16 %v146
  %v371 = vpack.c.b16 %v340, %v339
  %v372 = vpack.c.b16 %v342, %v341
  %v373 = vpack.c.b16 %v344, %v343
  %v374 = vpack.c.b16 %v346, %v345
  %v375 = vpack.c.b16 %v348, %v347
  %v376 = vpack.c.b16 %v350, %v349
  %v377 = vpack.c.b16 %v352, %v351
  %v378 = vpack.c.b16 %v354, %v353
  %v379 = vpack.c.b16 %v356, %v355
  %v380 = vpack.c.b16 %v358, %v357
  %v381 = vpack.c.b16 %v360, %v359
  %v382 = vpack.c.b16 %v362, %v361
  %v383 = vpack.c.b16 %v364, %v363
  %v384 = vpack.c.b16 %v366, %v365
  %v385 = vpack.c.b16 %v368, %v367
  %v386 = vpack.c.b16 %v370, %v369
  %403 = vmatprep.subr.bf16.mxu0 0
  %404 = vmatpush1.bf16.msra.mxu0 %v371
  %405 = vmatprep.subr.bf16.mxu0 0
  %406 = vmatpush1.bf16.msra.mxu0 %v372
  %407 = vmatprep.subr.bf16.mxu0 0
  %408 = vmatpush1.bf16.msra.mxu0 %v373
  %409 = vmatprep.subr.bf16.mxu0 0
  %410 = vmatpush1.bf16.msra.mxu0 %v374
  %411 = vmatprep.subr.bf16.mxu0 0
  %412 = vmatpush1.bf16.msra.mxu0 %v375
  %413 = vmatprep.subr.bf16.mxu0 0
  %414 = vmatpush1.bf16.msra.mxu0 %v376
  %415 = vmatprep.subr.bf16.mxu0 0
  %416 = vmatpush1.bf16.msra.mxu0 %v377
  %417 = vmatprep.subr.bf16.mxu0 0
  %418 = vmatpush1.bf16.msra.mxu0 %v378
  %419 = vmatprep.subr.bf16.mxu0 0
  %420 = vmatpush1.bf16.msra.mxu0 %v379
  %421 = vmatprep.subr.bf16.mxu0 0
  %422 = vmatpush1.bf16.msra.mxu0 %v380
  %423 = vmatprep.subr.bf16.mxu0 0
  %424 = vmatpush1.bf16.msra.mxu0 %v381
  %425 = vmatprep.subr.bf16.mxu0 0
  %426 = vmatpush1.bf16.msra.mxu0 %v382
  %427 = vmatprep.subr.bf16.mxu0 0
  %428 = vmatpush1.bf16.msra.mxu0 %v383
  %429 = vmatprep.subr.bf16.mxu0 0
  %430 = vmatpush1.bf16.msra.mxu0 %v384
  %431 = vmatprep.subr.bf16.mxu0 0
  %432 = vmatpush1.bf16.msra.mxu0 %v385
  %433 = vmatprep.subr.bf16.mxu0 0
  %434 = vmatpush1.bf16.msra.mxu0 %v386
  %435 = vmatprep.mubr.bf16.mxu0 %v244
  %436 = vmatmul.mubr.bf16.gmra.mrb[0].mxu0 %v243
  %v437 = vpop.f32.mrb[0].mxu0
  %v438 = vadd.f32 0.0, %v437
  %v439 = vpop.f32.mrb[0].mxu0
  %v440 = vpop.f32.mrb[0].mxu0
  %v441 = vadd.f32 0.0, %v440
  %v442 = vpop.f32.mrb[0].mxu0
  %443 = vmatprep.mubr.bf16.mxu0 %v246
  %444 = vmatmul.mubr.bf16.gmra.mrb[0].mxu0 %v245
  %v445 = vpop.f32.mrb[0].mxu0
  %v446 = vadd.f32 0.0, %v445
  %v447 = vpop.f32.mrb[0].mxu0
  %v448 = vpop.f32.mrb[0].mxu0
  %v449 = vadd.f32 0.0, %v448
  %v450 = vpop.f32.mrb[0].mxu0
  %451 = vmatprep.mubr.bf16.mxu0 %v248
  %452 = vmatmul.mubr.bf16.gmra.mrb[0].mxu0 %v247
  %v453 = vpop.f32.mrb[0].mxu0
  %v454 = vadd.f32 0.0, %v453
  %v455 = vpop.f32.mrb[0].mxu0
  %v456 = vpop.f32.mrb[0].mxu0
  %v457 = vadd.f32 0.0, %v456
  %v458 = vpop.f32.mrb[0].mxu0
  %459 = vmatprep.mubr.bf16.mxu0 %v250
  %460 = vmatmul.mubr.bf16.gmra.mrb[0].mxu0 %v249
  %v461 = vpop.f32.mrb[0].mxu0
  %v462 = vadd.f32 0.0, %v461
  %v463 = vpop.f32.mrb[0].mxu0
  %v464 = vpop.f32.mrb[0].mxu0
  %v465 = vadd.f32 0.0, %v464
  %v466 = vpop.f32.mrb[0].mxu0
  %467 = vmatprep.mubr.bf16.mxu0 %v252
  %468 = vmatmul.mubr.bf16.gmra.mrb[0].mxu0 %v251
  %v469 = vpop.f32.mrb[0].mxu0
  %v470 = vadd.f32 0.0, %v469
  %v471 = vpop.f32.mrb[0].mxu0
  %v472 = vpop.f32.mrb[0].mxu0
  %v473 = vadd.f32 0.0, %v472
  %v474 = vpop.f32.mrb[0].mxu0
  %475 = vmatprep.mubr.bf16.mxu0 %v254
  %476 = vmatmul.mubr.bf16.gmra.mrb[0].mxu0 %v253
  %v477 = vpop.f32.mrb[0].mxu0
  %v478 = vadd.f32 0.0, %v477
  %v479 = vpop.f32.mrb[0].mxu0
  %v480 = vpop.f32.mrb[0].mxu0
  %v481 = vadd.f32 0.0, %v480
  %v482 = vpop.f32.mrb[0].mxu0
  %483 = vmatprep.mubr.bf16.mxu0 %v256
  %484 = vmatmul.mubr.bf16.gmra.mrb[0].mxu0 %v255
  %v485 = vpop.f32.mrb[0].mxu0
  %v486 = vadd.f32 0.0, %v485
  %v487 = vpop.f32.mrb[0].mxu0
  %v488 = vpop.f32.mrb[0].mxu0
  %v489 = vadd.f32 0.0, %v488
  %v490 = vpop.f32.mrb[0].mxu0
  %491 = vmatprep.mubr.bf16.mxu0 %v258
  %492 = vmatmul.mubr.bf16.gmra.mrb[0].mxu0 %v257
  %v493 = vpop.f32.mrb[0].mxu0
  %v494 = vadd.f32 0.0, %v493
  %v495 = vpop.f32.mrb[0].mxu0
  %v496 = vpop.f32.mrb[0].mxu0
  %v497 = vadd.f32 0.0, %v496
  %v498 = vpop.f32.mrb[0].mxu0
  %499 = vmatprep.mubr.bf16.mxu0 %v260
  %500 = vmatmul.mubr.bf16.gmra.mrb[0].mxu0 %v259
  %v501 = vpop.f32.mrb[0].mxu0
  %v502 = vadd.f32 0.0, %v501
  %v503 = vpop.f32.mrb[0].mxu0
  %v504 = vpop.f32.mrb[0].mxu0
  %v505 = vadd.f32 0.0, %v504
  %v506 = vpop.f32.mrb[0].mxu0
  %507 = vmatprep.mubr.bf16.mxu0 %v262
  %508 = vmatmul.mubr.bf16.gmra.mrb[0].mxu0 %v261
  %v509 = vpop.f32.mrb[0].mxu0
  %v510 = vadd.f32 0.0, %v509
  %v511 = vpop.f32.mrb[0].mxu0
  %v512 = vpop.f32.mrb[0].mxu0
  %v513 = vadd.f32 0.0, %v512
  %v514 = vpop.f32.mrb[0].mxu0
  %515 = vmatprep.mubr.bf16.mxu0 %v264
  %516 = vmatmul.mubr.bf16.gmra.mrb[0].mxu0 %v263
  %v517 = vpop.f32.mrb[0].mxu0
  %v518 = vadd.f32 0.0, %v517
  %v519 = vpop.f32.mrb[0].mxu0
  %v520 = vpop.f32.mrb[0].mxu0
  %v521 = vadd.f32 0.0, %v520
  %v522 = vpop.f32.mrb[0].mxu0
  %523 = vmatprep.mubr.bf16.mxu0 %v266
  %524 = vmatmul.mubr.bf16.gmra.mrb[0].mxu0 %v265
  %v525 = vpop.f32.mrb[0].mxu0
  %v526 = vadd.f32 0.0, %v525
  %v527 = vpop.f32.mrb[0].mxu0
  %v528 = vpop.f32.mrb[0].mxu0
  %v529 = vadd.f32 0.0, %v528
  %v530 = vpop.f32.mrb[0].mxu0
  %531 = vmatprep.mubr.bf16.mxu0 %v268
  %532 = vmatmul.mubr.bf16.gmra.mrb[0].mxu0 %v267
  %v533 = vpop.f32.mrb[0].mxu0
  %v534 = vadd.f32 0.0, %v533
  %v535 = vpop.f32.mrb[0].mxu0
  %v536 = vpop.f32.mrb[0].mxu0
  %v537 = vadd.f32 0.0, %v536
  %v538 = vpop.f32.mrb[0].mxu0
  %539 = vmatprep.mubr.bf16.mxu0 %v270
  %540 = vmatmul.mubr.bf16.gmra.mrb[0].mxu0 %v269
  %v541 = vpop.f32.mrb[0].mxu0
  %v542 = vadd.f32 0.0, %v541
  %v543 = vpop.f32.mrb[0].mxu0
  %v544 = vpop.f32.mrb[0].mxu0
  %v545 = vadd.f32 0.0, %v544
  %v546 = vpop.f32.mrb[0].mxu0
  %547 = vmatprep.mubr.bf16.mxu0 %v272
  %548 = vmatmul.mubr.bf16.gmra.mrb[0].mxu0 %v271
  %v549 = vpop.f32.mrb[0].mxu0
  %v550 = vadd.f32 0.0, %v549
  %v551 = vpop.f32.mrb[0].mxu0
  %v552 = vpop.f32.mrb[0].mxu0
  %v553 = vadd.f32 0.0, %v552
  %v554 = vpop.f32.mrb[0].mxu0
  %555 = vmatprep.mubr.bf16.mxu0 %v274
  %556 = vmatmul.mubr.bf16.gmra.mrb[0].mxu0 %v273
  %v557 = vpop.f32.mrb[0].mxu0
  %v558 = vadd.f32 0.0, %v557
  %v559 = vpop.f32.mrb[0].mxu0
  %v560 = vpop.f32.mrb[0].mxu0
  %v561 = vadd.f32 0.0, %v560
  %v562 = vpop.f32.mrb[0].mxu0
  %563 = vdwg.mxu0
  %v564 = vadd.f32 %v51, %v438
  %v565 = vadd.f32 %v52, %v441
  %v566 = vadd.f32 %v53, %v446
  %v567 = vadd.f32 %v54, %v449
  %v568 = vadd.f32 %v55, %v454
  %v569 = vadd.f32 %v56, %v457
  %v570 = vadd.f32 %v57, %v462
  %v571 = vadd.f32 %v58, %v465
  %v572 = vadd.f32 %v59, %v470
  %v573 = vadd.f32 %v60, %v473
  %v574 = vadd.f32 %v61, %v478
  %v575 = vadd.f32 %v62, %v481
  %v576 = vadd.f32 %v63, %v486
  %v577 = vadd.f32 %v64, %v489
  %v578 = vadd.f32 %v65, %v494
  %v579 = vadd.f32 %v66, %v497
  %v580 = vadd.f32 %v67, %v502
  %v581 = vadd.f32 %v68, %v505
  %v582 = vadd.f32 %v69, %v510
  %v583 = vadd.f32 %v70, %v513
  %v584 = vadd.f32 %v71, %v518
  %v585 = vadd.f32 %v72, %v521
  %v586 = vadd.f32 %v73, %v526
  %v587 = vadd.f32 %v74, %v529
  %v588 = vadd.f32 %v75, %v534
  %v589 = vadd.f32 %v76, %v537
  %v590 = vadd.f32 %v77, %v542
  %v591 = vadd.f32 %v78, %v545
  %v592 = vadd.f32 %v79, %v550
  %v593 = vadd.f32 %v80, %v553
  %v594 = vadd.f32 %v81, %v558
  %v595 = vadd.f32 %v82, %v561
  %596 = vst [vmem:[#allocation2] sm:$0xff] %v564
  %597 = vst [vmem:[#allocation2 + $0x8] sm:$0xff] %v565
  %598 = vst [vmem:[#allocation2 + $0x10] sm:$0xff] %v566
  %599 = vst [vmem:[#allocation2 + $0x18] sm:$0xff] %v567
  %600 = vst [vmem:[#allocation2 + $0x20] sm:$0xff] %v568
  %601 = vst [vmem:[#allocation2 + $0x28] sm:$0xff] %v569
  %602 = vst [vmem:[#allocation2 + $0x30] sm:$0xff] %v570
  %603 = vst [vmem:[#allocation2 + $0x38] sm:$0xff] %v571
  %604 = vst [vmem:[#allocation2 + $0x40] sm:$0xff] %v572
  %605 = vst [vmem:[#allocation2 + $0x48] sm:$0xff] %v573
  %606 = vst [vmem:[#allocation2 + $0x50] sm:$0xff] %v574
  %607 = vst [vmem:[#allocation2 + $0x58] sm:$0xff] %v575
  %608 = vst [vmem:[#allocation2 + $0x60] sm:$0xff] %v576
  %609 = vst [vmem:[#allocation2 + $0x68] sm:$0xff] %v577
  %610 = vst [vmem:[#allocation2 + $0x70] sm:$0xff] %v578
  %611 = vst [vmem:[#allocation2 + $0x78] sm:$0xff] %v579
  %612 = vst [vmem:[#allocation2 + $0x80] sm:$0xff] %v580
  %613 = vst [vmem:[#allocation2 + $0x88] sm:$0xff] %v581
  %614 = vst [vmem:[#allocation2 + $0x90] sm:$0xff] %v582
  %615 = vst [vmem:[#allocation2 + $0x98] sm:$0xff] %v583
  %616 = vst [vmem:[#allocation2 + $0xa0] sm:$0xff] %v584
  %617 = vst [vmem:[#allocation2 + $0xa8] sm:$0xff] %v585
  %618 = vst [vmem:[#allocation2 + $0xb0] sm:$0xff] %v586
  %619 = vst [vmem:[#allocation2 + $0xb8] sm:$0xff] %v587
  %620 = vst [vmem:[#allocation2 + $0xc0] sm:$0xff] %v588
  %621 = vst [vmem:[#allocation2 + $0xc8] sm:$0xff] %v589
  %622 = vst [vmem:[#allocation2 + $0xd0] sm:$0xff] %v590
  %623 = vst [vmem:[#allocation2 + $0xd8] sm:$0xff] %v591
  %624 = vst [vmem:[#allocation2 + $0xe0] sm:$0xff] %v592
  %625 = vst [vmem:[#allocation2 + $0xe8] sm:$0xff] %v593
  %626 = vst [vmem:[#allocation2 + $0xf0] sm:$0xff] %v594
  %627 = vst [vmem:[#allocation2 + $0xf8] sm:$0xff] %v595
  // Predicated region
  $region18: #{_lambda_.11} parent=0 // pred_check
    %p628 = pneg %p15
  $region19: #{_lambda_.11} parent=0 // pred_check_branch
    %630 = sbr.rel (%p628) target = $region21
  $region20: #{_lambda_.11} parent=0 // pred_region
    %v631 = vld [vmem:[#allocation2] sm:$0xff]
    %v632 = vld [vmem:[#allocation2 + $0x8] sm:$0xff]
    %v633 = vld [vmem:[#allocation2 + $0x10] sm:$0xff]
    %v634 = vld [vmem:[#allocation2 + $0x18] sm:$0xff]
    %v635 = vld [vmem:[#allocation2 + $0x20] sm:$0xff]
    %v636 = vld [vmem:[#allocation2 + $0x28] sm:$0xff]
    %v637 = vld [vmem:[#allocation2 + $0x30] sm:$0xff]
    %v638 = vld [vmem:[#allocation2 + $0x38] sm:$0xff]
    %v639 = vld [vmem:[#allocation2 + $0x40] sm:$0xff]
    %v640 = vld [vmem:[#allocation2 + $0x48] sm:$0xff]
    %v641 = vld [vmem:[#allocation2 + $0x50] sm:$0xff]
    %v642 = vld [vmem:[#allocation2 + $0x58] sm:$0xff]
    %v643 = vld [vmem:[#allocation2 + $0x60] sm:$0xff]
    %v644 = vld [vmem:[#allocation2 + $0x68] sm:$0xff]
    %v645 = vld [vmem:[#allocation2 + $0x70] sm:$0xff]
    %v646 = vld [vmem:[#allocation2 + $0x78] sm:$0xff]
    %v647 = vld [vmem:[#allocation2 + $0x80] sm:$0xff]
    %v648 = vld [vmem:[#allocation2 + $0x88] sm:$0xff]
    %v649 = vld [vmem:[#allocation2 + $0x90] sm:$0xff]
    %v650 = vld [vmem:[#allocation2 + $0x98] sm:$0xff]
    %v651 = vld [vmem:[#allocation2 + $0xa0] sm:$0xff]
    %v652 = vld [vmem:[#allocation2 + $0xa8] sm:$0xff]
    %v653 = vld [vmem:[#allocation2 + $0xb0] sm:$0xff]
    %v654 = vld [vmem:[#allocation2 + $0xb8] sm:$0xff]
    %v655 = vld [vmem:[#allocation2 + $0xc0] sm:$0xff]
    %v656 = vld [vmem:[#allocation2 + $0xc8] sm:$0xff]
    %v657 = vld [vmem:[#allocation2 + $0xd0] sm:$0xff]
    %v658 = vld [vmem:[#allocation2 + $0xd8] sm:$0xff]
    %v659 = vld [vmem:[#allocation2 + $0xe0] sm:$0xff]
    %v660 = vld [vmem:[#allocation2 + $0xe8] sm:$0xff]
    %v661 = vld [vmem:[#allocation2 + $0xf0] sm:$0xff]
    %v662 = vld [vmem:[#allocation2 + $0xf8] sm:$0xff]
    %v663 = vld [vmem:[%s2] sm:$0x1]
    %v665 = vlaneseq
    %v666 = vshrl.u32 %v665, 7
    %v667 = vsub.s32 0, %v666
    %v668 = vrot.slane %v663, %v667
    %v670 = vadd.f32 %v631, %v668
    %v671 = vadd.f32 %v632, %v668
    %v672 = vadd.f32 %v633, %v668
    %v673 = vadd.f32 %v634, %v668
    %v674 = vadd.f32 %v635, %v668
    %v675 = vadd.f32 %v636, %v668
    %v676 = vadd.f32 %v637, %v668
    %v677 = vadd.f32 %v638, %v668
    %v678 = vadd.f32 %v639, %v668
    %v679 = vadd.f32 %v640, %v668
    %v680 = vadd.f32 %v641, %v668
    %v681 = vadd.f32 %v642, %v668
    %v682 = vadd.f32 %v643, %v668
    %v683 = vadd.f32 %v644, %v668
    %v684 = vadd.f32 %v645, %v668
    %v685 = vadd.f32 %v646, %v668
    %v686 = vadd.f32 %v647, %v668
    %v687 = vadd.f32 %v648, %v668
    %v688 = vadd.f32 %v649, %v668
    %v689 = vadd.f32 %v650, %v668
    %v690 = vadd.f32 %v651, %v668
    %v691 = vadd.f32 %v652, %v668
    %v692 = vadd.f32 %v653, %v668
    %v693 = vadd.f32 %v654, %v668
    %v694 = vadd.f32 %v655, %v668
    %v695 = vadd.f32 %v656, %v668
    %v696 = vadd.f32 %v657, %v668
    %v697 = vadd.f32 %v658, %v668
    %v698 = vadd.f32 %v659, %v668
    %v699 = vadd.f32 %v660, %v668
    %v700 = vadd.f32 %v661, %v668
    %v701 = vadd.f32 %v662, %v668
    %702 = vst [vmem:[%s3] sm:$0xff] %v670
    %703 = vst [vmem:[%s3 + $0x8] sm:$0xff] %v671
    %704 = vst [vmem:[%s3 + $0x10] sm:$0xff] %v672
    %705 = vst [vmem:[%s3 + $0x18] sm:$0xff] %v673
    %706 = vst [vmem:[%s3 + $0x20] sm:$0xff] %v674
    %707 = vst [vmem:[%s3 + $0x28] sm:$0xff] %v675
    %708 = vst [vmem:[%s3 + $0x30] sm:$0xff] %v676
    %709 = vst [vmem:[%s3 + $0x38] sm:$0xff] %v677
    %710 = vst [vmem:[%s3 + $0x40] sm:$0xff] %v678
    %711 = vst [vmem:[%s3 + $0x48] sm:$0xff] %v679
    %712 = vst [vmem:[%s3 + $0x50] sm:$0xff] %v680
    %713 = vst [vmem:[%s3 + $0x58] sm:$0xff] %v681
    %714 = vst [vmem:[%s3 + $0x60] sm:$0xff] %v682
    %715 = vst [vmem:[%s3 + $0x68] sm:$0xff] %v683
    %716 = vst [vmem:[%s3 + $0x70] sm:$0xff] %v684
    %717 = vst [vmem:[%s3 + $0x78] sm:$0xff] %v685
    %718 = vst [vmem:[%s3 + $0x80] sm:$0xff] %v686
    %719 = vst [vmem:[%s3 + $0x88] sm:$0xff] %v687
    %720 = vst [vmem:[%s3 + $0x90] sm:$0xff] %v688
    %721 = vst [vmem:[%s3 + $0x98] sm:$0xff] %v689
    %722 = vst [vmem:[%s3 + $0xa0] sm:$0xff] %v690
    %723 = vst [vmem:[%s3 + $0xa8] sm:$0xff] %v691
    %724 = vst [vmem:[%s3 + $0xb0] sm:$0xff] %v692
    %725 = vst [vmem:[%s3 + $0xb8] sm:$0xff] %v693
    %726 = vst [vmem:[%s3 + $0xc0] sm:$0xff] %v694
    %727 = vst [vmem:[%s3 + $0xc8] sm:$0xff] %v695
    %728 = vst [vmem:[%s3 + $0xd0] sm:$0xff] %v696
    %729 = vst [vmem:[%s3 + $0xd8] sm:$0xff] %v697
    %730 = vst [vmem:[%s3 + $0xe0] sm:$0xff] %v698
    %731 = vst [vmem:[%s3 + $0xe8] sm:$0xff] %v699
    %732 = vst [vmem:[%s3 + $0xf0] sm:$0xff] %v700
    %733 = vst [vmem:[%s3 + $0xf8] sm:$0xff] %v701
  $region21: #{_lambda_.11} parent=0 // pred_fallthru
    _
  // Predicated region
  $region22: #{_lambda_.11} parent=0 // pred_check
    _
  $region23: #{_lambda_.11} parent=0 // pred_check_branch
    %735 = sbr.rel (0) target = $region25
  $region24: #{_lambda_.11} parent=0 // pred_region
    _
  $region25: #{_lambda_.11} parent=0 // pred_fallthru
    _
  // Predicated region
  $region26: #{_lambda_.11} parent=0 // pred_check
    _
  $region27: #{_lambda_.11} parent=0 // pred_check_branch
    %737 = sbr.rel (0) target = $region29
  $region28: #{_lambda_.11} parent=0 // pred_region
    _
  $region29: #{_lambda_.11} parent=0 // pred_fallthru
    _

// kernel: _lambda_.13
$region0: #{_lambda_.13}
  #allocation0 [shape = 'u32[]', space=smem, size = 0x4, offset = 0x4, fixed_abs, tag = 'smem constant byte address 0x4 - core index']
  #allocation1 [shape = 'u32[144,128]{1,0:T(1,128)}', space=vmem, size = 0x12000, scoped, tag = 'internal scratch']
  #allocation2 [shape = 'f32[256,128]{1,0:T(8,128)}', space=vmem, size = 0x20000, scoped, tag = 'scratch operand']
  %s0 = inlined_call_operand.vmem [shape: bf16[256,512], index: 0, kind: input, shape index: {}]
  %s1 = inlined_call_operand.vmem [shape: bf16[512,128], index: 1, kind: input, shape index: {}]
  %s2 = inlined_call_operand.vmem [shape: f32[1,128], index: 2, kind: input, shape index: {}]
  %s3 = inlined_call_operand.vmem [shape: f32[256,128], index: 3, kind: output, shape index: {}]
  %s4 = sld [smem:[#allocation0]]
  $region30: #{_lambda_.13} parent=0
    _
  %s6 = ssub.s32 1, %s4
  %s7 = scalar_select 0, %s6, %s4
  // Predicated region
  $region2: #{_lambda_.13} parent=0 // pred_check
    _
  $region3: #{_lambda_.13} parent=0 // pred_check_branch
    %9 = sbr.rel (0) target = $region5
  $region4: #{_lambda_.13} parent=0 // pred_region
    _
  $region5: #{_lambda_.13} parent=0 // pred_fallthru
    _
  // Predicated region
  $region6: #{_lambda_.13} parent=0 // pred_check
    _
  $region7: #{_lambda_.13} parent=0 // pred_check_branch
    %11 = sbr.rel (0) target = $region9
  $region8: #{_lambda_.13} parent=0 // pred_region
    _
  $region9: #{_lambda_.13} parent=0 // pred_fallthru
    _
  // Predicated region
  $region10: #{_lambda_.13} parent=0 // pred_check
    _
  $region11: #{_lambda_.13} parent=0 // pred_check_branch
    %13 = sbr.rel (0) target = $region13
  $region12: #{_lambda_.13} parent=0 // pred_region
    _
  $region13: #{_lambda_.13} parent=0 // pred_fallthru
    _
  %p15 = scmp.eq.s32.totalorder 0, 0
  // Predicated region
  $region14: #{_lambda_.13} parent=0 // pred_check
    %p16 = pneg %p15
  $region15: #{_lambda_.13} parent=0 // pred_check_branch
    %18 = sbr.rel (%p16) target = $region17
  $region16: #{_lambda_.13} parent=0 // pred_region
    %19 = vst [vmem:[#allocation2] sm:$0xff] 0.0
    %20 = vst [vmem:[#allocation2 + $0x8] sm:$0xff] 0.0
    %21 = vst [vmem:[#allocation2 + $0x10] sm:$0xff] 0.0
    %22 = vst [vmem:[#allocation2 + $0x18] sm:$0xff] 0.0
    %23 = vst [vmem:[#allocation2 + $0x20] sm:$0xff] 0.0
    %24 = vst [vmem:[#allocation2 + $0x28] sm:$0xff] 0.0
    %25 = vst [vmem:[#allocation2 + $0x30] sm:$0xff] 0.0
    %26 = vst [vmem:[#allocation2 + $0x38] sm:$0xff] 0.0
    %27 = vst [vmem:[#allocation2 + $0x40] sm:$0xff] 0.0
    %28 = vst [vmem:[#allocation2 + $0x48] sm:$0xff] 0.0
    %29 = vst [vmem:[#allocation2 + $0x50] sm:$0xff] 0.0
    %30 = vst [vmem:[#allocation2 + $0x58] sm:$0xff] 0.0
    %31 = vst [vmem:[#allocation2 + $0x60] sm:$0xff] 0.0
    %32 = vst [vmem:[#allocation2 + $0x68] sm:$0xff] 0.0
    %33 = vst [vmem:[#allocation2 + $0x70] sm:$0xff] 0.0
    %34 = vst [vmem:[#allocation2 + $0x78] sm:$0xff] 0.0
    %35 = vst [vmem:[#allocation2 + $0x80] sm:$0xff] 0.0
    %36 = vst [vmem:[#allocation2 + $0x88] sm:$0xff] 0.0
    %37 = vst [vmem:[#allocation2 + $0x90] sm:$0xff] 0.0
    %38 = vst [vmem:[#allocation2 + $0x98] sm:$0xff] 0.0
    %39 = vst [vmem:[#allocation2 + $0xa0] sm:$0xff] 0.0
    %40 = vst [vmem:[#allocation2 + $0xa8] sm:$0xff] 0.0
    %41 = vst [vmem:[#allocation2 + $0xb0] sm:$0xff] 0.0
    %42 = vst [vmem:[#allocation2 + $0xb8] sm:$0xff] 0.0
    %43 = vst [vmem:[#allocation2 + $0xc0] sm:$0xff] 0.0
    %44 = vst [vmem:[#allocation2 + $0xc8] sm:$0xff] 0.0
    %45 = vst [vmem:[#allocation2 + $0xd0] sm:$0xff] 0.0
    %46 = vst [vmem:[#allocation2 + $0xd8] sm:$0xff] 0.0
    %47 = vst [vmem:[#allocation2 + $0xe0] sm:$0xff] 0.0
    %48 = vst [vmem:[#allocation2 + $0xe8] sm:$0xff] 0.0
    %49 = vst [vmem:[#allocation2 + $0xf0] sm:$0xff] 0.0
    %50 = vst [vmem:[#allocation2 + $0xf8] sm:$0xff] 0.0
  $region17: #{_lambda_.13} parent=0 // pred_fallthru
    _
  %v51 = vld [vmem:[#allocation2] sm:$0xff]
  %v52 = vld [vmem:[#allocation2 + $0x8] sm:$0xff]
  %v53 = vld [vmem:[#allocation2 + $0x10] sm:$0xff]
  %v54 = vld [vmem:[#allocation2 + $0x18] sm:$0xff]
  %v55 = vld [vmem:[#allocation2 + $0x20] sm:$0xff]
  %v56 = vld [vmem:[#allocation2 + $0x28] sm:$0xff]
  %v57 = vld [vmem:[#allocation2 + $0x30] sm:$0xff]
  %v58 = vld [vmem:[#allocation2 + $0x38] sm:$0xff]
  %v59 = vld [vmem:[#allocation2 + $0x40] sm:$0xff]
  %v60 = vld [vmem:[#allocation2 + $0x48] sm:$0xff]
  %v61 = vld [vmem:[#allocation2 + $0x50] sm:$0xff]
  %v62 = vld [vmem:[#allocation2 + $0x58] sm:$0xff]
  %v63 = vld [vmem:[#allocation2 + $0x60] sm:$0xff]
  %v64 = vld [vmem:[#allocation2 + $0x68] sm:$0xff]
  %v65 = vld [vmem:[#allocation2 + $0x70] sm:$0xff]
  %v66 = vld [vmem:[#allocation2 + $0x78] sm:$0xff]
  %v67 = vld [vmem:[#allocation2 + $0x80] sm:$0xff]
  %v68 = vld [vmem:[#allocation2 + $0x88] sm:$0xff]
  %v69 = vld [vmem:[#allocation2 + $0x90] sm:$0xff]
  %v70 = vld [vmem:[#allocation2 + $0x98] sm:$0xff]
  %v71 = vld [vmem:[#allocation2 + $0xa0] sm:$0xff]
  %v72 = vld [vmem:[#allocation2 + $0xa8] sm:$0xff]
  %v73 = vld [vmem:[#allocation2 + $0xb0] sm:$0xff]
  %v74 = vld [vmem:[#allocation2 + $0xb8] sm:$0xff]
  %v75 = vld [vmem:[#allocation2 + $0xc0] sm:$0xff]
  %v76 = vld [vmem:[#allocation2 + $0xc8] sm:$0xff]
  %v77 = vld [vmem:[#allocation2 + $0xd0] sm:$0xff]
  %v78 = vld [vmem:[#allocation2 + $0xd8] sm:$0xff]
  %v79 = vld [vmem:[#allocation2 + $0xe0] sm:$0xff]
  %v80 = vld [vmem:[#allocation2 + $0xe8] sm:$0xff]
  %v81 = vld [vmem:[#allocation2 + $0xf0] sm:$0xff]
  %v82 = vld [vmem:[#allocation2 + $0xf8] sm:$0xff]
  %v83 = vld [vmem:[%s0] sm:$0xff]
  %v84 = vld [vmem:[%s0 + $0x8] sm:$0xff]
  %v85 = vld [vmem:[%s0 + $0x10] sm:$0xff]
  %v86 = vld [vmem:[%s0 + $0x18] sm:$0xff]
  %v87 = vld [vmem:[%s0 + $0x20] sm:$0xff]
  %v88 = vld [vmem:[%s0 + $0x28] sm:$0xff]
  %v89 = vld [vmem:[%s0 + $0x30] sm:$0xff]
  %v90 = vld [vmem:[%s0 + $0x38] sm:$0xff]
  %v91 = vld [vmem:[%s0 + $0x40] sm:$0xff]
  %v92 = vld [vmem:[%s0 + $0x48] sm:$0xff]
  %v93 = vld [vmem:[%s0 + $0x50] sm:$0xff]
  %v94 = vld [vmem:[%s0 + $0x58] sm:$0xff]
  %v95 = vld [vmem:[%s0 + $0x60] sm:$0xff]
  %v96 = vld [vmem:[%s0 + $0x68] sm:$0xff]
  %v97 = vld [vmem:[%s0 + $0x70] sm:$0xff]
  %v98 = vld [vmem:[%s0 + $0x78] sm:$0xff]
  %v99 = vld [vmem:[%s0 + $0x80] sm:$0xff]
  %v100 = vld [vmem:[%s0 + $0x88] sm:$0xff]
  %v101 = vld [vmem:[%s0 + $0x90] sm:$0xff]
  %v102 = vld [vmem:[%s0 + $0x98] sm:$0xff]
  %v103 = vld [vmem:[%s0 + $0xa0] sm:$0xff]
  %v104 = vld [vmem:[%s0 + $0xa8] sm:$0xff]
  %v105 = vld [vmem:[%s0 + $0xb0] sm:$0xff]
  %v106 = vld [vmem:[%s0 + $0xb8] sm:$0xff]
  %v107 = vld [vmem:[%s0 + $0xc0] sm:$0xff]
  %v108 = vld [vmem:[%s0 + $0xc8] sm:$0xff]
  %v109 = vld [vmem:[%s0 + $0xd0] sm:$0xff]
  %v110 = vld [vmem:[%s0 + $0xd8] sm:$0xff]
  %v111 = vld [vmem:[%s0 + $0xe0] sm:$0xff]
  %v112 = vld [vmem:[%s0 + $0xe8] sm:$0xff]
  %v113 = vld [vmem:[%s0 + $0xf0] sm:$0xff]
  %v114 = vld [vmem:[%s0 + $0xf8] sm:$0xff]
  %v115 = vld [vmem:[%s0 + $0x100] sm:$0xff]
  %v116 = vld [vmem:[%s0 + $0x108] sm:$0xff]
  %v117 = vld [vmem:[%s0 + $0x110] sm:$0xff]
  %v118 = vld [vmem:[%s0 + $0x118] sm:$0xff]
  %v119 = vld [vmem:[%s0 + $0x120] sm:$0xff]
  %v120 = vld [vmem:[%s0 + $0x128] sm:$0xff]
  %v121 = vld [vmem:[%s0 + $0x130] sm:$0xff]
  %v122 = vld [vmem:[%s0 + $0x138] sm:$0xff]
  %v123 = vld [vmem:[%s0 + $0x140] sm:$0xff]
  %v124 = vld [vmem:[%s0 + $0x148] sm:$0xff]
  %v125 = vld [vmem:[%s0 + $0x150] sm:$0xff]
  %v126 = vld [vmem:[%s0 + $0x158] sm:$0xff]
  %v127 = vld [vmem:[%s0 + $0x160] sm:$0xff]
  %v128 = vld [vmem:[%s0 + $0x168] sm:$0xff]
  %v129 = vld [vmem:[%s0 + $0x170] sm:$0xff]
  %v130 = vld [vmem:[%s0 + $0x178] sm:$0xff]
  %v131 = vld [vmem:[%s0 + $0x180] sm:$0xff]
  %v132 = vld [vmem:[%s0 + $0x188] sm:$0xff]
  %v133 = vld [vmem:[%s0 + $0x190] sm:$0xff]
  %v134 = vld [vmem:[%s0 + $0x198] sm:$0xff]
  %v135 = vld [vmem:[%s0 + $0x1a0] sm:$0xff]
  %v136 = vld [vmem:[%s0 + $0x1a8] sm:$0xff]
  %v137 = vld [vmem:[%s0 + $0x1b0] sm:$0xff]
  %v138 = vld [vmem:[%s0 + $0x1b8] sm:$0xff]
  %v139 = vld [vmem:[%s0 + $0x1c0] sm:$0xff]
  %v140 = vld [vmem:[%s0 + $0x1c8] sm:$0xff]
  %v141 = vld [vmem:[%s0 + $0x1d0] sm:$0xff]
  %v142 = vld [vmem:[%s0 + $0x1d8] sm:$0xff]
  %v143 = vld [vmem:[%s0 + $0x1e0] sm:$0xff]
  %v144 = vld [vmem:[%s0 + $0x1e8] sm:$0xff]
  %v145 = vld [vmem:[%s0 + $0x1f0] sm:$0xff]
  %v146 = vld [vmem:[%s0 + $0x1f8] sm:$0xff]
  %v147 = vld [vmem:[%s1] sm:$0xf]
  %v148 = vld [vmem:[%s1 + $0x4] sm:$0xf]
  %v149 = vld [vmem:[%s1 + $0x8] sm:$0xf]
  %v150 = vld [vmem:[%s1 + $0xc] sm:$0xf]
  %v151 = vld [vmem:[%s1 + $0x10] sm:$0xf]
  %v152 = vld [vmem:[%s1 + $0x14] sm:$0xf]
  %v153 = vld [vmem:[%s1 + $0x18] sm:$0xf]
  %v154 = vld [vmem:[%s1 + $0x1c] sm:$0xf]
  %v155 = vld [vmem:[%s1 + $0x20] sm:$0xf]
  %v156 = vld [vmem:[%s1 + $0x24] sm:$0xf]
  %v157 = vld [vmem:[%s1 + $0x28] sm:$0xf]
  %v158 = vld [vmem:[%s1 + $0x2c] sm:$0xf]
  %v159 = vld [vmem:[%s1 + $0x30] sm:$0xf]
  %v160 = vld [vmem:[%s1 + $0x34] sm:$0xf]
  %v161 = vld [vmem:[%s1 + $0x38] sm:$0xf]
  %v162 = vld [vmem:[%s1 + $0x3c] sm:$0xf]
  %v163 = vld [vmem:[%s1 + $0x40] sm:$0xf]
  %v164 = vld [vmem:[%s1 + $0x44] sm:$0xf]
  %v165 = vld [vmem:[%s1 + $0x48] sm:$0xf]
  %v166 = vld [vmem:[%s1 + $0x4c] sm:$0xf]
  %v167 = vld [vmem:[%s1 + $0x50] sm:$0xf]
  %v168 = vld [vmem:[%s1 + $0x54] sm:$0xf]
  %v169 = vld [vmem:[%s1 + $0x58] sm:$0xf]
  %v170 = vld [vmem:[%s1 + $0x5c] sm:$0xf]
  %v171 = vld [vmem:[%s1 + $0x60] sm:$0xf]
  %v172 = vld [vmem:[%s1 + $0x64] sm:$0xf]
  %v173 = vld [vmem:[%s1 + $0x68] sm:$0xf]
  %v174 = vld [vmem:[%s1 + $0x6c] sm:$0xf]
  %v175 = vld [vmem:[%s1 + $0x70] sm:$0xf]
  %v176 = vld [vmem:[%s1 + $0x74] sm:$0xf]
  %v177 = vld [vmem:[%s1 + $0x78] sm:$0xf]
  %v178 = vld [vmem:[%s1 + $0x7c] sm:$0xf]
  %v179 = vld [vmem:[%s1 + $0x80] sm:$0xf]
  %v180 = vld [vmem:[%s1 + $0x84] sm:$0xf]
  %v181 = vld [vmem:[%s1 + $0x88] sm:$0xf]
  %v182 = vld [vmem:[%s1 + $0x8c] sm:$0xf]
  %v183 = vld [vmem:[%s1 + $0x90] sm:$0xf]
  %v184 = vld [vmem:[%s1 + $0x94] sm:$0xf]
  %v185 = vld [vmem:[%s1 + $0x98] sm:$0xf]
  %v186 = vld [vmem:[%s1 + $0x9c] sm:$0xf]
  %v187 = vld [vmem:[%s1 + $0xa0] sm:$0xf]
  %v188 = vld [vmem:[%s1 + $0xa4] sm:$0xf]
  %v189 = vld [vmem:[%s1 + $0xa8] sm:$0xf]
  %v190 = vld [vmem:[%s1 + $0xac] sm:$0xf]
  %v191 = vld [vmem:[%s1 + $0xb0] sm:$0xf]
  %v192 = vld [vmem:[%s1 + $0xb4] sm:$0xf]
  %v193 = vld [vmem:[%s1 + $0xb8] sm:$0xf]
  %v194 = vld [vmem:[%s1 + $0xbc] sm:$0xf]
  %v195 = vld [vmem:[%s1 + $0xc0] sm:$0xf]
  %v196 = vld [vmem:[%s1 + $0xc4] sm:$0xf]
  %v197 = vld [vmem:[%s1 + $0xc8] sm:$0xf]
  %v198 = vld [vmem:[%s1 + $0xcc] sm:$0xf]
  %v199 = vld [vmem:[%s1 + $0xd0] sm:$0xf]
  %v200 = vld [vmem:[%s1 + $0xd4] sm:$0xf]
  %v201 = vld [vmem:[%s1 + $0xd8] sm:$0xf]
  %v202 = vld [vmem:[%s1 + $0xdc] sm:$0xf]
  %v203 = vld [vmem:[%s1 + $0xe0] sm:$0xf]
  %v204 = vld [vmem:[%s1 + $0xe4] sm:$0xf]
  %v205 = vld [vmem:[%s1 + $0xe8] sm:$0xf]
  %v206 = vld [vmem:[%s1 + $0xec] sm:$0xf]
  %v207 = vld [vmem:[%s1 + $0xf0] sm:$0xf]
  %v208 = vld [vmem:[%s1 + $0xf4] sm:$0xf]
  %v209 = vld [vmem:[%s1 + $0xf8] sm:$0xf]
  %v210 = vld [vmem:[%s1 + $0xfc] sm:$0xf]
  %v275 = vunpack.c.l.b16 %v83
  %v276 = vunpack.c.h.b16 %v83
  %v277 = vunpack.c.l.b16 %v84
  %v278 = vunpack.c.h.b16 %v84
  %v279 = vunpack.c.l.b16 %v85
  %v280 = vunpack.c.h.b16 %v85
  %v281 = vunpack.c.l.b16 %v86
  %v282 = vunpack.c.h.b16 %v86
  %v283 = vunpack.c.l.b16 %v87
  %v284 = vunpack.c.h.b16 %v87
  %v285 = vunpack.c.l.b16 %v88
  %v286 = vunpack.c.h.b16 %v88
  %v287 = vunpack.c.l.b16 %v89
  %v288 = vunpack.c.h.b16 %v89
  %v289 = vunpack.c.l.b16 %v90
  %v290 = vunpack.c.h.b16 %v90
  %v291 = vunpack.c.l.b16 %v91
  %v292 = vunpack.c.h.b16 %v91
  %v293 = vunpack.c.l.b16 %v92
  %v294 = vunpack.c.h.b16 %v92
  %v295 = vunpack.c.l.b16 %v93
  %v296 = vunpack.c.h.b16 %v93
  %v297 = vunpack.c.l.b16 %v94
  %v298 = vunpack.c.h.b16 %v94
  %v299 = vunpack.c.l.b16 %v95
  %v300 = vunpack.c.h.b16 %v95
  %v301 = vunpack.c.l.b16 %v96
  %v302 = vunpack.c.h.b16 %v96
  %v303 = vunpack.c.l.b16 %v97
  %v304 = vunpack.c.h.b16 %v97
  %v305 = vunpack.c.l.b16 %v98
  %v306 = vunpack.c.h.b16 %v98
  %v307 = vunpack.c.l.b16 %v99
  %v308 = vunpack.c.h.b16 %v99
  %v309 = vunpack.c.l.b16 %v100
  %v310 = vunpack.c.h.b16 %v100
  %v311 = vunpack.c.l.b16 %v101
  %v312 = vunpack.c.h.b16 %v101
  %v313 = vunpack.c.l.b16 %v102
  %v314 = vunpack.c.h.b16 %v102
  %v315 = vunpack.c.l.b16 %v103
  %v316 = vunpack.c.h.b16 %v103
  %v317 = vunpack.c.l.b16 %v104
  %v318 = vunpack.c.h.b16 %v104
  %v319 = vunpack.c.l.b16 %v105
  %v320 = vunpack.c.h.b16 %v105
  %v321 = vunpack.c.l.b16 %v106
  %v322 = vunpack.c.h.b16 %v106
  %v323 = vunpack.c.l.b16 %v107
  %v324 = vunpack.c.h.b16 %v107
  %v325 = vunpack.c.l.b16 %v108
  %v326 = vunpack.c.h.b16 %v108
  %v327 = vunpack.c.l.b16 %v109
  %v328 = vunpack.c.h.b16 %v109
  %v329 = vunpack.c.l.b16 %v110
  %v330 = vunpack.c.h.b16 %v110
  %v331 = vunpack.c.l.b16 %v111
  %v332 = vunpack.c.h.b16 %v111
  %v333 = vunpack.c.l.b16 %v112
  %v334 = vunpack.c.h.b16 %v112
  %v335 = vunpack.c.l.b16 %v113
  %v336 = vunpack.c.h.b16 %v113
  %v337 = vunpack.c.l.b16 %v114
  %v338 = vunpack.c.h.b16 %v114
  %v339 = vunpack.c.l.b16 %v115
  %v340 = vunpack.c.h.b16 %v115
  %v341 = vunpack.c.l.b16 %v116
  %v342 = vunpack.c.h.b16 %v116
  %v343 = vunpack.c.l.b16 %v117
  %v344 = vunpack.c.h.b16 %v117
  %v345 = vunpack.c.l.b16 %v118
  %v346 = vunpack.c.h.b16 %v118
  %v347 = vunpack.c.l.b16 %v119
  %v348 = vunpack.c.h.b16 %v119
  %v349 = vunpack.c.l.b16 %v120
  %v350 = vunpack.c.h.b16 %v120
  %v351 = vunpack.c.l.b16 %v121
  %v352 = vunpack.c.h.b16 %v121
  %v353 = vunpack.c.l.b16 %v122
  %v354 = vunpack.c.h.b16 %v122
  %v355 = vunpack.c.l.b16 %v123
  %v356 = vunpack.c.h.b16 %v123
  %v357 = vunpack.c.l.b16 %v124
  %v358 = vunpack.c.h.b16 %v124
  %v359 = vunpack.c.l.b16 %v125
  %v360 = vunpack.c.h.b16 %v125
  %v361 = vunpack.c.l.b16 %v126
  %v362 = vunpack.c.h.b16 %v126
  %v363 = vunpack.c.l.b16 %v127
  %v364 = vunpack.c.h.b16 %v127
  %v365 = vunpack.c.l.b16 %v128
  %v366 = vunpack.c.h.b16 %v128
  %v367 = vunpack.c.l.b16 %v129
  %v368 = vunpack.c.h.b16 %v129
  %v369 = vunpack.c.l.b16 %v130
  %v370 = vunpack.c.h.b16 %v130
  %v371 = vunpack.c.l.b16 %v131
  %v372 = vunpack.c.h.b16 %v131
  %v373 = vunpack.c.l.b16 %v132
  %v374 = vunpack.c.h.b16 %v132
  %v375 = vunpack.c.l.b16 %v133
  %v376 = vunpack.c.h.b16 %v133
  %v377 = vunpack.c.l.b16 %v134
  %v378 = vunpack.c.h.b16 %v134
  %v379 = vunpack.c.l.b16 %v135
  %v380 = vunpack.c.h.b16 %v135
  %v381 = vunpack.c.l.b16 %v136
  %v382 = vunpack.c.h.b16 %v136
  %v383 = vunpack.c.l.b16 %v137
  %v384 = vunpack.c.h.b16 %v137
  %v385 = vunpack.c.l.b16 %v138
  %v386 = vunpack.c.h.b16 %v138
  %v387 = vunpack.c.l.b16 %v139
  %v388 = vunpack.c.h.b16 %v139
  %v389 = vunpack.c.l.b16 %v140
  %v390 = vunpack.c.h.b16 %v140
  %v391 = vunpack.c.l.b16 %v141
  %v392 = vunpack.c.h.b16 %v141
  %v393 = vunpack.c.l.b16 %v142
  %v394 = vunpack.c.h.b16 %v142
  %v395 = vunpack.c.l.b16 %v143
  %v396 = vunpack.c.h.b16 %v143
  %v397 = vunpack.c.l.b16 %v144
  %v398 = vunpack.c.h.b16 %v144
  %v399 = vunpack.c.l.b16 %v145
  %v400 = vunpack.c.h.b16 %v145
  %v401 = vunpack.c.l.b16 %v146
  %v402 = vunpack.c.h.b16 %v146
  %v403 = vpack.c.b16 %v279, %v275
  %v404 = vpack.c.b16 %v280, %v276
  %v405 = vpack.c.b16 %v281, %v277
  %v406 = vpack.c.b16 %v282, %v278
  %v407 = vpack.c.b16 %v287, %v283
  %v408 = vpack.c.b16 %v288, %v284
  %v409 = vpack.c.b16 %v289, %v285
  %v410 = vpack.c.b16 %v290, %v286
  %v411 = vpack.c.b16 %v295, %v291
  %v412 = vpack.c.b16 %v296, %v292
  %v413 = vpack.c.b16 %v297, %v293
  %v414 = vpack.c.b16 %v298, %v294
  %v415 = vpack.c.b16 %v303, %v299
  %v416 = vpack.c.b16 %v304, %v300
  %v417 = vpack.c.b16 %v305, %v301
  %v418 = vpack.c.b16 %v306, %v302
  %v419 = vpack.c.b16 %v311, %v307
  %v420 = vpack.c.b16 %v312, %v308
  %v421 = vpack.c.b16 %v313, %v309
  %v422 = vpack.c.b16 %v314, %v310
  %v423 = vpack.c.b16 %v319, %v315
  %v424 = vpack.c.b16 %v320, %v316
  %v425 = vpack.c.b16 %v321, %v317
  %v426 = vpack.c.b16 %v322, %v318
  %v427 = vpack.c.b16 %v327, %v323
  %v428 = vpack.c.b16 %v328, %v324
  %v429 = vpack.c.b16 %v329, %v325
  %v430 = vpack.c.b16 %v330, %v326
  %v431 = vpack.c.b16 %v335, %v331
  %v432 = vpack.c.b16 %v336, %v332
  %v433 = vpack.c.b16 %v337, %v333
  %v434 = vpack.c.b16 %v338, %v334
  %v435 = vpack.c.b16 %v343, %v339
  %v436 = vpack.c.b16 %v344, %v340
  %v437 = vpack.c.b16 %v345, %v341
  %v438 = vpack.c.b16 %v346, %v342
  %v439 = vpack.c.b16 %v351, %v347
  %v440 = vpack.c.b16 %v352, %v348
  %v441 = vpack.c.b16 %v353, %v349
  %v442 = vpack.c.b16 %v354, %v350
  %v443 = vpack.c.b16 %v359, %v355
  %v444 = vpack.c.b16 %v360, %v356
  %v445 = vpack.c.b16 %v361, %v357
  %v446 = vpack.c.b16 %v362, %v358
  %v447 = vpack.c.b16 %v367, %v363
  %v448 = vpack.c.b16 %v368, %v364
  %v449 = vpack.c.b16 %v369, %v365
  %v450 = vpack.c.b16 %v370, %v366
  %v451 = vpack.c.b16 %v375, %v371
  %v452 = vpack.c.b16 %v376, %v372
  %v453 = vpack.c.b16 %v377, %v373
  %v454 = vpack.c.b16 %v378, %v374
  %v455 = vpack.c.b16 %v383, %v379
  %v456 = vpack.c.b16 %v384, %v380
  %v457 = vpack.c.b16 %v385, %v381
  %v458 = vpack.c.b16 %v386, %v382
  %v459 = vpack.c.b16 %v391, %v387
  %v460 = vpack.c.b16 %v392, %v388
  %v461 = vpack.c.b16 %v393, %v389
  %v462 = vpack.c.b16 %v394, %v390
  %v463 = vpack.c.b16 %v399, %v395
  %v464 = vpack.c.b16 %v400, %v396
  %v465 = vpack.c.b16 %v401, %v397
  %v466 = vpack.c.b16 %v402, %v398
  %v595 = vunpack.c.l.b16 %v147
  %v596 = vunpack.c.l.b16 %v148
  %v597 = vunpack.c.l.b16 %v149
  %v598 = vunpack.c.l.b16 %v150
  %v599 = vunpack.c.l.b16 %v151
  %v600 = vunpack.c.l.b16 %v152
  %v601 = vunpack.c.l.b16 %v153
  %v602 = vunpack.c.l.b16 %v154
  %v603 = vunpack.c.l.b16 %v155
  %v604 = vunpack.c.l.b16 %v156
  %v605 = vunpack.c.l.b16 %v157
  %v606 = vunpack.c.l.b16 %v158
  %v607 = vunpack.c.l.b16 %v159
  %v608 = vunpack.c.l.b16 %v160
  %v609 = vunpack.c.l.b16 %v161
  %v610 = vunpack.c.l.b16 %v162
  %v611 = vunpack.c.l.b16 %v163
  %v612 = vunpack.c.l.b16 %v164
  %v613 = vunpack.c.l.b16 %v165
  %v614 = vunpack.c.l.b16 %v166
  %v615 = vunpack.c.l.b16 %v167
  %v616 = vunpack.c.l.b16 %v168
  %v617 = vunpack.c.l.b16 %v169
  %v618 = vunpack.c.l.b16 %v170
  %v619 = vunpack.c.l.b16 %v171
  %v620 = vunpack.c.l.b16 %v172
  %v621 = vunpack.c.l.b16 %v173
  %v622 = vunpack.c.l.b16 %v174
  %v623 = vunpack.c.l.b16 %v175
  %v624 = vunpack.c.l.b16 %v176
  %v625 = vunpack.c.l.b16 %v177
  %v626 = vunpack.c.l.b16 %v178
  %v627 = vunpack.c.l.b16 %v179
  %v628 = vunpack.c.l.b16 %v180
  %v629 = vunpack.c.l.b16 %v181
  %v630 = vunpack.c.l.b16 %v182
  %v631 = vunpack.c.l.b16 %v183
  %v632 = vunpack.c.l.b16 %v184
  %v633 = vunpack.c.l.b16 %v185
  %v634 = vunpack.c.l.b16 %v186
  %v635 = vunpack.c.l.b16 %v187
  %v636 = vunpack.c.l.b16 %v188
  %v637 = vunpack.c.l.b16 %v189
  %v638 = vunpack.c.l.b16 %v190
  %v639 = vunpack.c.l.b16 %v191
  %v640 = vunpack.c.l.b16 %v192
  %v641 = vunpack.c.l.b16 %v193
  %v642 = vunpack.c.l.b16 %v194
  %v643 = vunpack.c.l.b16 %v195
  %v644 = vunpack.c.l.b16 %v196
  %v645 = vunpack.c.l.b16 %v197
  %v646 = vunpack.c.l.b16 %v198
  %v647 = vunpack.c.l.b16 %v199
  %v648 = vunpack.c.l.b16 %v200
  %v649 = vunpack.c.l.b16 %v201
  %v650 = vunpack.c.l.b16 %v202
  %v651 = vunpack.c.l.b16 %v203
  %v652 = vunpack.c.l.b16 %v204
  %v653 = vunpack.c.l.b16 %v205
  %v654 = vunpack.c.l.b16 %v206
  %v655 = vunpack.c.l.b16 %v207
  %v656 = vunpack.c.l.b16 %v208
  %v657 = vunpack.c.l.b16 %v209
  %v658 = vunpack.c.l.b16 %v210
  %v659 = vpack.c.b16 %v596, %v595
  %v660 = vpack.c.b16 %v598, %v597
  %v661 = vpack.c.b16 %v600, %v599
  %v662 = vpack.c.b16 %v602, %v601
  %v663 = vpack.c.b16 %v604, %v603
  %v664 = vpack.c.b16 %v606, %v605
  %v665 = vpack.c.b16 %v608, %v607
  %v666 = vpack.c.b16 %v610, %v609
  %v667 = vpack.c.b16 %v612, %v611
  %v668 = vpack.c.b16 %v614, %v613
  %v669 = vpack.c.b16 %v616, %v615
  %v670 = vpack.c.b16 %v618, %v617
  %v671 = vpack.c.b16 %v620, %v619
  %v672 = vpack.c.b16 %v622, %v621
  %v673 = vpack.c.b16 %v624, %v623
  %v674 = vpack.c.b16 %v626, %v625
  %v675 = vpack.c.b16 %v628, %v627
  %v676 = vpack.c.b16 %v630, %v629
  %v677 = vpack.c.b16 %v632, %v631
  %v678 = vpack.c.b16 %v634, %v633
  %v679 = vpack.c.b16 %v636, %v635
  %v680 = vpack.c.b16 %v638, %v637
  %v681 = vpack.c.b16 %v640, %v639
  %v682 = vpack.c.b16 %v642, %v641
  %v683 = vpack.c.b16 %v644, %v643
  %v684 = vpack.c.b16 %v646, %v645
  %v685 = vpack.c.b16 %v648, %v647
  %v686 = vpack.c.b16 %v650, %v649
  %v687 = vpack.c.b16 %v652, %v651
  %v688 = vpack.c.b16 %v654, %v653
  %v689 = vpack.c.b16 %v656, %v655
  %v690 = vpack.c.b16 %v658, %v657
  %723 = vmatprep.subr.bf16.mxu0 0
  %724 = vmatpush1.bf16.msra.mxu0 %v659
  %725 = vmatprep.subr.bf16.mxu0 0
  %726 = vmatpush1.bf16.msra.mxu0 %v660
  %727 = vmatprep.subr.bf16.mxu0 0
  %728 = vmatpush1.bf16.msra.mxu0 %v661
  %729 = vmatprep.subr.bf16.mxu0 0
  %730 = vmatpush1.bf16.msra.mxu0 %v662
  %731 = vmatprep.subr.bf16.mxu0 0
  %732 = vmatpush1.bf16.msra.mxu0 %v663
  %733 = vmatprep.subr.bf16.mxu0 0
  %734 = vmatpush1.bf16.msra.mxu0 %v664
  %735 = vmatprep.subr.bf16.mxu0 0
  %736 = vmatpush1.bf16.msra.mxu0 %v665
  %737 = vmatprep.subr.bf16.mxu0 0
  %738 = vmatpush1.bf16.msra.mxu0 %v666
  %739 = vmatprep.subr.bf16.mxu0 0
  %740 = vmatpush1.bf16.msra.mxu0 %v667
  %741 = vmatprep.subr.bf16.mxu0 0
  %742 = vmatpush1.bf16.msra.mxu0 %v668
  %743 = vmatprep.subr.bf16.mxu0 0
  %744 = vmatpush1.bf16.msra.mxu0 %v669
  %745 = vmatprep.subr.bf16.mxu0 0
  %746 = vmatpush1.bf16.msra.mxu0 %v670
  %747 = vmatprep.subr.bf16.mxu0 0
  %748 = vmatpush1.bf16.msra.mxu0 %v671
  %749 = vmatprep.subr.bf16.mxu0 0
  %750 = vmatpush1.bf16.msra.mxu0 %v672
  %751 = vmatprep.subr.bf16.mxu0 0
  %752 = vmatpush1.bf16.msra.mxu0 %v673
  %753 = vmatprep.subr.bf16.mxu0 0
  %754 = vmatpush1.bf16.msra.mxu0 %v674
  %755 = vmatprep.mubr.bf16.mxu0 %v404
  %756 = vmatmul.mubr.bf16.gmra.mrb[0].mxu0 %v403
  %v757 = vpop.f32.mrb[0].mxu0
  %v758 = vadd.f32 0.0, %v757
  %v759 = vpop.f32.mrb[0].mxu0
  %v760 = vpop.f32.mrb[0].mxu0
  %v761 = vadd.f32 0.0, %v760
  %v762 = vpop.f32.mrb[0].mxu0
  %763 = vmatprep.mubr.bf16.mxu0 %v408
  %764 = vmatmul.mubr.bf16.gmra.mrb[0].mxu0 %v407
  %v765 = vpop.f32.mrb[0].mxu0
  %v766 = vadd.f32 0.0, %v765
  %v767 = vpop.f32.mrb[0].mxu0
  %v768 = vpop.f32.mrb[0].mxu0
  %v769 = vadd.f32 0.0, %v768
  %v770 = vpop.f32.mrb[0].mxu0
  %771 = vmatprep.mubr.bf16.mxu0 %v412
  %772 = vmatmul.mubr.bf16.gmra.mrb[0].mxu0 %v411
  %v773 = vpop.f32.mrb[0].mxu0
  %v774 = vadd.f32 0.0, %v773
  %v775 = vpop.f32.mrb[0].mxu0
  %v776 = vpop.f32.mrb[0].mxu0
  %v777 = vadd.f32 0.0, %v776
  %v778 = vpop.f32.mrb[0].mxu0
  %779 = vmatprep.mubr.bf16.mxu0 %v416
  %780 = vmatmul.mubr.bf16.gmra.mrb[0].mxu0 %v415
  %v781 = vpop.f32.mrb[0].mxu0
  %v782 = vadd.f32 0.0, %v781
  %v783 = vpop.f32.mrb[0].mxu0
  %v784 = vpop.f32.mrb[0].mxu0
  %v785 = vadd.f32 0.0, %v784
  %v786 = vpop.f32.mrb[0].mxu0
  %787 = vmatprep.mubr.bf16.mxu0 %v420
  %788 = vmatmul.mubr.bf16.gmra.mrb[0].mxu0 %v419
  %v789 = vpop.f32.mrb[0].mxu0
  %v790 = vadd.f32 0.0, %v789
  %v791 = vpop.f32.mrb[0].mxu0
  %v792 = vpop.f32.mrb[0].mxu0
  %v793 = vadd.f32 0.0, %v792
  %v794 = vpop.f32.mrb[0].mxu0
  %795 = vmatprep.mubr.bf16.mxu0 %v424
  %796 = vmatmul.mubr.bf16.gmra.mrb[0].mxu0 %v423
  %v797 = vpop.f32.mrb[0].mxu0
  %v798 = vadd.f32 0.0, %v797
  %v799 = vpop.f32.mrb[0].mxu0
  %v800 = vpop.f32.mrb[0].mxu0
  %v801 = vadd.f32 0.0, %v800
  %v802 = vpop.f32.mrb[0].mxu0
  %803 = vmatprep.mubr.bf16.mxu0 %v428
  %804 = vmatmul.mubr.bf16.gmra.mrb[0].mxu0 %v427
  %v805 = vpop.f32.mrb[0].mxu0
  %v806 = vadd.f32 0.0, %v805
  %v807 = vpop.f32.mrb[0].mxu0
  %v808 = vpop.f32.mrb[0].mxu0
  %v809 = vadd.f32 0.0, %v808
  %v810 = vpop.f32.mrb[0].mxu0
  %811 = vmatprep.mubr.bf16.mxu0 %v432
  %812 = vmatmul.mubr.bf16.gmra.mrb[0].mxu0 %v431
  %v813 = vpop.f32.mrb[0].mxu0
  %v814 = vadd.f32 0.0, %v813
  %v815 = vpop.f32.mrb[0].mxu0
  %v816 = vpop.f32.mrb[0].mxu0
  %v817 = vadd.f32 0.0, %v816
  %v818 = vpop.f32.mrb[0].mxu0
  %819 = vmatprep.mubr.bf16.mxu0 %v436
  %820 = vmatmul.mubr.bf16.gmra.mrb[0].mxu0 %v435
  %v821 = vpop.f32.mrb[0].mxu0
  %v822 = vadd.f32 0.0, %v821
  %v823 = vpop.f32.mrb[0].mxu0
  %v824 = vpop.f32.mrb[0].mxu0
  %v825 = vadd.f32 0.0, %v824
  %v826 = vpop.f32.mrb[0].mxu0
  %827 = vmatprep.mubr.bf16.mxu0 %v440
  %828 = vmatmul.mubr.bf16.gmra.mrb[0].mxu0 %v439
  %v829 = vpop.f32.mrb[0].mxu0
  %v830 = vadd.f32 0.0, %v829
  %v831 = vpop.f32.mrb[0].mxu0
  %v832 = vpop.f32.mrb[0].mxu0
  %v833 = vadd.f32 0.0, %v832
  %v834 = vpop.f32.mrb[0].mxu0
  %835 = vmatprep.mubr.bf16.mxu0 %v444
  %836 = vmatmul.mubr.bf16.gmra.mrb[0].mxu0 %v443
  %v837 = vpop.f32.mrb[0].mxu0
  %v838 = vadd.f32 0.0, %v837
  %v839 = vpop.f32.mrb[0].mxu0
  %v840 = vpop.f32.mrb[0].mxu0
  %v841 = vadd.f32 0.0, %v840
  %v842 = vpop.f32.mrb[0].mxu0
  %843 = vmatprep.mubr.bf16.mxu0 %v448
  %844 = vmatmul.mubr.bf16.gmra.mrb[0].mxu0 %v447
  %v845 = vpop.f32.mrb[0].mxu0
  %v846 = vadd.f32 0.0, %v845
  %v847 = vpop.f32.mrb[0].mxu0
  %v848 = vpop.f32.mrb[0].mxu0
  %v849 = vadd.f32 0.0, %v848
  %v850 = vpop.f32.mrb[0].mxu0
  %851 = vmatprep.mubr.bf16.mxu0 %v452
  %852 = vmatmul.mubr.bf16.gmra.mrb[0].mxu0 %v451
  %v853 = vpop.f32.mrb[0].mxu0
  %v854 = vadd.f32 0.0, %v853
  %v855 = vpop.f32.mrb[0].mxu0
  %v856 = vpop.f32.mrb[0].mxu0
  %v857 = vadd.f32 0.0, %v856
  %v858 = vpop.f32.mrb[0].mxu0
  %859 = vmatprep.mubr.bf16.mxu0 %v456
  %860 = vmatmul.mubr.bf16.gmra.mrb[0].mxu0 %v455
  %v861 = vpop.f32.mrb[0].mxu0
  %v862 = vadd.f32 0.0, %v861
  %v863 = vpop.f32.mrb[0].mxu0
  %v864 = vpop.f32.mrb[0].mxu0
  %v865 = vadd.f32 0.0, %v864
  %v866 = vpop.f32.mrb[0].mxu0
  %867 = vmatprep.mubr.bf16.mxu0 %v460
  %868 = vmatmul.mubr.bf16.gmra.mrb[0].mxu0 %v459
  %v869 = vpop.f32.mrb[0].mxu0
  %v870 = vadd.f32 0.0, %v869
  %v871 = vpop.f32.mrb[0].mxu0
  %v872 = vpop.f32.mrb[0].mxu0
  %v873 = vadd.f32 0.0, %v872
  %v874 = vpop.f32.mrb[0].mxu0
  %875 = vmatprep.mubr.bf16.mxu0 %v464
  %876 = vmatmul.mubr.bf16.gmra.mrb[0].mxu0 %v463
  %v877 = vpop.f32.mrb[0].mxu0
  %v878 = vadd.f32 0.0, %v877
  %v879 = vpop.f32.mrb[0].mxu0
  %v880 = vpop.f32.mrb[0].mxu0
  %v881 = vadd.f32 0.0, %v880
  %v882 = vpop.f32.mrb[0].mxu0
  %883 = vdwg.mxu0
  %884 = vmatprep.subr.bf16.mxu0 0
  %885 = vmatpush1.bf16.msra.mxu0 %v675
  %886 = vmatprep.subr.bf16.mxu0 0
  %887 = vmatpush1.bf16.msra.mxu0 %v676
  %888 = vmatprep.subr.bf16.mxu0 0
  %889 = vmatpush1.bf16.msra.mxu0 %v677
  %890 = vmatprep.subr.bf16.mxu0 0
  %891 = vmatpush1.bf16.msra.mxu0 %v678
  %892 = vmatprep.subr.bf16.mxu0 0
  %893 = vmatpush1.bf16.msra.mxu0 %v679
  %894 = vmatprep.subr.bf16.mxu0 0
  %895 = vmatpush1.bf16.msra.mxu0 %v680
  %896 = vmatprep.subr.bf16.mxu0 0
  %897 = vmatpush1.bf16.msra.mxu0 %v681
  %898 = vmatprep.subr.bf16.mxu0 0
  %899 = vmatpush1.bf16.msra.mxu0 %v682
  %900 = vmatprep.subr.bf16.mxu0 0
  %901 = vmatpush1.bf16.msra.mxu0 %v683
  %902 = vmatprep.subr.bf16.mxu0 0
  %903 = vmatpush1.bf16.msra.mxu0 %v684
  %904 = vmatprep.subr.bf16.mxu0 0
  %905 = vmatpush1.bf16.msra.mxu0 %v685
  %906 = vmatprep.subr.bf16.mxu0 0
  %907 = vmatpush1.bf16.msra.mxu0 %v686
  %908 = vmatprep.subr.bf16.mxu0 0
  %909 = vmatpush1.bf16.msra.mxu0 %v687
  %910 = vmatprep.subr.bf16.mxu0 0
  %911 = vmatpush1.bf16.msra.mxu0 %v688
  %912 = vmatprep.subr.bf16.mxu0 0
  %913 = vmatpush1.bf16.msra.mxu0 %v689
  %914 = vmatprep.subr.bf16.mxu0 0
  %915 = vmatpush1.bf16.msra.mxu0 %v690
  %916 = vmatprep.mubr.bf16.mxu0 %v406
  %917 = vmatmul.mubr.bf16.gmra.mrb[0].mxu0 %v405
  %v918 = vpop.f32.mrb[0].mxu0
  %v919 = vadd.f32 %v758, %v918
  %v920 = vpop.f32.mrb[0].mxu0
  %v921 = vpop.f32.mrb[0].mxu0
  %v922 = vadd.f32 %v761, %v921
  %v923 = vpop.f32.mrb[0].mxu0
  %924 = vmatprep.mubr.bf16.mxu0 %v410
  %925 = vmatmul.mubr.bf16.gmra.mrb[0].mxu0 %v409
  %v926 = vpop.f32.mrb[0].mxu0
  %v927 = vadd.f32 %v766, %v926
  %v928 = vpop.f32.mrb[0].mxu0
  %v929 = vpop.f32.mrb[0].mxu0
  %v930 = vadd.f32 %v769, %v929
  %v931 = vpop.f32.mrb[0].mxu0
  %932 = vmatprep.mubr.bf16.mxu0 %v414
  %933 = vmatmul.mubr.bf16.gmra.mrb[0].mxu0 %v413
  %v934 = vpop.f32.mrb[0].mxu0
  %v935 = vadd.f32 %v774, %v934
  %v936 = vpop.f32.mrb[0].mxu0
  %v937 = vpop.f32.mrb[0].mxu0
  %v938 = vadd.f32 %v777, %v937
  %v939 = vpop.f32.mrb[0].mxu0
  %940 = vmatprep.mubr.bf16.mxu0 %v418
  %941 = vmatmul.mubr.bf16.gmra.mrb[0].mxu0 %v417
  %v942 = vpop.f32.mrb[0].mxu0
  %v943 = vadd.f32 %v782, %v942
  %v944 = vpop.f32.mrb[0].mxu0
  %v945 = vpop.f32.mrb[0].mxu0
  %v946 = vadd.f32 %v785, %v945
  %v947 = vpop.f32.mrb[0].mxu0
  %948 = vmatprep.mubr.bf16.mxu0 %v422
  %949 = vmatmul.mubr.bf16.gmra.mrb[0].mxu0 %v421
  %v950 = vpop.f32.mrb[0].mxu0
  %v951 = vadd.f32 %v790, %v950
  %v952 = vpop.f32.mrb[0].mxu0
  %v953 = vpop.f32.mrb[0].mxu0
  %v954 = vadd.f32 %v793, %v953
  %v955 = vpop.f32.mrb[0].mxu0
  %956 = vmatprep.mubr.bf16.mxu0 %v426
  %957 = vmatmul.mubr.bf16.gmra.mrb[0].mxu0 %v425
  %v958 = vpop.f32.mrb[0].mxu0
  %v959 = vadd.f32 %v798, %v958
  %v960 = vpop.f32.mrb[0].mxu0
  %v961 = vpop.f32.mrb[0].mxu0
  %v962 = vadd.f32 %v801, %v961
  %v963 = vpop.f32.mrb[0].mxu0
  %964 = vmatprep.mubr.bf16.mxu0 %v430
  %965 = vmatmul.mubr.bf16.gmra.mrb[0].mxu0 %v429
  %v966 = vpop.f32.mrb[0].mxu0
  %v967 = vadd.f32 %v806, %v966
  %v968 = vpop.f32.mrb[0].mxu0
  %v969 = vpop.f32.mrb[0].mxu0
  %v970 = vadd.f32 %v809, %v969
  %v971 = vpop.f32.mrb[0].mxu0
  %972 = vmatprep.mubr.bf16.mxu0 %v434
  %973 = vmatmul.mubr.bf16.gmra.mrb[0].mxu0 %v433
  %v974 = vpop.f32.mrb[0].mxu0
  %v975 = vadd.f32 %v814, %v974
  %v976 = vpop.f32.mrb[0].mxu0
  %v977 = vpop.f32.mrb[0].mxu0
  %v978 = vadd.f32 %v817, %v977
  %v979 = vpop.f32.mrb[0].mxu0
  %980 = vmatprep.mubr.bf16.mxu0 %v438
  %981 = vmatmul.mubr.bf16.gmra.mrb[0].mxu0 %v437
  %v982 = vpop.f32.mrb[0].mxu0
  %v983 = vadd.f32 %v822, %v982
  %v984 = vpop.f32.mrb[0].mxu0
  %v985 = vpop.f32.mrb[0].mxu0
  %v986 = vadd.f32 %v825, %v985
  %v987 = vpop.f32.mrb[0].mxu0
  %988 = vmatprep.mubr.bf16.mxu0 %v442
  %989 = vmatmul.mubr.bf16.gmra.mrb[0].mxu0 %v441
  %v990 = vpop.f32.mrb[0].mxu0
  %v991 = vadd.f32 %v830, %v990
  %v992 = vpop.f32.mrb[0].mxu0
  %v993 = vpop.f32.mrb[0].mxu0
  %v994 = vadd.f32 %v833, %v993
  %v995 = vpop.f32.mrb[0].mxu0
  %996 = vmatprep.mubr.bf16.mxu0 %v446
  %997 = vmatmul.mubr.bf16.gmra.mrb[0].mxu0 %v445
  %v998 = vpop.f32.mrb[0].mxu0
  %v999 = vadd.f32 %v838, %v998
  %v1000 = vpop.f32.mrb[0].mxu0
  %v1001 = vpop.f32.mrb[0].mxu0
  %v1002 = vadd.f32 %v841, %v1001
  %v1003 = vpop.f32.mrb[0].mxu0
  %1004 = vmatprep.mubr.bf16.mxu0 %v450
  %1005 = vmatmul.mubr.bf16.gmra.mrb[0].mxu0 %v449
  %v1006 = vpop.f32.mrb[0].mxu0
  %v1007 = vadd.f32 %v846, %v1006
  %v1008 = vpop.f32.mrb[0].mxu0
  %v1009 = vpop.f32.mrb[0].mxu0
  %v1010 = vadd.f32 %v849, %v1009
  %v1011 = vpop.f32.mrb[0].mxu0
  %1012 = vmatprep.mubr.bf16.mxu0 %v454
  %1013 = vmatmul.mubr.bf16.gmra.mrb[0].mxu0 %v453
  %v1014 = vpop.f32.mrb[0].mxu0
  %v1015 = vadd.f32 %v854, %v1014
  %v1016 = vpop.f32.mrb[0].mxu0
  %v1017 = vpop.f32.mrb[0].mxu0
  %v1018 = vadd.f32 %v857, %v1017
  %v1019 = vpop.f32.mrb[0].mxu0
  %1020 = vmatprep.mubr.bf16.mxu0 %v458
  %1021 = vmatmul.mubr.bf16.gmra.mrb[0].mxu0 %v457
  %v1022 = vpop.f32.mrb[0].mxu0
  %v1023 = vadd.f32 %v862, %v1022
  %v1024 = vpop.f32.mrb[0].mxu0
  %v1025 = vpop.f32.mrb[0].mxu0
  %v1026 = vadd.f32 %v865, %v1025
  %v1027 = vpop.f32.mrb[0].mxu0
  %1028 = vmatprep.mubr.bf16.mxu0 %v462
  %1029 = vmatmul.mubr.bf16.gmra.mrb[0].mxu0 %v461
  %v1030 = vpop.f32.mrb[0].mxu0
  %v1031 = vadd.f32 %v870, %v1030
  %v1032 = vpop.f32.mrb[0].mxu0
  %v1033 = vpop.f32.mrb[0].mxu0
  %v1034 = vadd.f32 %v873, %v1033
  %v1035 = vpop.f32.mrb[0].mxu0
  %1036 = vmatprep.mubr.bf16.mxu0 %v466
  %1037 = vmatmul.mubr.bf16.gmra.mrb[0].mxu0 %v465
  %v1038 = vpop.f32.mrb[0].mxu0
  %v1039 = vadd.f32 %v878, %v1038
  %v1040 = vpop.f32.mrb[0].mxu0
  %v1041 = vpop.f32.mrb[0].mxu0
  %v1042 = vadd.f32 %v881, %v1041
  %v1043 = vpop.f32.mrb[0].mxu0
  %1044 = vdwg.mxu0
  %v1045 = vadd.f32 %v51, %v919
  %v1046 = vadd.f32 %v52, %v922
  %v1047 = vadd.f32 %v53, %v927
  %v1048 = vadd.f32 %v54, %v930
  %v1049 = vadd.f32 %v55, %v935
  %v1050 = vadd.f32 %v56, %v938
  %v1051 = vadd.f32 %v57, %v943
  %v1052 = vadd.f32 %v58, %v946
  %v1053 = vadd.f32 %v59, %v951
  %v1054 = vadd.f32 %v60, %v954
  %v1055 = vadd.f32 %v61, %v959
  %v1056 = vadd.f32 %v62, %v962
  %v1057 = vadd.f32 %v63, %v967
  %v1058 = vadd.f32 %v64, %v970
  %v1059 = vadd.f32 %v65, %v975
  %v1060 = vadd.f32 %v66, %v978
  %v1061 = vadd.f32 %v67, %v983
  %v1062 = vadd.f32 %v68, %v986
  %v1063 = vadd.f32 %v69, %v991
  %v1064 = vadd.f32 %v70, %v994
  %v1065 = vadd.f32 %v71, %v999
  %v1066 = vadd.f32 %v72, %v1002
  %v1067 = vadd.f32 %v73, %v1007
  %v1068 = vadd.f32 %v74, %v1010
  %v1069 = vadd.f32 %v75, %v1015
  %v1070 = vadd.f32 %v76, %v1018
  %v1071 = vadd.f32 %v77, %v1023
  %v1072 = vadd.f32 %v78, %v1026
  %v1073 = vadd.f32 %v79, %v1031
  %v1074 = vadd.f32 %v80, %v1034
  %v1075 = vadd.f32 %v81, %v1039
  %v1076 = vadd.f32 %v82, %v1042
  %1077 = vst [vmem:[#allocation2] sm:$0xff] %v1045
  %1078 = vst [vmem:[#allocation2 + $0x8] sm:$0xff] %v1046
  %1079 = vst [vmem:[#allocation2 + $0x10] sm:$0xff] %v1047
  %1080 = vst [vmem:[#allocation2 + $0x18] sm:$0xff] %v1048
  %1081 = vst [vmem:[#allocation2 + $0x20] sm:$0xff] %v1049
  %1082 = vst [vmem:[#allocation2 + $0x28] sm:$0xff] %v1050
  %1083 = vst [vmem:[#allocation2 + $0x30] sm:$0xff] %v1051
  %1084 = vst [vmem:[#allocation2 + $0x38] sm:$0xff] %v1052
  %1085 = vst [vmem:[#allocation2 + $0x40] sm:$0xff] %v1053
  %1086 = vst [vmem:[#allocation2 + $0x48] sm:$0xff] %v1054
  %1087 = vst [vmem:[#allocation2 + $0x50] sm:$0xff] %v1055
  %1088 = vst [vmem:[#allocation2 + $0x58] sm:$0xff] %v1056
  %1089 = vst [vmem:[#allocation2 + $0x60] sm:$0xff] %v1057
  %1090 = vst [vmem:[#allocation2 + $0x68] sm:$0xff] %v1058
  %1091 = vst [vmem:[#allocation2 + $0x70] sm:$0xff] %v1059
  %1092 = vst [vmem:[#allocation2 + $0x78] sm:$0xff] %v1060
  %1093 = vst [vmem:[#allocation2 + $0x80] sm:$0xff] %v1061
  %1094 = vst [vmem:[#allocation2 + $0x88] sm:$0xff] %v1062
  %1095 = vst [vmem:[#allocation2 + $0x90] sm:$0xff] %v1063
  %1096 = vst [vmem:[#allocation2 + $0x98] sm:$0xff] %v1064
  %1097 = vst [vmem:[#allocation2 + $0xa0] sm:$0xff] %v1065
  %1098 = vst [vmem:[#allocation2 + $0xa8] sm:$0xff] %v1066
  %1099 = vst [vmem:[#allocation2 + $0xb0] sm:$0xff] %v1067
  %1100 = vst [vmem:[#allocation2 + $0xb8] sm:$0xff] %v1068
  %1101 = vst [vmem:[#allocation2 + $0xc0] sm:$0xff] %v1069
  %1102 = vst [vmem:[#allocation2 + $0xc8] sm:$0xff] %v1070
  %1103 = vst [vmem:[#allocation2 + $0xd0] sm:$0xff] %v1071
  %1104 = vst [vmem:[#allocation2 + $0xd8] sm:$0xff] %v1072
  %1105 = vst [vmem:[#allocation2 + $0xe0] sm:$0xff] %v1073
  %1106 = vst [vmem:[#allocation2 + $0xe8] sm:$0xff] %v1074
  %1107 = vst [vmem:[#allocation2 + $0xf0] sm:$0xff] %v1075
  %1108 = vst [vmem:[#allocation2 + $0xf8] sm:$0xff] %v1076
  // Predicated region
  $region18: #{_lambda_.13} parent=0 // pred_check
    %p1109 = pneg %p15
  $region19: #{_lambda_.13} parent=0 // pred_check_branch
    %1111 = sbr.rel (%p1109) target = $region21
  $region20: #{_lambda_.13} parent=0 // pred_region
    %v1112 = vld [vmem:[#allocation2] sm:$0xff]
    %v1113 = vld [vmem:[#allocation2 + $0x8] sm:$0xff]
    %v1114 = vld [vmem:[#allocation2 + $0x10] sm:$0xff]
    %v1115 = vld [vmem:[#allocation2 + $0x18] sm:$0xff]
    %v1116 = vld [vmem:[#allocation2 + $0x20] sm:$0xff]
    %v1117 = vld [vmem:[#allocation2 + $0x28] sm:$0xff]
    %v1118 = vld [vmem:[#allocation2 + $0x30] sm:$0xff]
    %v1119 = vld [vmem:[#allocation2 + $0x38] sm:$0xff]
    %v1120 = vld [vmem:[#allocation2 + $0x40] sm:$0xff]
    %v1121 = vld [vmem:[#allocation2 + $0x48] sm:$0xff]
    %v1122 = vld [vmem:[#allocation2 + $0x50] sm:$0xff]
    %v1123 = vld [vmem:[#allocation2 + $0x58] sm:$0xff]
    %v1124 = vld [vmem:[#allocation2 + $0x60] sm:$0xff]
    %v1125 = vld [vmem:[#allocation2 + $0x68] sm:$0xff]
    %v1126 = vld [vmem:[#allocation2 + $0x70] sm:$0xff]
    %v1127 = vld [vmem:[#allocation2 + $0x78] sm:$0xff]
    %v1128 = vld [vmem:[#allocation2 + $0x80] sm:$0xff]
    %v1129 = vld [vmem:[#allocation2 + $0x88] sm:$0xff]
    %v1130 = vld [vmem:[#allocation2 + $0x90] sm:$0xff]
    %v1131 = vld [vmem:[#allocation2 + $0x98] sm:$0xff]
    %v1132 = vld [vmem:[#allocation2 + $0xa0] sm:$0xff]
    %v1133 = vld [vmem:[#allocation2 + $0xa8] sm:$0xff]
    %v1134 = vld [vmem:[#allocation2 + $0xb0] sm:$0xff]
    %v1135 = vld [vmem:[#allocation2 + $0xb8] sm:$0xff]
    %v1136 = vld [vmem:[#allocation2 + $0xc0] sm:$0xff]
    %v1137 = vld [vmem:[#allocation2 + $0xc8] sm:$0xff]
    %v1138 = vld [vmem:[#allocation2 + $0xd0] sm:$0xff]
    %v1139 = vld [vmem:[#allocation2 + $0xd8] sm:$0xff]
    %v1140 = vld [vmem:[#allocation2 + $0xe0] sm:$0xff]
    %v1141 = vld [vmem:[#allocation2 + $0xe8] sm:$0xff]
    %v1142 = vld [vmem:[#allocation2 + $0xf0] sm:$0xff]
    %v1143 = vld [vmem:[#allocation2 + $0xf8] sm:$0xff]
    %v1144 = vld [vmem:[%s2] sm:$0x1]
    %v1146 = vlaneseq
    %v1147 = vshrl.u32 %v1146, 7
    %v1148 = vsub.s32 0, %v1147
    %v1149 = vrot.slane %v1144, %v1148
    %v1151 = vadd.f32 %v1112, %v1149
    %v1152 = vadd.f32 %v1113, %v1149
    %v1153 = vadd.f32 %v1114, %v1149
    %v1154 = vadd.f32 %v1115, %v1149
    %v1155 = vadd.f32 %v1116, %v1149
    %v1156 = vadd.f32 %v1117, %v1149
    %v1157 = vadd.f32 %v1118, %v1149
    %v1158 = vadd.f32 %v1119, %v1149
    %v1159 = vadd.f32 %v1120, %v1149
    %v1160 = vadd.f32 %v1121, %v1149
    %v1161 = vadd.f32 %v1122, %v1149
    %v1162 = vadd.f32 %v1123, %v1149
    %v1163 = vadd.f32 %v1124, %v1149
    %v1164 = vadd.f32 %v1125, %v1149
    %v1165 = vadd.f32 %v1126, %v1149
    %v1166 = vadd.f32 %v1127, %v1149
    %v1167 = vadd.f32 %v1128, %v1149
    %v1168 = vadd.f32 %v1129, %v1149
    %v1169 = vadd.f32 %v1130, %v1149
    %v1170 = vadd.f32 %v1131, %v1149
    %v1171 = vadd.f32 %v1132, %v1149
    %v1172 = vadd.f32 %v1133, %v1149
    %v1173 = vadd.f32 %v1134, %v1149
    %v1174 = vadd.f32 %v1135, %v1149
    %v1175 = vadd.f32 %v1136, %v1149
    %v1176 = vadd.f32 %v1137, %v1149
    %v1177 = vadd.f32 %v1138, %v1149
    %v1178 = vadd.f32 %v1139, %v1149
    %v1179 = vadd.f32 %v1140, %v1149
    %v1180 = vadd.f32 %v1141, %v1149
    %v1181 = vadd.f32 %v1142, %v1149
    %v1182 = vadd.f32 %v1143, %v1149
    %1183 = vst [vmem:[%s3] sm:$0xff] %v1151
    %1184 = vst [vmem:[%s3 + $0x8] sm:$0xff] %v1152
    %1185 = vst [vmem:[%s3 + $0x10] sm:$0xff] %v1153
    %1186 = vst [vmem:[%s3 + $0x18] sm:$0xff] %v1154
    %1187 = vst [vmem:[%s3 + $0x20] sm:$0xff] %v1155
    %1188 = vst [vmem:[%s3 + $0x28] sm:$0xff] %v1156
    %1189 = vst [vmem:[%s3 + $0x30] sm:$0xff] %v1157
    %1190 = vst [vmem:[%s3 + $0x38] sm:$0xff] %v1158
    %1191 = vst [vmem:[%s3 + $0x40] sm:$0xff] %v1159
    %1192 = vst [vmem:[%s3 + $0x48] sm:$0xff] %v1160
    %1193 = vst [vmem:[%s3 + $0x50] sm:$0xff] %v1161
    %1194 = vst [vmem:[%s3 + $0x58] sm:$0xff] %v1162
    %1195 = vst [vmem:[%s3 + $0x60] sm:$0xff] %v1163
    %1196 = vst [vmem:[%s3 + $0x68] sm:$0xff] %v1164
    %1197 = vst [vmem:[%s3 + $0x70] sm:$0xff] %v1165
    %1198 = vst [vmem:[%s3 + $0x78] sm:$0xff] %v1166
    %1199 = vst [vmem:[%s3 + $0x80] sm:$0xff] %v1167
    %1200 = vst [vmem:[%s3 + $0x88] sm:$0xff] %v1168
    %1201 = vst [vmem:[%s3 + $0x90] sm:$0xff] %v1169
    %1202 = vst [vmem:[%s3 + $0x98] sm:$0xff] %v1170
    %1203 = vst [vmem:[%s3 + $0xa0] sm:$0xff] %v1171
    %1204 = vst [vmem:[%s3 + $0xa8] sm:$0xff] %v1172
    %1205 = vst [vmem:[%s3 + $0xb0] sm:$0xff] %v1173
    %1206 = vst [vmem:[%s3 + $0xb8] sm:$0xff] %v1174
    %1207 = vst [vmem:[%s3 + $0xc0] sm:$0xff] %v1175
    %1208 = vst [vmem:[%s3 + $0xc8] sm:$0xff] %v1176
    %1209 = vst [vmem:[%s3 + $0xd0] sm:$0xff] %v1177
    %1210 = vst [vmem:[%s3 + $0xd8] sm:$0xff] %v1178
    %1211 = vst [vmem:[%s3 + $0xe0] sm:$0xff] %v1179
    %1212 = vst [vmem:[%s3 + $0xe8] sm:$0xff] %v1180
    %1213 = vst [vmem:[%s3 + $0xf0] sm:$0xff] %v1181
    %1214 = vst [vmem:[%s3 + $0xf8] sm:$0xff] %v1182
  $region21: #{_lambda_.13} parent=0 // pred_fallthru
    _
  // Predicated region
  $region22: #{_lambda_.13} parent=0 // pred_check
    _
  $region23: #{_lambda_.13} parent=0 // pred_check_branch
    %1216 = sbr.rel (0) target = $region25
  $region24: #{_lambda_.13} parent=0 // pred_region
    _
  $region25: #{_lambda_.13} parent=0 // pred_fallthru
    _
  // Predicated region
  $region26: #{_lambda_.13} parent=0 // pred_check
    _
  $region27: #{_lambda_.13} parent=0 // pred_check_branch
    %1218 = sbr.rel (0) target = $region29
  $region28: #{_lambda_.13} parent=0 // pred_region
    _
  $region29: #{_lambda_.13} parent=0 // pred_fallthru
    _

// kernel: _lambda_.15
$region0: #{_lambda_.15}
  #allocation0 [shape = 'u32[]', space=smem, size = 0x4, offset = 0x4, fixed_abs, tag = 'smem constant byte address 0x4 - core index']
  #allocation1 [shape = 'u32[144,128]{1,0:T(1,128)}', space=vmem, size = 0x12000, scoped, tag = 'internal scratch']
  #allocation2 [shape = 'f32[256,128]{1,0:T(8,128)}', space=vmem, size = 0x20000, scoped, tag = 'scratch operand']
  %s0 = inlined_call_operand.vmem [shape: bf16[256,1024], index: 0, kind: input, shape index: {}]
  %s1 = inlined_call_operand.vmem [shape: bf16[1024,128], index: 1, kind: input, shape index: {}]
  %s2 = inlined_call_operand.vmem [shape: f32[1,128], index: 2, kind: input, shape index: {}]
  %s3 = inlined_call_operand.vmem [shape: f32[256,128], index: 3, kind: output, shape index: {}]
  %s4 = sld [smem:[#allocation0]]
  $region76: #{_lambda_.15} parent=0
    _
  %s6 = ssub.s32 1, %s4
  %s7 = scalar_select 0, %s6, %s4
  $region1: #{_lambda_.15} parent=0
    #allocation3 [shape = 'u8[524288]{0}', space=vmem, size = 0x80000, scoped, tag = 'input window, operand 0']
    loop: start=0, step=1, limit=4
    $region2: #{_lambda_.15} parent=1 // loop_pre_header
      _
    $region3: #{_lambda_.15} parent=1 // loop_header
      %s9 = sphi 0, %s13
      %p10 = scmp.ge.s32.totalorder %s9, 4
      %s16 = sphi 0, %s35
      %s17 = sphi 0, %s31
      %s18 = sphi 0, %s27
      %s19 = sphi 0, %s16
      %s20 = sphi 0, %s17
      %s21 = sphi 0, %s18
      %s22 = sphi 0, %s19
      %s23 = sphi 0, %s20
      %s24 = sphi 0, %s21
      %s40 = sphi 0, %s42
      %s43 = sphi 0, %s40
      %s44 = sphi 0, %s43
      %s60 = sphi 0, %s44
      %s68 = sphi 0, %s70
      %s71 = sphi 0, %s68
      %s72 = sphi 0, %s71
      %s88 = sphi 0, %s72
      %s94 = sphi 0, %s96
      %s97 = sphi 0, %s94
      %s98 = sphi 0, %s97
      %s114 = sphi 0, %s98
      %s122 = sphi 0, %s124
      %s125 = sphi 0, %s122
      %s126 = sphi 0, %s125
      %s142 = sphi 0, %s126
    $region4: #{_lambda_.15} parent=1 // loop_header_branch
      %12 = sbr.rel (%p10) target = $region8
    $region5: #{_lambda_.15} parent=1 // loop_body
      %s14 = ssub.s32 %s9, 1
      %s15 = ssub.s32 %s9, 2
      %s25 = sadd.s32 1, %s18
      %p26 = scmp.ge.s32.totalorder %s25, 2
      %s27 = scalar_select %p26, 0, %s25
      %s28 = sadd.s32 1, %s17
      %s29 = scalar_select %p26, %s28, %s17
      %p30 = scmp.ge.s32.totalorder %s29, 1
      %s31 = scalar_select %p30, 0, %s29
      %s32 = sadd.s32 1, %s16
      %s33 = scalar_select %p30, %s32, %s16
      %p34 = scmp.ge.s32.totalorder %s33, 1
      %s35 = scalar_select %p34, 0, %s33
      %s36 = ssub.s32 %s16, %s35
      %s37 = ssub.s32 %s18, %s27
      %s38 = sor.u32 %s36, %s37
      %p39 = scmp.eq.s32.totalorder %s38, 0
      %s41 = sadd.s32 %s40, 1
      %s42 = scalar_select %p39, %s40, %s41
      %p45 = pneg %p39
      %p46 = scmp.eq.s32.totalorder %s9, 1
      %p47 = por %p45, %p46
      %p48 = scmp.ne.s32.totalorder %s40, %s43
      %p49 = scmp.eq.s32.totalorder %s9, 0
      %p50 = por %p48, %p49
      %p51 = scmp.ne.s32.totalorder %s40, %s43
      %p52 = scmp.eq.s32.totalorder %s14, 1
      %p53 = por %p51, %p52
      %p54 = scmp.ne.s32.totalorder %s43, %s44
      %p55 = scmp.eq.s32.totalorder %s14, 0
      %p56 = por %p54, %p55
      %p57 = scmp.ne.s32.totalorder %s43, %s44
      %p58 = scmp.eq.s32.totalorder %s15, 1
      %p59 = por %p57, %p58
      %p61 = scmp.ne.s32.totalorder %s44, %s60
      %p62 = scmp.eq.s32.totalorder %s15, 0
      %p63 = por %p61, %p62
      %s64 = ssub.s32 %s18, %s27
      %s65 = ssub.s32 %s17, %s31
      %s66 = sor.u32 %s64, %s65
      %p67 = scmp.eq.s32.totalorder %s66, 0
      %s69 = sadd.s32 %s68, 1
      %s70 = scalar_select %p67, %s68, %s69
      %p73 = pneg %p67
      %p74 = scmp.eq.s32.totalorder %s9, 1
      %p75 = por %p73, %p74
      %p76 = scmp.ne.s32.totalorder %s68, %s71
      %p77 = scmp.eq.s32.totalorder %s9, 0
      %p78 = por %p76, %p77
      %p79 = scmp.ne.s32.totalorder %s68, %s71
      %p80 = scmp.eq.s32.totalorder %s14, 1
      %p81 = por %p79, %p80
      %p82 = scmp.ne.s32.totalorder %s71, %s72
      %p83 = scmp.eq.s32.totalorder %s14, 0
      %p84 = por %p82, %p83
      %p85 = scmp.ne.s32.totalorder %s71, %s72
      %p86 = scmp.eq.s32.totalorder %s15, 1
      %p87 = por %p85, %p86
      %p89 = scmp.ne.s32.totalorder %s72, %s88
      %p90 = scmp.eq.s32.totalorder %s15, 0
      %p91 = por %p89, %p90
      %s92 = ssub.s32 %s17, %s31
      %p93 = scmp.eq.s32.totalorder %s92, 0
      %s95 = sadd.s32 %s94, 1
      %s96 = scalar_select %p93, %s94, %s95
      %p99 = pneg %p93
      %p100 = scmp.eq.s32.totalorder %s9, 1
      %p101 = por %p99, %p100
      %p102 = scmp.ne.s32.totalorder %s94, %s97
      %p103 = scmp.eq.s32.totalorder %s9, 0
      %p104 = por %p102, %p103
      %p105 = scmp.ne.s32.totalorder %s94, %s97
      %p106 = scmp.eq.s32.totalorder %s14, 1
      %p107 = por %p105, %p106
      %p108 = scmp.ne.s32.totalorder %s97, %s98
      %p109 = scmp.eq.s32.totalorder %s14, 0
      %p110 = por %p108, %p109
      %p111 = scmp.ne.s32.totalorder %s97, %s98
      %p112 = scmp.eq.s32.totalorder %s15, 1
      %p113 = por %p111, %p112
      %p115 = scmp.ne.s32.totalorder %s98, %s114
      %p116 = scmp.eq.s32.totalorder %s15, 0
      %p117 = por %p115, %p116
      %s118 = ssub.s32 %s16, %s35
      %s119 = ssub.s32 %s17, %s31
      %s120 = sor.u32 %s118, %s119
      %p121 = scmp.eq.s32.totalorder %s120, 0
      %s123 = sadd.s32 %s122, 1
      %s124 = scalar_select %p121, %s122, %s123
      %p127 = pneg %p121
      %p128 = scmp.eq.s32.totalorder %s9, 1
      %p129 = por %p127, %p128
      %p130 = scmp.ne.s32.totalorder %s122, %s125
      %p131 = scmp.eq.s32.totalorder %s9, 0
      %p132 = por %p130, %p131
      %p133 = scmp.ne.s32.totalorder %s122, %s125
      %p134 = scmp.eq.s32.totalorder %s14, 1
      %p135 = por %p133, %p134
      %p136 = scmp.ne.s32.totalorder %s125, %s126
      %p137 = scmp.eq.s32.totalorder %s14, 0
      %p138 = por %p136, %p137
      %p139 = scmp.ne.s32.totalorder %s125, %s126
      %p140 = scmp.eq.s32.totalorder %s15, 1
      %p141 = por %p139, %p140
      %p143 = scmp.ne.s32.totalorder %s126, %s142
      %p144 = scmp.eq.s32.totalorder %s15, 0
      %p145 = por %p143, %p144
      %p146 = scmp.le.s32.totalorder 1, %s9
      %p147 = scmp.lt.s32.totalorder %s9, 3
      %p148 = pnand %p146, %p147
      %p149 = pneg %p148
      // Predicated region
      $region9: #{_lambda_.15} parent=5 // pred_check
        _
      $region10: #{_lambda_.15} parent=5 // pred_check_branch
        %151 = sbr.rel (%p148) target = $region12
      $region11: #{_lambda_.15} parent=5 // pred_region
        %s152 = ssub.s32 %s9, 1
        // Predicated region
        $region13: #{_lambda_.15} parent=11 // pred_check
          %p153 = pneg %p110
        $region14: #{_lambda_.15} parent=11 // pred_check_branch
          %155 = sbr.rel (%p153) target = $region16
        $region15: #{_lambda_.15} parent=11 // pred_region
          %p156 = scmp.lt.s32.totalorder %s20, 0
          %s157 = scalar_select %p156, %s20, 0
          %s158 = scalar_lea.vmem %s2, %s157
        $region16: #{_lambda_.15} parent=11 // pred_fallthru
          _
      $region12: #{_lambda_.15} parent=5 // pred_fallthru
        _
      %p159 = scmp.lt.s32.totalorder %s9, 2
      // Predicated region
      $region17: #{_lambda_.15} parent=5 // pred_check
        %p160 = pneg %p159
      $region18: #{_lambda_.15} parent=5 // pred_check_branch
        %162 = sbr.rel (%p160) target = $region20
      $region19: #{_lambda_.15} parent=5 // pred_region
        // Predicated region
        $region21: #{_lambda_.15} parent=19 // pred_check
          %p163 = pneg %p50
        $region22: #{_lambda_.15} parent=19 // pred_check_branch
          %165 = sbr.rel (%p163) target = $region24
        $region23: #{_lambda_.15} parent=19 // pred_region
          %s166 = sand.u32 %s40, 1
          %s167 = sand.u32 %s40, 1
          %s168 = smul.addr %s167, 512
          %s169 = scalar_lea.vmem [#allocation3], %s168
          %s170 = smul.u32 32, %s16
          %s171 = smul.u32 4, %s18
          %s172 = smul.addr %s170, 8
          %s173 = sadd.s32 %s171, %s172
          %s174 = smul.addr %s173, 4
          %s175 = scalar_lea.vmem %s0, %s174
          // Predicated region
          $region25: #{_lambda_.15} parent=23 // pred_check
            _
          $region26: #{_lambda_.15} parent=23 // pred_check_branch
            %177 = sbr.rel (0) target = $region28
          $region27: #{_lambda_.15} parent=23 // pred_region
            // Predicated region
            $region29: #{_lambda_.15} parent=27 // pred_check
              _
            $region30: #{_lambda_.15} parent=27 // pred_check_branch
              %179 = sbr.rel (0) target = $region32
            $region31: #{_lambda_.15} parent=27 // pred_region
              loop: start=0, step=1, limit=1
              $region33: #{_lambda_.15} parent=31 // loop_pre_header
                _
              $region34: #{_lambda_.15} parent=31 // loop_header
                %s181 = sphi 0, %s185
                %p182 = scmp.ge.s32.totalorder %s181, 1
                %s186 = sphi %s175, %s175
                %s187 = sphi %s169, %s169
              $region35: #{_lambda_.15} parent=31 // loop_header_branch
                %184 = sbr.rel (%p182) target = $region39
              $region36: #{_lambda_.15} parent=31 // loop_body
                %v188 = vld [vmem:[%s186] sm:$0xff]
                %189 = vst [vmem:[%s187] sm:$0xff] %v188
                %v190 = vld [vmem:[%s186 + $0x8] sm:$0xff]
                %191 = vst [vmem:[%s187 + $0x8] sm:$0xff] %v190
                %v192 = vld [vmem:[%s186 + $0x20] sm:$0xff]
                %193 = vst [vmem:[%s187 + $0x10] sm:$0xff] %v192
                %v194 = vld [vmem:[%s186 + $0x28] sm:$0xff]
                %195 = vst [vmem:[%s187 + $0x18] sm:$0xff] %v194
                %v196 = vld [vmem:[%s186 + $0x40] sm:$0xff]
                %197 = vst [vmem:[%s187 + $0x20] sm:$0xff] %v196
                %v198 = vld [vmem:[%s186 + $0x48] sm:$0xff]
                %199 = vst [vmem:[%s187 + $0x28] sm:$0xff] %v198
                %v200 = vld [vmem:[%s186 + $0x60] sm:$0xff]
                %201 = vst [vmem:[%s187 + $0x30] sm:$0xff] %v200
                %v202 = vld [vmem:[%s186 + $0x68] sm:$0xff]
                %203 = vst [vmem:[%s187 + $0x38] sm:$0xff] %v202
                %v204 = vld [vmem:[%s186 + $0x80] sm:$0xff]
                %205 = vst [vmem:[%s187 + $0x40] sm:$0xff] %v204
                %v206 = vld [vmem:[%s186 + $0x88] sm:$0xff]
                %207 = vst [vmem:[%s187 + $0x48] sm:$0xff] %v206
                %v208 = vld [vmem:[%s186 + $0xa0] sm:$0xff]
                %209 = vst [vmem:[%s187 + $0x50] sm:$0xff] %v208
                %v210 = vld [vmem:[%s186 + $0xa8] sm:$0xff]
                %211 = vst [vmem:[%s187 + $0x58] sm:$0xff] %v210
                %v212 = vld [vmem:[%s186 + $0xc0] sm:$0xff]
                %213 = vst [vmem:[%s187 + $0x60] sm:$0xff] %v212
                %v214 = vld [vmem:[%s186 + $0xc8] sm:$0xff]
                %215 = vst [vmem:[%s187 + $0x68] sm:$0xff] %v214
                %v216 = vld [vmem:[%s186 + $0xe0] sm:$0xff]
                %217 = vst [vmem:[%s187 + $0x70] sm:$0xff] %v216
                %v218 = vld [vmem:[%s186 + $0xe8] sm:$0xff]
                %219 = vst [vmem:[%s187 + $0x78] sm:$0xff] %v218
                %v220 = vld [vmem:[%s186 + $0x100] sm:$0xff]
                %221 = vst [vmem:[%s187 + $0x80] sm:$0xff] %v220
                %v222 = vld [vmem:[%s186 + $0x108] sm:$0xff]
                %223 = vst [vmem:[%s187 + $0x88] sm:$0xff] %v222
                %v224 = vld [vmem:[%s186 + $0x120] sm:$0xff]
                %225 = vst [vmem:[%s187 + $0x90] sm:$0xff] %v224
                %v226 = vld [vmem:[%s186 + $0x128] sm:$0xff]
                %227 = vst [vmem:[%s187 + $0x98] sm:$0xff] %v226
                %v228 = vld [vmem:[%s186 + $0x140] sm:$0xff]
                %229 = vst [vmem:[%s187 + $0xa0] sm:$0xff] %v228
                %v230 = vld [vmem:[%s186 + $0x148] sm:$0xff]
                %231 = vst [vmem:[%s187 + $0xa8] sm:$0xff] %v230
                %v232 = vld [vmem:[%s186 + $0x160] sm:$0xff]
                %233 = vst [vmem:[%s187 + $0xb0] sm:$0xff] %v232
                %v234 = vld [vmem:[%s186 + $0x168] sm:$0xff]
                %235 = vst [vmem:[%s187 + $0xb8] sm:$0xff] %v234
                %v236 = vld [vmem:[%s186 + $0x180] sm:$0xff]
                %237 = vst [vmem:[%s187 + $0xc0] sm:$0xff] %v236
                %v238 = vld [vmem:[%s186 + $0x188] sm:$0xff]
                %239 = vst [vmem:[%s187 + $0xc8] sm:$0xff] %v238
                %v240 = vld [vmem:[%s186 + $0x1a0] sm:$0xff]
                %241 = vst [vmem:[%s187 + $0xd0] sm:$0xff] %v240
                %v242 = vld [vmem:[%s186 + $0x1a8] sm:$0xff]
                %243 = vst [vmem:[%s187 + $0xd8] sm:$0xff] %v242
                %v244 = vld [vmem:[%s186 + $0x1c0] sm:$0xff]
                %245 = vst [vmem:[%s187 + $0xe0] sm:$0xff] %v244
                %v246 = vld [vmem:[%s186 + $0x1c8] sm:$0xff]
                %247 = vst [vmem:[%s187 + $0xe8] sm:$0xff] %v246
                %v248 = vld [vmem:[%s186 + $0x1e0] sm:$0xff]
                %249 = vst [vmem:[%s187 + $0xf0] sm:$0xff] %v248
                %v250 = vld [vmem:[%s186 + $0x1e8] sm:$0xff]
                %251 = vst [vmem:[%s187 + $0xf8] sm:$0xff] %v250
                %v252 = vld [vmem:[%s186 + $0x200] sm:$0xff]
                %253 = vst [vmem:[%s187 + $0x100] sm:$0xff] %v252
                %v254 = vld [vmem:[%s186 + $0x208] sm:$0xff]
                %255 = vst [vmem:[%s187 + $0x108] sm:$0xff] %v254
                %v256 = vld [vmem:[%s186 + $0x220] sm:$0xff]
                %257 = vst [vmem:[%s187 + $0x110] sm:$0xff] %v256
                %v258 = vld [vmem:[%s186 + $0x228] sm:$0xff]
                %259 = vst [vmem:[%s187 + $0x118] sm:$0xff] %v258
                %v260 = vld [vmem:[%s186 + $0x240] sm:$0xff]
                %261 = vst [vmem:[%s187 + $0x120] sm:$0xff] %v260
                %v262 = vld [vmem:[%s186 + $0x248] sm:$0xff]
                %263 = vst [vmem:[%s187 + $0x128] sm:$0xff] %v262
                %v264 = vld [vmem:[%s186 + $0x260] sm:$0xff]
                %265 = vst [vmem:[%s187 + $0x130] sm:$0xff] %v264
                %v266 = vld [vmem:[%s186 + $0x268] sm:$0xff]
                %267 = vst [vmem:[%s187 + $0x138] sm:$0xff] %v266
                %v268 = vld [vmem:[%s186 + $0x280] sm:$0xff]
                %269 = vst [vmem:[%s187 + $0x140] sm:$0xff] %v268
                %v270 = vld [vmem:[%s186 + $0x288] sm:$0xff]
                %271 = vst [vmem:[%s187 + $0x148] sm:$0xff] %v270
                %v272 = vld [vmem:[%s186 + $0x2a0] sm:$0xff]
                %273 = vst [vmem:[%s187 + $0x150] sm:$0xff] %v272
                %v274 = vld [vmem:[%s186 + $0x2a8] sm:$0xff]
                %275 = vst [vmem:[%s187 + $0x158] sm:$0xff] %v274
                %v276 = vld [vmem:[%s186 + $0x2c0] sm:$0xff]
                %277 = vst [vmem:[%s187 + $0x160] sm:$0xff] %v276
                %v278 = vld [vmem:[%s186 + $0x2c8] sm:$0xff]
                %279 = vst [vmem:[%s187 + $0x168] sm:$0xff] %v278
                %v280 = vld [vmem:[%s186 + $0x2e0] sm:$0xff]
                %281 = vst [vmem:[%s187 + $0x170] sm:$0xff] %v280
                %v282 = vld [vmem:[%s186 + $0x2e8] sm:$0xff]
                %283 = vst [vmem:[%s187 + $0x178] sm:$0xff] %v282
                %v284 = vld [vmem:[%s186 + $0x300] sm:$0xff]
                %285 = vst [vmem:[%s187 + $0x180] sm:$0xff] %v284
                %v286 = vld [vmem:[%s186 + $0x308] sm:$0xff]
                %287 = vst [vmem:[%s187 + $0x188] sm:$0xff] %v286
                %v288 = vld [vmem:[%s186 + $0x320] sm:$0xff]
                %289 = vst [vmem:[%s187 + $0x190] sm:$0xff] %v288
                %v290 = vld [vmem:[%s186 + $0x328] sm:$0xff]
                %291 = vst [vmem:[%s187 + $0x198] sm:$0xff] %v290
                %v292 = vld [vmem:[%s186 + $0x340] sm:$0xff]
                %293 = vst [vmem:[%s187 + $0x1a0] sm:$0xff] %v292
                %v294 = vld [vmem:[%s186 + $0x348] sm:$0xff]
                %295 = vst [vmem:[%s187 + $0x1a8] sm:$0xff] %v294
                %v296 = vld [vmem:[%s186 + $0x360] sm:$0xff]
                %297 = vst [vmem:[%s187 + $0x1b0] sm:$0xff] %v296
                %v298 = vld [vmem:[%s186 + $0x368] sm:$0xff]
                %299 = vst [vmem:[%s187 + $0x1b8] sm:$0xff] %v298
                %v300 = vld [vmem:[%s186 + $0x380] sm:$0xff]
                %301 = vst [vmem:[%s187 + $0x1c0] sm:$0xff] %v300
                %v302 = vld [vmem:[%s186 + $0x388] sm:$0xff]
                %303 = vst [vmem:[%s187 + $0x1c8] sm:$0xff] %v302
                %v304 = vld [vmem:[%s186 + $0x3a0] sm:$0xff]
                %305 = vst [vmem:[%s187 + $0x1d0] sm:$0xff] %v304
                %v306 = vld [vmem:[%s186 + $0x3a8] sm:$0xff]
                %307 = vst [vmem:[%s187 + $0x1d8] sm:$0xff] %v306
                %v308 = vld [vmem:[%s186 + $0x3c0] sm:$0xff]
                %309 = vst [vmem:[%s187 + $0x1e0] sm:$0xff] %v308
                %v310 = vld [vmem:[%s186 + $0x3c8] sm:$0xff]
                %311 = vst [vmem:[%s187 + $0x1e8] sm:$0xff] %v310
                %v312 = vld [vmem:[%s186 + $0x3e0] sm:$0xff]
                %313 = vst [vmem:[%s187 + $0x1f0] sm:$0xff] %v312
                %v314 = vld [vmem:[%s186 + $0x3e8] sm:$0xff]
                %315 = vst [vmem:[%s187 + $0x1f8] sm:$0xff] %v314
              $region37: #{_lambda_.15} parent=31 // loop_footer
                %s185 = sadd.s32 1, %s181
              $region38: #{_lambda_.15} parent=31 // loop_footer_branch
                %180 = sbr.rel target = $region34
              $region39: #{_lambda_.15} parent=31 // loop_exit
                _
            $region32: #{_lambda_.15} parent=27 // pred_fallthru
              _
            // Predicated region
            $region40: #{_lambda_.15} parent=27 // pred_check
              _
            $region41: #{_lambda_.15} parent=27 // pred_check_branch
              %317 = sbr.rel target = $region43
            $region42: #{_lambda_.15} parent=27 // pred_region
              _
            $region43: #{_lambda_.15} parent=27 // pred_fallthru
              _
          $region28: #{_lambda_.15} parent=23 // pred_fallthru
            _
          %318 = vnop
        $region24: #{_lambda_.15} parent=19 // pred_fallthru
          _
        // Predicated region
        $region44: #{_lambda_.15} parent=19 // pred_check
          %p319 = pneg %p78
        $region45: #{_lambda_.15} parent=19 // pred_check_branch
          %321 = sbr.rel (%p319) target = $region47
        $region46: #{_lambda_.15} parent=19 // pred_region
          %s322 = smul.u32 64, %s18
          %p323 = scmp.lt.s32.totalorder %s322, 127
          %s324 = scalar_select %p323, %s322, 127
          %p325 = scmp.lt.s32.totalorder %s17, 0
          %s326 = scalar_select %p325, %s17, 0
          %s327 = sadd.s32 %s326, %s324
          %s328 = smul.addr %s327, 4
          %s329 = scalar_lea.vmem %s1, %s328
          %s330 = smul.u32 64, %s18
        $region47: #{_lambda_.15} parent=19 // pred_fallthru
          _
      $region20: #{_lambda_.15} parent=5 // pred_fallthru
        _
      %p331 = scmp.le.s32.totalorder 1, %s9
      %p332 = scmp.lt.s32.totalorder %s9, 3
      %p333 = pnand %p331, %p332
      %p334 = pneg %p333
      // Predicated region
      $region48: #{_lambda_.15} parent=5 // pred_check
        _
      $region49: #{_lambda_.15} parent=5 // pred_check_branch
        %336 = sbr.rel (%p333) target = $region51
      $region50: #{_lambda_.15} parent=5 // pred_region
        %s337 = ssub.s32 %s9, 1
        %s338 = sand.u32 %s43, 1
        %s339 = sand.u32 %s43, 1
        %s340 = smul.addr %s339, 512
        %s341 = scalar_lea.vmem [#allocation3], %s340
        // Predicated region
        $region52: #{_lambda_.15} parent=50 // pred_check
          %p342 = pneg %p56
        $region53: #{_lambda_.15} parent=50 // pred_check_branch
          %344 = sbr.rel (%p342) target = $region55
        $region54: #{_lambda_.15} parent=50 // pred_region
          _
        $region55: #{_lambda_.15} parent=50 // pred_fallthru
          _
        %s345 = sand.u32 %s43, 1
        %s346 = sand.u32 %s43, 1
        %s347 = smul.addr %s346, 512
        %s348 = scalar_lea.vmem [#allocation3], %s347
        %p349 = pneg %p56
        %p350 = pneg %p53
        %s351 = smul.u32 64, %s21
        %p352 = scmp.lt.s32.totalorder %s351, 127
        %s353 = scalar_select %p352, %s351, 127
        %p354 = scmp.lt.s32.totalorder %s20, 0
        %s355 = scalar_select %p354, %s20, 0
        %s356 = sadd.s32 %s355, %s353
        %s357 = smul.addr %s356, 4
        %s358 = scalar_lea.vmem %s1, %s357
        %p359 = pneg %p84
        %p360 = pneg %p81
        %p361 = scmp.lt.s32.totalorder %s20, 0
        %s362 = scalar_select %p361, %s20, 0
        %s363 = scalar_lea.vmem %s2, %s362
        %p364 = pneg %p110
        %p365 = pneg %p107
        %p366 = pneg %p138
        %p367 = pneg %p135
        %s368 = smul.u32 32, %s19
        %p369 = scmp.lt.s32.totalorder %s368, 31
        %s370 = scalar_select %p369, %s368, 31
        %p371 = scmp.lt.s32.totalorder %s20, 0
        %s372 = scalar_select %p371, %s20, 0
        %s373 = sadd.s32 %s372, %s370
        %s374 = smul.addr %s373, 8
        %s375 = scalar_lea.vmem %s3, %s374
        %s376 = smul.u32 32, %s19
        %s377 = smul.u32 4, %s21
        %s378 = smul.u32 64, %s21
        %p379 = scmp.lt.s32.totalorder %s378, 127
        %s380 = scalar_select %p379, %s378, 127
        %p381 = scmp.lt.s32.totalorder %s20, 0
        %s382 = scalar_select %p381, %s20, 0
        %s383 = sadd.s32 %s382, %s380
        %s384 = smul.addr %s383, 4
        %s385 = scalar_lea.vmem %s1, %s384
        %s386 = smul.u32 64, %s21
        %p387 = scmp.lt.s32.totalorder %s20, 0
        %s388 = scalar_select %p387, %s20, 0
        %s389 = scalar_lea.vmem %s2, %s388
        %s390 = smul.u32 32, %s19
        %p391 = scmp.lt.s32.totalorder %s390, 31
        %s392 = scalar_select %p391, %s390, 31
        %p393 = scmp.lt.s32.totalorder %s20, 0
        %s394 = scalar_select %p393, %s20, 0
        %s395 = sadd.s32 %s394, %s392
        %s396 = smul.addr %s395, 8
        %s397 = scalar_lea.vmem %s3, %s396
        %s398 = smul.u32 32, %s19
        %p400 = scmp.eq.s32.totalorder %s21, 0
        // Predicated region
        $region56: #{_lambda_.15} parent=50 // pred_check
          %p401 = pneg %p400
        $region57: #{_lambda_.15} parent=50 // pred_check_branch
          %403 = sbr.rel (%p401) target = $region59
        $region58: #{_lambda_.15} parent=50 // pred_region
          %404 = vst [vmem:[#allocation2] sm:$0xff] 0.0
          %405 = vst [vmem:[#allocation2 + $0x8] sm:$0xff] 0.0
          %406 = vst [vmem:[#allocation2 + $0x10] sm:$0xff] 0.0
          %407 = vst [vmem:[#allocation2 + $0x18] sm:$0xff] 0.0
          %408 = vst [vmem:[#allocation2 + $0x20] sm:$0xff] 0.0
          %409 = vst [vmem:[#allocation2 + $0x28] sm:$0xff] 0.0
          %410 = vst [vmem:[#allocation2 + $0x30] sm:$0xff] 0.0
          %411 = vst [vmem:[#allocation2 + $0x38] sm:$0xff] 0.0
          %412 = vst [vmem:[#allocation2 + $0x40] sm:$0xff] 0.0
          %413 = vst [vmem:[#allocation2 + $0x48] sm:$0xff] 0.0
          %414 = vst [vmem:[#allocation2 + $0x50] sm:$0xff] 0.0
          %415 = vst [vmem:[#allocation2 + $0x58] sm:$0xff] 0.0
          %416 = vst [vmem:[#allocation2 + $0x60] sm:$0xff] 0.0
          %417 = vst [vmem:[#allocation2 + $0x68] sm:$0xff] 0.0
          %418 = vst [vmem:[#allocation2 + $0x70] sm:$0xff] 0.0
          %419 = vst [vmem:[#allocation2 + $0x78] sm:$0xff] 0.0
          %420 = vst [vmem:[#allocation2 + $0x80] sm:$0xff] 0.0
          %421 = vst [vmem:[#allocation2 + $0x88] sm:$0xff] 0.0
          %422 = vst [vmem:[#allocation2 + $0x90] sm:$0xff] 0.0
          %423 = vst [vmem:[#allocation2 + $0x98] sm:$0xff] 0.0
          %424 = vst [vmem:[#allocation2 + $0xa0] sm:$0xff] 0.0
          %425 = vst [vmem:[#allocation2 + $0xa8] sm:$0xff] 0.0
          %426 = vst [vmem:[#allocation2 + $0xb0] sm:$0xff] 0.0
          %427 = vst [vmem:[#allocation2 + $0xb8] sm:$0xff] 0.0
          %428 = vst [vmem:[#allocation2 + $0xc0] sm:$0xff] 0.0
          %429 = vst [vmem:[#allocation2 + $0xc8] sm:$0xff] 0.0
          %430 = vst [vmem:[#allocation2 + $0xd0] sm:$0xff] 0.0
          %431 = vst [vmem:[#allocation2 + $0xd8] sm:$0xff] 0.0
          %432 = vst [vmem:[#allocation2 + $0xe0] sm:$0xff] 0.0
          %433 = vst [vmem:[#allocation2 + $0xe8] sm:$0xff] 0.0
          %434 = vst [vmem:[#allocation2 + $0xf0] sm:$0xff] 0.0
          %435 = vst [vmem:[#allocation2 + $0xf8] sm:$0xff] 0.0
        $region59: #{_lambda_.15} parent=50 // pred_fallthru
          _
        %v436 = vld [vmem:[#allocation2] sm:$0xff]
        %v437 = vld [vmem:[#allocation2 + $0x8] sm:$0xff]
        %v438 = vld [vmem:[#allocation2 + $0x10] sm:$0xff]
        %v439 = vld [vmem:[#allocation2 + $0x18] sm:$0xff]
        %v440 = vld [vmem:[#allocation2 + $0x20] sm:$0xff]
        %v441 = vld [vmem:[#allocation2 + $0x28] sm:$0xff]
        %v442 = vld [vmem:[#allocation2 + $0x30] sm:$0xff]
        %v443 = vld [vmem:[#allocation2 + $0x38] sm:$0xff]
        %v444 = vld [vmem:[#allocation2 + $0x40] sm:$0xff]
        %v445 = vld [vmem:[#allocation2 + $0x48] sm:$0xff]
        %v446 = vld [vmem:[#allocation2 + $0x50] sm:$0xff]
        %v447 = vld [vmem:[#allocation2 + $0x58] sm:$0xff]
        %v448 = vld [vmem:[#allocation2 + $0x60] sm:$0xff]
        %v449 = vld [vmem:[#allocation2 + $0x68] sm:$0xff]
        %v450 = vld [vmem:[#allocation2 + $0x70] sm:$0xff]
        %v451 = vld [vmem:[#allocation2 + $0x78] sm:$0xff]
        %v452 = vld [vmem:[#allocation2 + $0x80] sm:$0xff]
        %v453 = vld [vmem:[#allocation2 + $0x88] sm:$0xff]
        %v454 = vld [vmem:[#allocation2 + $0x90] sm:$0xff]
        %v455 = vld [vmem:[#allocation2 + $0x98] sm:$0xff]
        %v456 = vld [vmem:[#allocation2 + $0xa0] sm:$0xff]
        %v457 = vld [vmem:[#allocation2 + $0xa8] sm:$0xff]
        %v458 = vld [vmem:[#allocation2 + $0xb0] sm:$0xff]
        %v459 = vld [vmem:[#allocation2 + $0xb8] sm:$0xff]
        %v460 = vld [vmem:[#allocation2 + $0xc0] sm:$0xff]
        %v461 = vld [vmem:[#allocation2 + $0xc8] sm:$0xff]
        %v462 = vld [vmem:[#allocation2 + $0xd0] sm:$0xff]
        %v463 = vld [vmem:[#allocation2 + $0xd8] sm:$0xff]
        %v464 = vld [vmem:[#allocation2 + $0xe0] sm:$0xff]
        %v465 = vld [vmem:[#allocation2 + $0xe8] sm:$0xff]
        %v466 = vld [vmem:[#allocation2 + $0xf0] sm:$0xff]
        %v467 = vld [vmem:[#allocation2 + $0xf8] sm:$0xff]
        %v468 = vld [vmem:[%s341] sm:$0xff]
        %v469 = vld [vmem:[%s341 + $0x8] sm:$0xff]
        %v470 = vld [vmem:[%s341 + $0x10] sm:$0xff]
        %v471 = vld [vmem:[%s341 + $0x18] sm:$0xff]
        %v472 = vld [vmem:[%s341 + $0x20] sm:$0xff]
        %v473 = vld [vmem:[%s341 + $0x28] sm:$0xff]
        %v474 = vld [vmem:[%s341 + $0x30] sm:$0xff]
        %v475 = vld [vmem:[%s341 + $0x38] sm:$0xff]
        %v476 = vld [vmem:[%s341 + $0x40] sm:$0xff]
        %v477 = vld [vmem:[%s341 + $0x48] sm:$0xff]
        %v478 = vld [vmem:[%s341 + $0x50] sm:$0xff]
        %v479 = vld [vmem:[%s341 + $0x58] sm:$0xff]
        %v480 = vld [vmem:[%s341 + $0x60] sm:$0xff]
        %v481 = vld [vmem:[%s341 + $0x68] sm:$0xff]
        %v482 = vld [vmem:[%s341 + $0x70] sm:$0xff]
        %v483 = vld [vmem:[%s341 + $0x78] sm:$0xff]
        %v484 = vld [vmem:[%s341 + $0x80] sm:$0xff]
        %v485 = vld [vmem:[%s341 + $0x88] sm:$0xff]
        %v486 = vld [vmem:[%s341 + $0x90] sm:$0xff]
        %v487 = vld [vmem:[%s341 + $0x98] sm:$0xff]
        %v488 = vld [vmem:[%s341 + $0xa0] sm:$0xff]
        %v489 = vld [vmem:[%s341 + $0xa8] sm:$0xff]
        %v490 = vld [vmem:[%s341 + $0xb0] sm:$0xff]
        %v491 = vld [vmem:[%s341 + $0xb8] sm:$0xff]
        %v492 = vld [vmem:[%s341 + $0xc0] sm:$0xff]
        %v493 = vld [vmem:[%s341 + $0xc8] sm:$0xff]
        %v494 = vld [vmem:[%s341 + $0xd0] sm:$0xff]
        %v495 = vld [vmem:[%s341 + $0xd8] sm:$0xff]
        %v496 = vld [vmem:[%s341 + $0xe0] sm:$0xff]
        %v497 = vld [vmem:[%s341 + $0xe8] sm:$0xff]
        %v498 = vld [vmem:[%s341 + $0xf0] sm:$0xff]
        %v499 = vld [vmem:[%s341 + $0xf8] sm:$0xff]
        %v500 = vld [vmem:[%s341 + $0x100] sm:$0xff]
        %v501 = vld [vmem:[%s341 + $0x108] sm:$0xff]
        %v502 = vld [vmem:[%s341 + $0x110] sm:$0xff]
        %v503 = vld [vmem:[%s341 + $0x118] sm:$0xff]
        %v504 = vld [vmem:[%s341 + $0x120] sm:$0xff]
        %v505 = vld [vmem:[%s341 + $0x128] sm:$0xff]
        %v506 = vld [vmem:[%s341 + $0x130] sm:$0xff]
        %v507 = vld [vmem:[%s341 + $0x138] sm:$0xff]
        %v508 = vld [vmem:[%s341 + $0x140] sm:$0xff]
        %v509 = vld [vmem:[%s341 + $0x148] sm:$0xff]
        %v510 = vld [vmem:[%s341 + $0x150] sm:$0xff]
        %v511 = vld [vmem:[%s341 + $0x158] sm:$0xff]
        %v512 = vld [vmem:[%s341 + $0x160] sm:$0xff]
        %v513 = vld [vmem:[%s341 + $0x168] sm:$0xff]
        %v514 = vld [vmem:[%s341 + $0x170] sm:$0xff]
        %v515 = vld [vmem:[%s341 + $0x178] sm:$0xff]
        %v516 = vld [vmem:[%s341 + $0x180] sm:$0xff]
        %v517 = vld [vmem:[%s341 + $0x188] sm:$0xff]
        %v518 = vld [vmem:[%s341 + $0x190] sm:$0xff]
        %v519 = vld [vmem:[%s341 + $0x198] sm:$0xff]
        %v520 = vld [vmem:[%s341 + $0x1a0] sm:$0xff]
        %v521 = vld [vmem:[%s341 + $0x1a8] sm:$0xff]
        %v522 = vld [vmem:[%s341 + $0x1b0] sm:$0xff]
        %v523 = vld [vmem:[%s341 + $0x1b8] sm:$0xff]
        %v524 = vld [vmem:[%s341 + $0x1c0] sm:$0xff]
        %v525 = vld [vmem:[%s341 + $0x1c8] sm:$0xff]
        %v526 = vld [vmem:[%s341 + $0x1d0] sm:$0xff]
        %v527 = vld [vmem:[%s341 + $0x1d8] sm:$0xff]
        %v528 = vld [vmem:[%s341 + $0x1e0] sm:$0xff]
        %v529 = vld [vmem:[%s341 + $0x1e8] sm:$0xff]
        %v530 = vld [vmem:[%s341 + $0x1f0] sm:$0xff]
        %v531 = vld [vmem:[%s341 + $0x1f8] sm:$0xff]
        %v532 = vld [vmem:[%s385] sm:$0xf]
        %v533 = vld [vmem:[%s385 + $0x4] sm:$0xf]
        %v534 = vld [vmem:[%s385 + $0x8] sm:$0xf]
        %v535 = vld [vmem:[%s385 + $0xc] sm:$0xf]
        %v536 = vld [vmem:[%s385 + $0x10] sm:$0xf]
        %v537 = vld [vmem:[%s385 + $0x14] sm:$0xf]
        %v538 = vld [vmem:[%s385 + $0x18] sm:$0xf]
        %v539 = vld [vmem:[%s385 + $0x1c] sm:$0xf]
        %v540 = vld [vmem:[%s385 + $0x20] sm:$0xf]
        %v541 = vld [vmem:[%s385 + $0x24] sm:$0xf]
        %v542 = vld [vmem:[%s385 + $0x28] sm:$0xf]
        %v543 = vld [vmem:[%s385 + $0x2c] sm:$0xf]
        %v544 = vld [vmem:[%s385 + $0x30] sm:$0xf]
        %v545 = vld [vmem:[%s385 + $0x34] sm:$0xf]
        %v546 = vld [vmem:[%s385 + $0x38] sm:$0xf]
        %v547 = vld [vmem:[%s385 + $0x3c] sm:$0xf]
        %v548 = vld [vmem:[%s385 + $0x40] sm:$0xf]
        %v549 = vld [vmem:[%s385 + $0x44] sm:$0xf]
        %v550 = vld [vmem:[%s385 + $0x48] sm:$0xf]
        %v551 = vld [vmem:[%s385 + $0x4c] sm:$0xf]
        %v552 = vld [vmem:[%s385 + $0x50] sm:$0xf]
        %v553 = vld [vmem:[%s385 + $0x54] sm:$0xf]
        %v554 = vld [vmem:[%s385 + $0x58] sm:$0xf]
        %v555 = vld [vmem:[%s385 + $0x5c] sm:$0xf]
        %v556 = vld [vmem:[%s385 + $0x60] sm:$0xf]
        %v557 = vld [vmem:[%s385 + $0x64] sm:$0xf]
        %v558 = vld [vmem:[%s385 + $0x68] sm:$0xf]
        %v559 = vld [vmem:[%s385 + $0x6c] sm:$0xf]
        %v560 = vld [vmem:[%s385 + $0x70] sm:$0xf]
        %v561 = vld [vmem:[%s385 + $0x74] sm:$0xf]
        %v562 = vld [vmem:[%s385 + $0x78] sm:$0xf]
        %v563 = vld [vmem:[%s385 + $0x7c] sm:$0xf]
        %v564 = vld [vmem:[%s385 + $0x80] sm:$0xf]
        %v565 = vld [vmem:[%s385 + $0x84] sm:$0xf]
        %v566 = vld [vmem:[%s385 + $0x88] sm:$0xf]
        %v567 = vld [vmem:[%s385 + $0x8c] sm:$0xf]
        %v568 = vld [vmem:[%s385 + $0x90] sm:$0xf]
        %v569 = vld [vmem:[%s385 + $0x94] sm:$0xf]
        %v570 = vld [vmem:[%s385 + $0x98] sm:$0xf]
        %v571 = vld [vmem:[%s385 + $0x9c] sm:$0xf]
        %v572 = vld [vmem:[%s385 + $0xa0] sm:$0xf]
        %v573 = vld [vmem:[%s385 + $0xa4] sm:$0xf]
        %v574 = vld [vmem:[%s385 + $0xa8] sm:$0xf]
        %v575 = vld [vmem:[%s385 + $0xac] sm:$0xf]
        %v576 = vld [vmem:[%s385 + $0xb0] sm:$0xf]
        %v577 = vld [vmem:[%s385 + $0xb4] sm:$0xf]
        %v578 = vld [vmem:[%s385 + $0xb8] sm:$0xf]
        %v579 = vld [vmem:[%s385 + $0xbc] sm:$0xf]
        %v580 = vld [vmem:[%s385 + $0xc0] sm:$0xf]
        %v581 = vld [vmem:[%s385 + $0xc4] sm:$0xf]
        %v582 = vld [vmem:[%s385 + $0xc8] sm:$0xf]
        %v583 = vld [vmem:[%s385 + $0xcc] sm:$0xf]
        %v584 = vld [vmem:[%s385 + $0xd0] sm:$0xf]
        %v585 = vld [vmem:[%s385 + $0xd4] sm:$0xf]
        %v586 = vld [vmem:[%s385 + $0xd8] sm:$0xf]
        %v587 = vld [vmem:[%s385 + $0xdc] sm:$0xf]
        %v588 = vld [vmem:[%s385 + $0xe0] sm:$0xf]
        %v589 = vld [vmem:[%s385 + $0xe4] sm:$0xf]
        %v590 = vld [vmem:[%s385 + $0xe8] sm:$0xf]
        %v591 = vld [vmem:[%s385 + $0xec] sm:$0xf]
        %v592 = vld [vmem:[%s385 + $0xf0] sm:$0xf]
        %v593 = vld [vmem:[%s385 + $0xf4] sm:$0xf]
        %v594 = vld [vmem:[%s385 + $0xf8] sm:$0xf]
        %v595 = vld [vmem:[%s385 + $0xfc] sm:$0xf]
        %v660 = vunpack.c.l.b16 %v468
        %v661 = vunpack.c.h.b16 %v468
        %v662 = vunpack.c.l.b16 %v469
        %v663 = vunpack.c.h.b16 %v469
        %v664 = vunpack.c.l.b16 %v470
        %v665 = vunpack.c.h.b16 %v470
        %v666 = vunpack.c.l.b16 %v471
        %v667 = vunpack.c.h.b16 %v471
        %v668 = vunpack.c.l.b16 %v472
        %v669 = vunpack.c.h.b16 %v472
        %v670 = vunpack.c.l.b16 %v473
        %v671 = vunpack.c.h.b16 %v473
        %v672 = vunpack.c.l.b16 %v474
        %v673 = vunpack.c.h.b16 %v474
        %v674 = vunpack.c.l.b16 %v475
        %v675 = vunpack.c.h.b16 %v475
        %v676 = vunpack.c.l.b16 %v476
        %v677 = vunpack.c.h.b16 %v476
        %v678 = vunpack.c.l.b16 %v477
        %v679 = vunpack.c.h.b16 %v477
        %v680 = vunpack.c.l.b16 %v478
        %v681 = vunpack.c.h.b16 %v478
        %v682 = vunpack.c.l.b16 %v479
        %v683 = vunpack.c.h.b16 %v479
        %v684 = vunpack.c.l.b16 %v480
        %v685 = vunpack.c.h.b16 %v480
        %v686 = vunpack.c.l.b16 %v481
        %v687 = vunpack.c.h.b16 %v481
        %v688 = vunpack.c.l.b16 %v482
        %v689 = vunpack.c.h.b16 %v482
        %v690 = vunpack.c.l.b16 %v483
        %v691 = vunpack.c.h.b16 %v483
        %v692 = vunpack.c.l.b16 %v484
        %v693 = vunpack.c.h.b16 %v484
        %v694 = vunpack.c.l.b16 %v485
        %v695 = vunpack.c.h.b16 %v485
        %v696 = vunpack.c.l.b16 %v486
        %v697 = vunpack.c.h.b16 %v486
        %v698 = vunpack.c.l.b16 %v487
        %v699 = vunpack.c.h.b16 %v487
        %v700 = vunpack.c.l.b16 %v488
        %v701 = vunpack.c.h.b16 %v488
        %v702 = vunpack.c.l.b16 %v489
        %v703 = vunpack.c.h.b16 %v489
        %v704 = vunpack.c.l.b16 %v490
        %v705 = vunpack.c.h.b16 %v490
        %v706 = vunpack.c.l.b16 %v491
        %v707 = vunpack.c.h.b16 %v491
        %v708 = vunpack.c.l.b16 %v492
        %v709 = vunpack.c.h.b16 %v492
        %v710 = vunpack.c.l.b16 %v493
        %v711 = vunpack.c.h.b16 %v493
        %v712 = vunpack.c.l.b16 %v494
        %v713 = vunpack.c.h.b16 %v494
        %v714 = vunpack.c.l.b16 %v495
        %v715 = vunpack.c.h.b16 %v495
        %v716 = vunpack.c.l.b16 %v496
        %v717 = vunpack.c.h.b16 %v496
        %v718 = vunpack.c.l.b16 %v497
        %v719 = vunpack.c.h.b16 %v497
        %v720 = vunpack.c.l.b16 %v498
        %v721 = vunpack.c.h.b16 %v498
        %v722 = vunpack.c.l.b16 %v499
        %v723 = vunpack.c.h.b16 %v499
        %v724 = vunpack.c.l.b16 %v500
        %v725 = vunpack.c.h.b16 %v500
        %v726 = vunpack.c.l.b16 %v501
        %v727 = vunpack.c.h.b16 %v501
        %v728 = vunpack.c.l.b16 %v502
        %v729 = vunpack.c.h.b16 %v502
        %v730 = vunpack.c.l.b16 %v503
        %v731 = vunpack.c.h.b16 %v503
        %v732 = vunpack.c.l.b16 %v504
        %v733 = vunpack.c.h.b16 %v504
        %v734 = vunpack.c.l.b16 %v505
        %v735 = vunpack.c.h.b16 %v505
        %v736 = vunpack.c.l.b16 %v506
        %v737 = vunpack.c.h.b16 %v506
        %v738 = vunpack.c.l.b16 %v507
        %v739 = vunpack.c.h.b16 %v507
        %v740 = vunpack.c.l.b16 %v508
        %v741 = vunpack.c.h.b16 %v508
        %v742 = vunpack.c.l.b16 %v509
        %v743 = vunpack.c.h.b16 %v509
        %v744 = vunpack.c.l.b16 %v510
        %v745 = vunpack.c.h.b16 %v510
        %v746 = vunpack.c.l.b16 %v511
        %v747 = vunpack.c.h.b16 %v511
        %v748 = vunpack.c.l.b16 %v512
        %v749 = vunpack.c.h.b16 %v512
        %v750 = vunpack.c.l.b16 %v513
        %v751 = vunpack.c.h.b16 %v513
        %v752 = vunpack.c.l.b16 %v514
        %v753 = vunpack.c.h.b16 %v514
        %v754 = vunpack.c.l.b16 %v515
        %v755 = vunpack.c.h.b16 %v515
        %v756 = vunpack.c.l.b16 %v516
        %v757 = vunpack.c.h.b16 %v516
        %v758 = vunpack.c.l.b16 %v517
        %v759 = vunpack.c.h.b16 %v517
        %v760 = vunpack.c.l.b16 %v518
        %v761 = vunpack.c.h.b16 %v518
        %v762 = vunpack.c.l.b16 %v519
        %v763 = vunpack.c.h.b16 %v519
        %v764 = vunpack.c.l.b16 %v520
        %v765 = vunpack.c.h.b16 %v520
        %v766 = vunpack.c.l.b16 %v521
        %v767 = vunpack.c.h.b16 %v521
        %v768 = vunpack.c.l.b16 %v522
        %v769 = vunpack.c.h.b16 %v522
        %v770 = vunpack.c.l.b16 %v523
        %v771 = vunpack.c.h.b16 %v523
        %v772 = vunpack.c.l.b16 %v524
        %v773 = vunpack.c.h.b16 %v524
        %v774 = vunpack.c.l.b16 %v525
        %v775 = vunpack.c.h.b16 %v525
        %v776 = vunpack.c.l.b16 %v526
        %v777 = vunpack.c.h.b16 %v526
        %v778 = vunpack.c.l.b16 %v527
        %v779 = vunpack.c.h.b16 %v527
        %v780 = vunpack.c.l.b16 %v528
        %v781 = vunpack.c.h.b16 %v528
        %v782 = vunpack.c.l.b16 %v529
        %v783 = vunpack.c.h.b16 %v529
        %v784 = vunpack.c.l.b16 %v530
        %v785 = vunpack.c.h.b16 %v530
        %v786 = vunpack.c.l.b16 %v531
        %v787 = vunpack.c.h.b16 %v531
        %v788 = vpack.c.b16 %v664, %v660
        %v789 = vpack.c.b16 %v665, %v661
        %v790 = vpack.c.b16 %v666, %v662
        %v791 = vpack.c.b16 %v667, %v663
        %v792 = vpack.c.b16 %v672, %v668
        %v793 = vpack.c.b16 %v673, %v669
        %v794 = vpack.c.b16 %v674, %v670
        %v795 = vpack.c.b16 %v675, %v671
        %v796 = vpack.c.b16 %v680, %v676
        %v797 = vpack.c.b16 %v681, %v677
        %v798 = vpack.c.b16 %v682, %v678
        %v799 = vpack.c.b16 %v683, %v679
        %v800 = vpack.c.b16 %v688, %v684
        %v801 = vpack.c.b16 %v689, %v685
        %v802 = vpack.c.b16 %v690, %v686
        %v803 = vpack.c.b16 %v691, %v687
        %v804 = vpack.c.b16 %v696, %v692
        %v805 = vpack.c.b16 %v697, %v693
        %v806 = vpack.c.b16 %v698, %v694
        %v807 = vpack.c.b16 %v699, %v695
        %v808 = vpack.c.b16 %v704, %v700
        %v809 = vpack.c.b16 %v705, %v701
        %v810 = vpack.c.b16 %v706, %v702
        %v811 = vpack.c.b16 %v707, %v703
        %v812 = vpack.c.b16 %v712, %v708
        %v813 = vpack.c.b16 %v713, %v709
        %v814 = vpack.c.b16 %v714, %v710
        %v815 = vpack.c.b16 %v715, %v711
        %v816 = vpack.c.b16 %v720, %v716
        %v817 = vpack.c.b16 %v721, %v717
        %v818 = vpack.c.b16 %v722, %v718
        %v819 = vpack.c.b16 %v723, %v719
        %v820 = vpack.c.b16 %v728, %v724
        %v821 = vpack.c.b16 %v729, %v725
        %v822 = vpack.c.b16 %v730, %v726
        %v823 = vpack.c.b16 %v731, %v727
        %v824 = vpack.c.b16 %v736, %v732
        %v825 = vpack.c.b16 %v737, %v733
        %v826 = vpack.c.b16 %v738, %v734
        %v827 = vpack.c.b16 %v739, %v735
        %v828 = vpack.c.b16 %v744, %v740
        %v829 = vpack.c.b16 %v745, %v741
        %v830 = vpack.c.b16 %v746, %v742
        %v831 = vpack.c.b16 %v747, %v743
        %v832 = vpack.c.b16 %v752, %v748
        %v833 = vpack.c.b16 %v753, %v749
        %v834 = vpack.c.b16 %v754, %v750
        %v835 = vpack.c.b16 %v755, %v751
        %v836 = vpack.c.b16 %v760, %v756
        %v837 = vpack.c.b16 %v761, %v757
        %v838 = vpack.c.b16 %v762, %v758
        %v839 = vpack.c.b16 %v763, %v759
        %v840 = vpack.c.b16 %v768, %v764
        %v841 = vpack.c.b16 %v769, %v765
        %v842 = vpack.c.b16 %v770, %v766
        %v843 = vpack.c.b16 %v771, %v767
        %v844 = vpack.c.b16 %v776, %v772
        %v845 = vpack.c.b16 %v777, %v773
        %v846 = vpack.c.b16 %v778, %v774
        %v847 = vpack.c.b16 %v779, %v775
        %v848 = vpack.c.b16 %v784, %v780
        %v849 = vpack.c.b16 %v785, %v781
        %v850 = vpack.c.b16 %v786, %v782
        %v851 = vpack.c.b16 %v787, %v783
        %v980 = vunpack.c.l.b16 %v532
        %v981 = vunpack.c.l.b16 %v533
        %v982 = vunpack.c.l.b16 %v534
        %v983 = vunpack.c.l.b16 %v535
        %v984 = vunpack.c.l.b16 %v536
        %v985 = vunpack.c.l.b16 %v537
        %v986 = vunpack.c.l.b16 %v538
        %v987 = vunpack.c.l.b16 %v539
        %v988 = vunpack.c.l.b16 %v540
        %v989 = vunpack.c.l.b16 %v541
        %v990 = vunpack.c.l.b16 %v542
        %v991 = vunpack.c.l.b16 %v543
        %v992 = vunpack.c.l.b16 %v544
        %v993 = vunpack.c.l.b16 %v545
        %v994 = vunpack.c.l.b16 %v546
        %v995 = vunpack.c.l.b16 %v547
        %v996 = vunpack.c.l.b16 %v548
        %v997 = vunpack.c.l.b16 %v549
        %v998 = vunpack.c.l.b16 %v550
        %v999 = vunpack.c.l.b16 %v551
        %v1000 = vunpack.c.l.b16 %v552
        %v1001 = vunpack.c.l.b16 %v553
        %v1002 = vunpack.c.l.b16 %v554
        %v1003 = vunpack.c.l.b16 %v555
        %v1004 = vunpack.c.l.b16 %v556
        %v1005 = vunpack.c.l.b16 %v557
        %v1006 = vunpack.c.l.b16 %v558
        %v1007 = vunpack.c.l.b16 %v559
        %v1008 = vunpack.c.l.b16 %v560
        %v1009 = vunpack.c.l.b16 %v561
        %v1010 = vunpack.c.l.b16 %v562
        %v1011 = vunpack.c.l.b16 %v563
        %v1012 = vunpack.c.l.b16 %v564
        %v1013 = vunpack.c.l.b16 %v565
        %v1014 = vunpack.c.l.b16 %v566
        %v1015 = vunpack.c.l.b16 %v567
        %v1016 = vunpack.c.l.b16 %v568
        %v1017 = vunpack.c.l.b16 %v569
        %v1018 = vunpack.c.l.b16 %v570
        %v1019 = vunpack.c.l.b16 %v571
        %v1020 = vunpack.c.l.b16 %v572
        %v1021 = vunpack.c.l.b16 %v573
        %v1022 = vunpack.c.l.b16 %v574
        %v1023 = vunpack.c.l.b16 %v575
        %v1024 = vunpack.c.l.b16 %v576
        %v1025 = vunpack.c.l.b16 %v577
        %v1026 = vunpack.c.l.b16 %v578
        %v1027 = vunpack.c.l.b16 %v579
        %v1028 = vunpack.c.l.b16 %v580
        %v1029 = vunpack.c.l.b16 %v581
        %v1030 = vunpack.c.l.b16 %v582
        %v1031 = vunpack.c.l.b16 %v583
        %v1032 = vunpack.c.l.b16 %v584
        %v1033 = vunpack.c.l.b16 %v585
        %v1034 = vunpack.c.l.b16 %v586
        %v1035 = vunpack.c.l.b16 %v587
        %v1036 = vunpack.c.l.b16 %v588
        %v1037 = vunpack.c.l.b16 %v589
        %v1038 = vunpack.c.l.b16 %v590
        %v1039 = vunpack.c.l.b16 %v591
        %v1040 = vunpack.c.l.b16 %v592
        %v1041 = vunpack.c.l.b16 %v593
        %v1042 = vunpack.c.l.b16 %v594
        %v1043 = vunpack.c.l.b16 %v595
        %v1044 = vpack.c.b16 %v981, %v980
        %v1045 = vpack.c.b16 %v983, %v982
        %v1046 = vpack.c.b16 %v985, %v984
        %v1047 = vpack.c.b16 %v987, %v986
        %v1048 = vpack.c.b16 %v989, %v988
        %v1049 = vpack.c.b16 %v991, %v990
        %v1050 = vpack.c.b16 %v993, %v992
        %v1051 = vpack.c.b16 %v995, %v994
        %v1052 = vpack.c.b16 %v997, %v996
        %v1053 = vpack.c.b16 %v999, %v998
        %v1054 = vpack.c.b16 %v1001, %v1000
        %v1055 = vpack.c.b16 %v1003, %v1002
        %v1056 = vpack.c.b16 %v1005, %v1004
        %v1057 = vpack.c.b16 %v1007, %v1006
        %v1058 = vpack.c.b16 %v1009, %v1008
        %v1059 = vpack.c.b16 %v1011, %v1010
        %v1060 = vpack.c.b16 %v1013, %v1012
        %v1061 = vpack.c.b16 %v1015, %v1014
        %v1062 = vpack.c.b16 %v1017, %v1016
        %v1063 = vpack.c.b16 %v1019, %v1018
        %v1064 = vpack.c.b16 %v1021, %v1020
        %v1065 = vpack.c.b16 %v1023, %v1022
        %v1066 = vpack.c.b16 %v1025, %v1024
        %v1067 = vpack.c.b16 %v1027, %v1026
        %v1068 = vpack.c.b16 %v1029, %v1028
        %v1069 = vpack.c.b16 %v1031, %v1030
        %v1070 = vpack.c.b16 %v1033, %v1032
        %v1071 = vpack.c.b16 %v1035, %v1034
        %v1072 = vpack.c.b16 %v1037, %v1036
        %v1073 = vpack.c.b16 %v1039, %v1038
        %v1074 = vpack.c.b16 %v1041, %v1040
        %v1075 = vpack.c.b16 %v1043, %v1042
        %1108 = vmatprep.subr.bf16.mxu0 0
        %1109 = vmatpush1.bf16.msra.mxu0 %v1044
        %1110 = vmatprep.subr.bf16.mxu0 0
        %1111 = vmatpush1.bf16.msra.mxu0 %v1045
        %1112 = vmatprep.subr.bf16.mxu0 0
        %1113 = vmatpush1.bf16.msra.mxu0 %v1046
        %1114 = vmatprep.subr.bf16.mxu0 0
        %1115 = vmatpush1.bf16.msra.mxu0 %v1047
        %1116 = vmatprep.subr.bf16.mxu0 0
        %1117 = vmatpush1.bf16.msra.mxu0 %v1048
        %1118 = vmatprep.subr.bf16.mxu0 0
        %1119 = vmatpush1.bf16.msra.mxu0 %v1049
        %1120 = vmatprep.subr.bf16.mxu0 0
        %1121 = vmatpush1.bf16.msra.mxu0 %v1050
        %1122 = vmatprep.subr.bf16.mxu0 0
        %1123 = vmatpush1.bf16.msra.mxu0 %v1051
        %1124 = vmatprep.subr.bf16.mxu0 0
        %1125 = vmatpush1.bf16.msra.mxu0 %v1052
        %1126 = vmatprep.subr.bf16.mxu0 0
        %1127 = vmatpush1.bf16.msra.mxu0 %v1053
        %1128 = vmatprep.subr.bf16.mxu0 0
        %1129 = vmatpush1.bf16.msra.mxu0 %v1054
        %1130 = vmatprep.subr.bf16.mxu0 0
        %1131 = vmatpush1.bf16.msra.mxu0 %v1055
        %1132 = vmatprep.subr.bf16.mxu0 0
        %1133 = vmatpush1.bf16.msra.mxu0 %v1056
        %1134 = vmatprep.subr.bf16.mxu0 0
        %1135 = vmatpush1.bf16.msra.mxu0 %v1057
        %1136 = vmatprep.subr.bf16.mxu0 0
        %1137 = vmatpush1.bf16.msra.mxu0 %v1058
        %1138 = vmatprep.subr.bf16.mxu0 0
        %1139 = vmatpush1.bf16.msra.mxu0 %v1059
        %1140 = vmatprep.mubr.bf16.mxu0 %v789
        %1141 = vmatmul.mubr.bf16.gmra.mrb[0].mxu0 %v788
        %v1142 = vpop.f32.mrb[0].mxu0
        %v1143 = vadd.f32 0.0, %v1142
        %v1144 = vpop.f32.mrb[0].mxu0
        %v1145 = vpop.f32.mrb[0].mxu0
        %v1146 = vadd.f32 0.0, %v1145
        %v1147 = vpop.f32.mrb[0].mxu0
        %1148 = vmatprep.mubr.bf16.mxu0 %v793
        %1149 = vmatmul.mubr.bf16.gmra.mrb[0].mxu0 %v792
        %v1150 = vpop.f32.mrb[0].mxu0
        %v1151 = vadd.f32 0.0, %v1150
        %v1152 = vpop.f32.mrb[0].mxu0
        %v1153 = vpop.f32.mrb[0].mxu0
        %v1154 = vadd.f32 0.0, %v1153
        %v1155 = vpop.f32.mrb[0].mxu0
        %1156 = vmatprep.mubr.bf16.mxu0 %v797
        %1157 = vmatmul.mubr.bf16.gmra.mrb[0].mxu0 %v796
        %v1158 = vpop.f32.mrb[0].mxu0
        %v1159 = vadd.f32 0.0, %v1158
        %v1160 = vpop.f32.mrb[0].mxu0
        %v1161 = vpop.f32.mrb[0].mxu0
        %v1162 = vadd.f32 0.0, %v1161
        %v1163 = vpop.f32.mrb[0].mxu0
        %1164 = vmatprep.mubr.bf16.mxu0 %v801
        %1165 = vmatmul.mubr.bf16.gmra.mrb[0].mxu0 %v800
        %v1166 = vpop.f32.mrb[0].mxu0
        %v1167 = vadd.f32 0.0, %v1166
        %v1168 = vpop.f32.mrb[0].mxu0
        %v1169 = vpop.f32.mrb[0].mxu0
        %v1170 = vadd.f32 0.0, %v1169
        %v1171 = vpop.f32.mrb[0].mxu0
        %1172 = vmatprep.mubr.bf16.mxu0 %v805
        %1173 = vmatmul.mubr.bf16.gmra.mrb[0].mxu0 %v804
        %v1174 = vpop.f32.mrb[0].mxu0
        %v1175 = vadd.f32 0.0, %v1174
        %v1176 = vpop.f32.mrb[0].mxu0
        %v1177 = vpop.f32.mrb[0].mxu0
        %v1178 = vadd.f32 0.0, %v1177
        %v1179 = vpop.f32.mrb[0].mxu0
        %1180 = vmatprep.mubr.bf16.mxu0 %v809
        %1181 = vmatmul.mubr.bf16.gmra.mrb[0].mxu0 %v808
        %v1182 = vpop.f32.mrb[0].mxu0
        %v1183 = vadd.f32 0.0, %v1182
        %v1184 = vpop.f32.mrb[0].mxu0
        %v1185 = vpop.f32.mrb[0].mxu0
        %v1186 = vadd.f32 0.0, %v1185
        %v1187 = vpop.f32.mrb[0].mxu0
        %1188 = vmatprep.mubr.bf16.mxu0 %v813
        %1189 = vmatmul.mubr.bf16.gmra.mrb[0].mxu0 %v812
        %v1190 = vpop.f32.mrb[0].mxu0
        %v1191 = vadd.f32 0.0, %v1190
        %v1192 = vpop.f32.mrb[0].mxu0
        %v1193 = vpop.f32.mrb[0].mxu0
        %v1194 = vadd.f32 0.0, %v1193
        %v1195 = vpop.f32.mrb[0].mxu0
        %1196 = vmatprep.mubr.bf16.mxu0 %v817
        %1197 = vmatmul.mubr.bf16.gmra.mrb[0].mxu0 %v816
        %v1198 = vpop.f32.mrb[0].mxu0
        %v1199 = vadd.f32 0.0, %v1198
        %v1200 = vpop.f32.mrb[0].mxu0
        %v1201 = vpop.f32.mrb[0].mxu0
        %v1202 = vadd.f32 0.0, %v1201
        %v1203 = vpop.f32.mrb[0].mxu0
        %1204 = vmatprep.mubr.bf16.mxu0 %v821
        %1205 = vmatmul.mubr.bf16.gmra.mrb[0].mxu0 %v820
        %v1206 = vpop.f32.mrb[0].mxu0
        %v1207 = vadd.f32 0.0, %v1206
        %v1208 = vpop.f32.mrb[0].mxu0
        %v1209 = vpop.f32.mrb[0].mxu0
        %v1210 = vadd.f32 0.0, %v1209
        %v1211 = vpop.f32.mrb[0].mxu0
        %1212 = vmatprep.mubr.bf16.mxu0 %v825
        %1213 = vmatmul.mubr.bf16.gmra.mrb[0].mxu0 %v824
        %v1214 = vpop.f32.mrb[0].mxu0
        %v1215 = vadd.f32 0.0, %v1214
        %v1216 = vpop.f32.mrb[0].mxu0
        %v1217 = vpop.f32.mrb[0].mxu0
        %v1218 = vadd.f32 0.0, %v1217
        %v1219 = vpop.f32.mrb[0].mxu0
        %1220 = vmatprep.mubr.bf16.mxu0 %v829
        %1221 = vmatmul.mubr.bf16.gmra.mrb[0].mxu0 %v828
        %v1222 = vpop.f32.mrb[0].mxu0
        %v1223 = vadd.f32 0.0, %v1222
        %v1224 = vpop.f32.mrb[0].mxu0
        %v1225 = vpop.f32.mrb[0].mxu0
        %v1226 = vadd.f32 0.0, %v1225
        %v1227 = vpop.f32.mrb[0].mxu0
        %1228 = vmatprep.mubr.bf16.mxu0 %v833
        %1229 = vmatmul.mubr.bf16.gmra.mrb[0].mxu0 %v832
        %v1230 = vpop.f32.mrb[0].mxu0
        %v1231 = vadd.f32 0.0, %v1230
        %v1232 = vpop.f32.mrb[0].mxu0
        %v1233 = vpop.f32.mrb[0].mxu0
        %v1234 = vadd.f32 0.0, %v1233
        %v1235 = vpop.f32.mrb[0].mxu0
        %1236 = vmatprep.mubr.bf16.mxu0 %v837
        %1237 = vmatmul.mubr.bf16.gmra.mrb[0].mxu0 %v836
        %v1238 = vpop.f32.mrb[0].mxu0
        %v1239 = vadd.f32 0.0, %v1238
        %v1240 = vpop.f32.mrb[0].mxu0
        %v1241 = vpop.f32.mrb[0].mxu0
        %v1242 = vadd.f32 0.0, %v1241
        %v1243 = vpop.f32.mrb[0].mxu0
        %1244 = vmatprep.mubr.bf16.mxu0 %v841
        %1245 = vmatmul.mubr.bf16.gmra.mrb[0].mxu0 %v840
        %v1246 = vpop.f32.mrb[0].mxu0
        %v1247 = vadd.f32 0.0, %v1246
        %v1248 = vpop.f32.mrb[0].mxu0
        %v1249 = vpop.f32.mrb[0].mxu0
        %v1250 = vadd.f32 0.0, %v1249
        %v1251 = vpop.f32.mrb[0].mxu0
        %1252 = vmatprep.mubr.bf16.mxu0 %v845
        %1253 = vmatmul.mubr.bf16.gmra.mrb[0].mxu0 %v844
        %v1254 = vpop.f32.mrb[0].mxu0
        %v1255 = vadd.f32 0.0, %v1254
        %v1256 = vpop.f32.mrb[0].mxu0
        %v1257 = vpop.f32.mrb[0].mxu0
        %v1258 = vadd.f32 0.0, %v1257
        %v1259 = vpop.f32.mrb[0].mxu0
        %1260 = vmatprep.mubr.bf16.mxu0 %v849
        %1261 = vmatmul.mubr.bf16.gmra.mrb[0].mxu0 %v848
        %v1262 = vpop.f32.mrb[0].mxu0
        %v1263 = vadd.f32 0.0, %v1262
        %v1264 = vpop.f32.mrb[0].mxu0
        %v1265 = vpop.f32.mrb[0].mxu0
        %v1266 = vadd.f32 0.0, %v1265
        %v1267 = vpop.f32.mrb[0].mxu0
        %1268 = vdwg.mxu0
        %1269 = vmatprep.subr.bf16.mxu0 0
        %1270 = vmatpush1.bf16.msra.mxu0 %v1060
        %1271 = vmatprep.subr.bf16.mxu0 0
        %1272 = vmatpush1.bf16.msra.mxu0 %v1061
        %1273 = vmatprep.subr.bf16.mxu0 0
        %1274 = vmatpush1.bf16.msra.mxu0 %v1062
        %1275 = vmatprep.subr.bf16.mxu0 0
        %1276 = vmatpush1.bf16.msra.mxu0 %v1063
        %1277 = vmatprep.subr.bf16.mxu0 0
        %1278 = vmatpush1.bf16.msra.mxu0 %v1064
        %1279 = vmatprep.subr.bf16.mxu0 0
        %1280 = vmatpush1.bf16.msra.mxu0 %v1065
        %1281 = vmatprep.subr.bf16.mxu0 0
        %1282 = vmatpush1.bf16.msra.mxu0 %v1066
        %1283 = vmatprep.subr.bf16.mxu0 0
        %1284 = vmatpush1.bf16.msra.mxu0 %v1067
        %1285 = vmatprep.subr.bf16.mxu0 0
        %1286 = vmatpush1.bf16.msra.mxu0 %v1068
        %1287 = vmatprep.subr.bf16.mxu0 0
        %1288 = vmatpush1.bf16.msra.mxu0 %v1069
        %1289 = vmatprep.subr.bf16.mxu0 0
        %1290 = vmatpush1.bf16.msra.mxu0 %v1070
        %1291 = vmatprep.subr.bf16.mxu0 0
        %1292 = vmatpush1.bf16.msra.mxu0 %v1071
        %1293 = vmatprep.subr.bf16.mxu0 0
        %1294 = vmatpush1.bf16.msra.mxu0 %v1072
        %1295 = vmatprep.subr.bf16.mxu0 0
        %1296 = vmatpush1.bf16.msra.mxu0 %v1073
        %1297 = vmatprep.subr.bf16.mxu0 0
        %1298 = vmatpush1.bf16.msra.mxu0 %v1074
        %1299 = vmatprep.subr.bf16.mxu0 0
        %1300 = vmatpush1.bf16.msra.mxu0 %v1075
        %1301 = vmatprep.mubr.bf16.mxu0 %v791
        %1302 = vmatmul.mubr.bf16.gmra.mrb[0].mxu0 %v790
        %v1303 = vpop.f32.mrb[0].mxu0
        %v1304 = vadd.f32 %v1143, %v1303
        %v1305 = vpop.f32.mrb[0].mxu0
        %v1306 = vpop.f32.mrb[0].mxu0
        %v1307 = vadd.f32 %v1146, %v1306
        %v1308 = vpop.f32.mrb[0].mxu0
        %1309 = vmatprep.mubr.bf16.mxu0 %v795
        %1310 = vmatmul.mubr.bf16.gmra.mrb[0].mxu0 %v794
        %v1311 = vpop.f32.mrb[0].mxu0
        %v1312 = vadd.f32 %v1151, %v1311
        %v1313 = vpop.f32.mrb[0].mxu0
        %v1314 = vpop.f32.mrb[0].mxu0
        %v1315 = vadd.f32 %v1154, %v1314
        %v1316 = vpop.f32.mrb[0].mxu0
        %1317 = vmatprep.mubr.bf16.mxu0 %v799
        %1318 = vmatmul.mubr.bf16.gmra.mrb[0].mxu0 %v798
        %v1319 = vpop.f32.mrb[0].mxu0
        %v1320 = vadd.f32 %v1159, %v1319
        %v1321 = vpop.f32.mrb[0].mxu0
        %v1322 = vpop.f32.mrb[0].mxu0
        %v1323 = vadd.f32 %v1162, %v1322
        %v1324 = vpop.f32.mrb[0].mxu0
        %1325 = vmatprep.mubr.bf16.mxu0 %v803
        %1326 = vmatmul.mubr.bf16.gmra.mrb[0].mxu0 %v802
        %v1327 = vpop.f32.mrb[0].mxu0
        %v1328 = vadd.f32 %v1167, %v1327
        %v1329 = vpop.f32.mrb[0].mxu0
        %v1330 = vpop.f32.mrb[0].mxu0
        %v1331 = vadd.f32 %v1170, %v1330
        %v1332 = vpop.f32.mrb[0].mxu0
        %1333 = vmatprep.mubr.bf16.mxu0 %v807
        %1334 = vmatmul.mubr.bf16.gmra.mrb[0].mxu0 %v806
        %v1335 = vpop.f32.mrb[0].mxu0
        %v1336 = vadd.f32 %v1175, %v1335
        %v1337 = vpop.f32.mrb[0].mxu0
        %v1338 = vpop.f32.mrb[0].mxu0
        %v1339 = vadd.f32 %v1178, %v1338
        %v1340 = vpop.f32.mrb[0].mxu0
        %1341 = vmatprep.mubr.bf16.mxu0 %v811
        %1342 = vmatmul.mubr.bf16.gmra.mrb[0].mxu0 %v810
        %v1343 = vpop.f32.mrb[0].mxu0
        %v1344 = vadd.f32 %v1183, %v1343
        %v1345 = vpop.f32.mrb[0].mxu0
        %v1346 = vpop.f32.mrb[0].mxu0
        %v1347 = vadd.f32 %v1186, %v1346
        %v1348 = vpop.f32.mrb[0].mxu0
        %1349 = vmatprep.mubr.bf16.mxu0 %v815
        %1350 = vmatmul.mubr.bf16.gmra.mrb[0].mxu0 %v814
        %v1351 = vpop.f32.mrb[0].mxu0
        %v1352 = vadd.f32 %v1191, %v1351
        %v1353 = vpop.f32.mrb[0].mxu0
        %v1354 = vpop.f32.mrb[0].mxu0
        %v1355 = vadd.f32 %v1194, %v1354
        %v1356 = vpop.f32.mrb[0].mxu0
        %1357 = vmatprep.mubr.bf16.mxu0 %v819
        %1358 = vmatmul.mubr.bf16.gmra.mrb[0].mxu0 %v818
        %v1359 = vpop.f32.mrb[0].mxu0
        %v1360 = vadd.f32 %v1199, %v1359
        %v1361 = vpop.f32.mrb[0].mxu0
        %v1362 = vpop.f32.mrb[0].mxu0
        %v1363 = vadd.f32 %v1202, %v1362
        %v1364 = vpop.f32.mrb[0].mxu0
        %1365 = vmatprep.mubr.bf16.mxu0 %v823
        %1366 = vmatmul.mubr.bf16.gmra.mrb[0].mxu0 %v822
        %v1367 = vpop.f32.mrb[0].mxu0
        %v1368 = vadd.f32 %v1207, %v1367
        %v1369 = vpop.f32.mrb[0].mxu0
        %v1370 = vpop.f32.mrb[0].mxu0
        %v1371 = vadd.f32 %v1210, %v1370
        %v1372 = vpop.f32.mrb[0].mxu0
        %1373 = vmatprep.mubr.bf16.mxu0 %v827
        %1374 = vmatmul.mubr.bf16.gmra.mrb[0].mxu0 %v826
        %v1375 = vpop.f32.mrb[0].mxu0
        %v1376 = vadd.f32 %v1215, %v1375
        %v1377 = vpop.f32.mrb[0].mxu0
        %v1378 = vpop.f32.mrb[0].mxu0
        %v1379 = vadd.f32 %v1218, %v1378
        %v1380 = vpop.f32.mrb[0].mxu0
        %1381 = vmatprep.mubr.bf16.mxu0 %v831
        %1382 = vmatmul.mubr.bf16.gmra.mrb[0].mxu0 %v830
        %v1383 = vpop.f32.mrb[0].mxu0
        %v1384 = vadd.f32 %v1223, %v1383
        %v1385 = vpop.f32.mrb[0].mxu0
        %v1386 = vpop.f32.mrb[0].mxu0
        %v1387 = vadd.f32 %v1226, %v1386
        %v1388 = vpop.f32.mrb[0].mxu0
        %1389 = vmatprep.mubr.bf16.mxu0 %v835
        %1390 = vmatmul.mubr.bf16.gmra.mrb[0].mxu0 %v834
        %v1391 = vpop.f32.mrb[0].mxu0
        %v1392 = vadd.f32 %v1231, %v1391
        %v1393 = vpop.f32.mrb[0].mxu0
        %v1394 = vpop.f32.mrb[0].mxu0
        %v1395 = vadd.f32 %v1234, %v1394
        %v1396 = vpop.f32.mrb[0].mxu0
        %1397 = vmatprep.mubr.bf16.mxu0 %v839
        %1398 = vmatmul.mubr.bf16.gmra.mrb[0].mxu0 %v838
        %v1399 = vpop.f32.mrb[0].mxu0
        %v1400 = vadd.f32 %v1239, %v1399
        %v1401 = vpop.f32.mrb[0].mxu0
        %v1402 = vpop.f32.mrb[0].mxu0
        %v1403 = vadd.f32 %v1242, %v1402
        %v1404 = vpop.f32.mrb[0].mxu0
        %1405 = vmatprep.mubr.bf16.mxu0 %v843
        %1406 = vmatmul.mubr.bf16.gmra.mrb[0].mxu0 %v842
        %v1407 = vpop.f32.mrb[0].mxu0
        %v1408 = vadd.f32 %v1247, %v1407
        %v1409 = vpop.f32.mrb[0].mxu0
        %v1410 = vpop.f32.mrb[0].mxu0
        %v1411 = vadd.f32 %v1250, %v1410
        %v1412 = vpop.f32.mrb[0].mxu0
        %1413 = vmatprep.mubr.bf16.mxu0 %v847
        %1414 = vmatmul.mubr.bf16.gmra.mrb[0].mxu0 %v846
        %v1415 = vpop.f32.mrb[0].mxu0
        %v1416 = vadd.f32 %v1255, %v1415
        %v1417 = vpop.f32.mrb[0].mxu0
        %v1418 = vpop.f32.mrb[0].mxu0
        %v1419 = vadd.f32 %v1258, %v1418
        %v1420 = vpop.f32.mrb[0].mxu0
        %1421 = vmatprep.mubr.bf16.mxu0 %v851
        %1422 = vmatmul.mubr.bf16.gmra.mrb[0].mxu0 %v850
        %v1423 = vpop.f32.mrb[0].mxu0
        %v1424 = vadd.f32 %v1263, %v1423
        %v1425 = vpop.f32.mrb[0].mxu0
        %v1426 = vpop.f32.mrb[0].mxu0
        %v1427 = vadd.f32 %v1266, %v1426
        %v1428 = vpop.f32.mrb[0].mxu0
        %1429 = vdwg.mxu0
        %v1430 = vadd.f32 %v436, %v1304
        %v1431 = vadd.f32 %v437, %v1307
        %v1432 = vadd.f32 %v438, %v1312
        %v1433 = vadd.f32 %v439, %v1315
        %v1434 = vadd.f32 %v440, %v1320
        %v1435 = vadd.f32 %v441, %v1323
        %v1436 = vadd.f32 %v442, %v1328
        %v1437 = vadd.f32 %v443, %v1331
        %v1438 = vadd.f32 %v444, %v1336
        %v1439 = vadd.f32 %v445, %v1339
        %v1440 = vadd.f32 %v446, %v1344
        %v1441 = vadd.f32 %v447, %v1347
        %v1442 = vadd.f32 %v448, %v1352
        %v1443 = vadd.f32 %v449, %v1355
        %v1444 = vadd.f32 %v450, %v1360
        %v1445 = vadd.f32 %v451, %v1363
        %v1446 = vadd.f32 %v452, %v1368
        %v1447 = vadd.f32 %v453, %v1371
        %v1448 = vadd.f32 %v454, %v1376
        %v1449 = vadd.f32 %v455, %v1379
        %v1450 = vadd.f32 %v456, %v1384
        %v1451 = vadd.f32 %v457, %v1387
        %v1452 = vadd.f32 %v458, %v1392
        %v1453 = vadd.f32 %v459, %v1395
        %v1454 = vadd.f32 %v460, %v1400
        %v1455 = vadd.f32 %v461, %v1403
        %v1456 = vadd.f32 %v462, %v1408
        %v1457 = vadd.f32 %v463, %v1411
        %v1458 = vadd.f32 %v464, %v1416
        %v1459 = vadd.f32 %v465, %v1419
        %v1460 = vadd.f32 %v466, %v1424
        %v1461 = vadd.f32 %v467, %v1427
        %1462 = vst [vmem:[#allocation2] sm:$0xff] %v1430
        %1463 = vst [vmem:[#allocation2 + $0x8] sm:$0xff] %v1431
        %1464 = vst [vmem:[#allocation2 + $0x10] sm:$0xff] %v1432
        %1465 = vst [vmem:[#allocation2 + $0x18] sm:$0xff] %v1433
        %1466 = vst [vmem:[#allocation2 + $0x20] sm:$0xff] %v1434
        %1467 = vst [vmem:[#allocation2 + $0x28] sm:$0xff] %v1435
        %1468 = vst [vmem:[#allocation2 + $0x30] sm:$0xff] %v1436
        %1469 = vst [vmem:[#allocation2 + $0x38] sm:$0xff] %v1437
        %1470 = vst [vmem:[#allocation2 + $0x40] sm:$0xff] %v1438
        %1471 = vst [vmem:[#allocation2 + $0x48] sm:$0xff] %v1439
        %1472 = vst [vmem:[#allocation2 + $0x50] sm:$0xff] %v1440
        %1473 = vst [vmem:[#allocation2 + $0x58] sm:$0xff] %v1441
        %1474 = vst [vmem:[#allocation2 + $0x60] sm:$0xff] %v1442
        %1475 = vst [vmem:[#allocation2 + $0x68] sm:$0xff] %v1443
        %1476 = vst [vmem:[#allocation2 + $0x70] sm:$0xff] %v1444
        %1477 = vst [vmem:[#allocation2 + $0x78] sm:$0xff] %v1445
        %1478 = vst [vmem:[#allocation2 + $0x80] sm:$0xff] %v1446
        %1479 = vst [vmem:[#allocation2 + $0x88] sm:$0xff] %v1447
        %1480 = vst [vmem:[#allocation2 + $0x90] sm:$0xff] %v1448
        %1481 = vst [vmem:[#allocation2 + $0x98] sm:$0xff] %v1449
        %1482 = vst [vmem:[#allocation2 + $0xa0] sm:$0xff] %v1450
        %1483 = vst [vmem:[#allocation2 + $0xa8] sm:$0xff] %v1451
        %1484 = vst [vmem:[#allocation2 + $0xb0] sm:$0xff] %v1452
        %1485 = vst [vmem:[#allocation2 + $0xb8] sm:$0xff] %v1453
        %1486 = vst [vmem:[#allocation2 + $0xc0] sm:$0xff] %v1454
        %1487 = vst [vmem:[#allocation2 + $0xc8] sm:$0xff] %v1455
        %1488 = vst [vmem:[#allocation2 + $0xd0] sm:$0xff] %v1456
        %1489 = vst [vmem:[#allocation2 + $0xd8] sm:$0xff] %v1457
        %1490 = vst [vmem:[#allocation2 + $0xe0] sm:$0xff] %v1458
        %1491 = vst [vmem:[#allocation2 + $0xe8] sm:$0xff] %v1459
        %1492 = vst [vmem:[#allocation2 + $0xf0] sm:$0xff] %v1460
        %1493 = vst [vmem:[#allocation2 + $0xf8] sm:$0xff] %v1461
        %p1494 = scmp.eq.s32.totalorder %s21, 1
        // Predicated region
        $region60: #{_lambda_.15} parent=50 // pred_check
          %p1495 = pneg %p1494
        $region61: #{_lambda_.15} parent=50 // pred_check_branch
          %1497 = sbr.rel (%p1495) target = $region63
        $region62: #{_lambda_.15} parent=50 // pred_region
          %v1498 = vld [vmem:[#allocation2] sm:$0xff]
          %v1499 = vld [vmem:[#allocation2 + $0x8] sm:$0xff]
          %v1500 = vld [vmem:[#allocation2 + $0x10] sm:$0xff]
          %v1501 = vld [vmem:[#allocation2 + $0x18] sm:$0xff]
          %v1502 = vld [vmem:[#allocation2 + $0x20] sm:$0xff]
          %v1503 = vld [vmem:[#allocation2 + $0x28] sm:$0xff]
          %v1504 = vld [vmem:[#allocation2 + $0x30] sm:$0xff]
          %v1505 = vld [vmem:[#allocation2 + $0x38] sm:$0xff]
          %v1506 = vld [vmem:[#allocation2 + $0x40] sm:$0xff]
          %v1507 = vld [vmem:[#allocation2 + $0x48] sm:$0xff]
          %v1508 = vld [vmem:[#allocation2 + $0x50] sm:$0xff]
          %v1509 = vld [vmem:[#allocation2 + $0x58] sm:$0xff]
          %v1510 = vld [vmem:[#allocation2 + $0x60] sm:$0xff]
          %v1511 = vld [vmem:[#allocation2 + $0x68] sm:$0xff]
          %v1512 = vld [vmem:[#allocation2 + $0x70] sm:$0xff]
          %v1513 = vld [vmem:[#allocation2 + $0x78] sm:$0xff]
          %v1514 = vld [vmem:[#allocation2 + $0x80] sm:$0xff]
          %v1515 = vld [vmem:[#allocation2 + $0x88] sm:$0xff]
          %v1516 = vld [vmem:[#allocation2 + $0x90] sm:$0xff]
          %v1517 = vld [vmem:[#allocation2 + $0x98] sm:$0xff]
          %v1518 = vld [vmem:[#allocation2 + $0xa0] sm:$0xff]
          %v1519 = vld [vmem:[#allocation2 + $0xa8] sm:$0xff]
          %v1520 = vld [vmem:[#allocation2 + $0xb0] sm:$0xff]
          %v1521 = vld [vmem:[#allocation2 + $0xb8] sm:$0xff]
          %v1522 = vld [vmem:[#allocation2 + $0xc0] sm:$0xff]
          %v1523 = vld [vmem:[#allocation2 + $0xc8] sm:$0xff]
          %v1524 = vld [vmem:[#allocation2 + $0xd0] sm:$0xff]
          %v1525 = vld [vmem:[#allocation2 + $0xd8] sm:$0xff]
          %v1526 = vld [vmem:[#allocation2 + $0xe0] sm:$0xff]
          %v1527 = vld [vmem:[#allocation2 + $0xe8] sm:$0xff]
          %v1528 = vld [vmem:[#allocation2 + $0xf0] sm:$0xff]
          %v1529 = vld [vmem:[#allocation2 + $0xf8] sm:$0xff]
          %v1530 = vld [vmem:[%s389] sm:$0x1]
          %v1532 = vlaneseq
          %v1533 = vshrl.u32 %v1532, 7
          %v1534 = vsub.s32 0, %v1533
          %v1535 = vrot.slane %v1530, %v1534
          %v1537 = vadd.f32 %v1498, %v1535
          %v1538 = vadd.f32 %v1499, %v1535
          %v1539 = vadd.f32 %v1500, %v1535
          %v1540 = vadd.f32 %v1501, %v1535
          %v1541 = vadd.f32 %v1502, %v1535
          %v1542 = vadd.f32 %v1503, %v1535
          %v1543 = vadd.f32 %v1504, %v1535
          %v1544 = vadd.f32 %v1505, %v1535
          %v1545 = vadd.f32 %v1506, %v1535
          %v1546 = vadd.f32 %v1507, %v1535
          %v1547 = vadd.f32 %v1508, %v1535
          %v1548 = vadd.f32 %v1509, %v1535
          %v1549 = vadd.f32 %v1510, %v1535
          %v1550 = vadd.f32 %v1511, %v1535
          %v1551 = vadd.f32 %v1512, %v1535
          %v1552 = vadd.f32 %v1513, %v1535
          %v1553 = vadd.f32 %v1514, %v1535
          %v1554 = vadd.f32 %v1515, %v1535
          %v1555 = vadd.f32 %v1516, %v1535
          %v1556 = vadd.f32 %v1517, %v1535
          %v1557 = vadd.f32 %v1518, %v1535
          %v1558 = vadd.f32 %v1519, %v1535
          %v1559 = vadd.f32 %v1520, %v1535
          %v1560 = vadd.f32 %v1521, %v1535
          %v1561 = vadd.f32 %v1522, %v1535
          %v1562 = vadd.f32 %v1523, %v1535
          %v1563 = vadd.f32 %v1524, %v1535
          %v1564 = vadd.f32 %v1525, %v1535
          %v1565 = vadd.f32 %v1526, %v1535
          %v1566 = vadd.f32 %v1527, %v1535
          %v1567 = vadd.f32 %v1528, %v1535
          %v1568 = vadd.f32 %v1529, %v1535
          %1569 = vst [vmem:[%s397] sm:$0xff] %v1537
          %1570 = vst [vmem:[%s397 + $0x8] sm:$0xff] %v1538
          %1571 = vst [vmem:[%s397 + $0x10] sm:$0xff] %v1539
          %1572 = vst [vmem:[%s397 + $0x18] sm:$0xff] %v1540
          %1573 = vst [vmem:[%s397 + $0x20] sm:$0xff] %v1541
          %1574 = vst [vmem:[%s397 + $0x28] sm:$0xff] %v1542
          %1575 = vst [vmem:[%s397 + $0x30] sm:$0xff] %v1543
          %1576 = vst [vmem:[%s397 + $0x38] sm:$0xff] %v1544
          %1577 = vst [vmem:[%s397 + $0x40] sm:$0xff] %v1545
          %1578 = vst [vmem:[%s397 + $0x48] sm:$0xff] %v1546
          %1579 = vst [vmem:[%s397 + $0x50] sm:$0xff] %v1547
          %1580 = vst [vmem:[%s397 + $0x58] sm:$0xff] %v1548
          %1581 = vst [vmem:[%s397 + $0x60] sm:$0xff] %v1549
          %1582 = vst [vmem:[%s397 + $0x68] sm:$0xff] %v1550
          %1583 = vst [vmem:[%s397 + $0x70] sm:$0xff] %v1551
          %1584 = vst [vmem:[%s397 + $0x78] sm:$0xff] %v1552
          %1585 = vst [vmem:[%s397 + $0x80] sm:$0xff] %v1553
          %1586 = vst [vmem:[%s397 + $0x88] sm:$0xff] %v1554
          %1587 = vst [vmem:[%s397 + $0x90] sm:$0xff] %v1555
          %1588 = vst [vmem:[%s397 + $0x98] sm:$0xff] %v1556
          %1589 = vst [vmem:[%s397 + $0xa0] sm:$0xff] %v1557
          %1590 = vst [vmem:[%s397 + $0xa8] sm:$0xff] %v1558
          %1591 = vst [vmem:[%s397 + $0xb0] sm:$0xff] %v1559
          %1592 = vst [vmem:[%s397 + $0xb8] sm:$0xff] %v1560
          %1593 = vst [vmem:[%s397 + $0xc0] sm:$0xff] %v1561
          %1594 = vst [vmem:[%s397 + $0xc8] sm:$0xff] %v1562
          %1595 = vst [vmem:[%s397 + $0xd0] sm:$0xff] %v1563
          %1596 = vst [vmem:[%s397 + $0xd8] sm:$0xff] %v1564
          %1597 = vst [vmem:[%s397 + $0xe0] sm:$0xff] %v1565
          %1598 = vst [vmem:[%s397 + $0xe8] sm:$0xff] %v1566
          %1599 = vst [vmem:[%s397 + $0xf0] sm:$0xff] %v1567
          %1600 = vst [vmem:[%s397 + $0xf8] sm:$0xff] %v1568
        $region63: #{_lambda_.15} parent=50 // pred_fallthru
          _
        %s1601 = smul.u32 32, %s19
        %p1602 = scmp.lt.s32.totalorder %s1601, 31
        %s1603 = scalar_select %p1602, %s1601, 31
        %p1604 = scmp.lt.s32.totalorder %s20, 0
        %s1605 = scalar_select %p1604, %s20, 0
        %s1606 = sadd.s32 %s1605, %s1603
        %s1607 = smul.addr %s1606, 8
        %s1608 = scalar_lea.vmem %s3, %s1607
        // Predicated region
        $region64: #{_lambda_.15} parent=50 // pred_check
          %p1609 = pneg %p135
        $region65: #{_lambda_.15} parent=50 // pred_check_branch
          %1611 = sbr.rel (%p1609) target = $region67
        $region66: #{_lambda_.15} parent=50 // pred_region
          %s1612 = smul.u32 32, %s19
        $region67: #{_lambda_.15} parent=50 // pred_fallthru
          _
        // Predicated region
        $region68: #{_lambda_.15} parent=50 // pred_check
          %p1613 = pneg %p135
        $region69: #{_lambda_.15} parent=50 // pred_check_branch
          %1615 = sbr.rel (%p1613) target = $region71
        $region70: #{_lambda_.15} parent=50 // pred_region
          %s1616 = smul.u32 32, %s19
          %p1617 = scmp.lt.s32.totalorder %s1616, 31
          %s1618 = scalar_select %p1617, %s1616, 31
          %p1619 = scmp.lt.s32.totalorder %s20, 0
          %s1620 = scalar_select %p1619, %s20, 0
          %s1621 = sadd.s32 %s1620, %s1618
          %s1622 = smul.addr %s1621, 8
          %s1623 = scalar_lea.vmem %s3, %s1622
        $region71: #{_lambda_.15} parent=50 // pred_fallthru
          _
      $region51: #{_lambda_.15} parent=5 // pred_fallthru
        _
      %p1624 = scmp.le.s32.totalorder 2, %s9
      // Predicated region
      $region72: #{_lambda_.15} parent=5 // pred_check
        %p1625 = pneg %p1624
      $region73: #{_lambda_.15} parent=5 // pred_check_branch
        %1627 = sbr.rel (%p1625) target = $region75
      $region74: #{_lambda_.15} parent=5 // pred_region
        %s1628 = ssub.s32 %s9, 2
      $region75: #{_lambda_.15} parent=5 // pred_fallthru
        _
    $region6: #{_lambda_.15} parent=1 // loop_footer
      %s13 = sadd.s32 1, %s9
    $region7: #{_lambda_.15} parent=1 // loop_footer_branch
      %8 = sbr.rel target = $region3
    $region8: #{_lambda_.15} parent=1 // loop_exit
      _

</llo_original>
